<compile_context>
chip_gen: v6e
topology: v6e:2x2x1
jax: 0.10.0
libtpu: 0.0.40
codegen_flags: <defaults>
</compile_context>

<pallas_src>
import functools

import jax
import jax.numpy as jnp
from jax.experimental import pallas as pl
from jax.experimental.pallas import tpu as pltpu


# ----------------------------------------------------------------------------
# Fused dense-layer kernel (per-sample)
# ----------------------------------------------------------------------------
def _dense_layer_kernel(x_ref, s1_ref, b1_ref, w1_ref, s2_ref, b2_ref, w2_ref,
                        o_ref, zpad_ref):
    # x_ref:  (H, W, Cin)      one sample, channels-last
    # s1/b1:  (1, Cin)         folded BN1 scale / shift
    # w1:     (Cin, Cmid)      1x1 conv weight
    # s2/b2:  (1, Cmid)        folded BN2 scale / shift
    # w2:     (9, Cmid, Cout)  3x3 conv weight, tap-major
    # o_ref:  (H, W, Cout)
    # zpad:   (H+2, W+2, Cmid) VMEM scratch for the padded intermediate
    H, W, Cin = x_ref.shape
    Cmid = w1_ref.shape[1]
    Cout = o_ref.shape[-1]

    # ---- BN1 (folded) + ReLU + Conv1x1 : one pointwise FMA + one matmul ----
    x2d = x_ref[...].reshape(H * W, Cin)
    a = jnp.maximum(x2d * s1_ref[...] + b1_ref[...], 0.0)
    y1 = jnp.dot(a, w1_ref[...], preferred_element_type=jnp.float32)

    # ---- BN2 (folded) + ReLU ----
    z = jnp.maximum(y1 * s2_ref[...] + b2_ref[...], 0.0)

    # ---- zero-padded (pad=1) copy of the intermediate in VMEM scratch ----
    zpad_ref[...] = jnp.zeros(zpad_ref.shape, zpad_ref.dtype)
    zpad_ref[1:H + 1, 1:W + 1, :] = z.reshape(H, W, Cmid)

    # ---- Conv3x3: 9 shifted static slices, accumulated in f32 on the MXU ----
    w2 = w2_ref[...]  # (9, Cmid, Cout), indexed with static python ints below
    acc = jnp.zeros((H * W, Cout), jnp.float32)
    tap = 0
    for kh in range(3):
        for kw in range(3):
            patch = zpad_ref[kh:kh + H, kw:kw + W, :].reshape(H * W, Cmid)
            acc = acc + jnp.dot(patch, w2[tap],
                                preferred_element_type=jnp.float32)
            tap += 1

    o_ref[...] = acc.reshape(H, W, Cout)


def dense_layer_forward(x_nchw, params, eps=1e-5):
    """x_nchw: (N, Cin, H, W) f32 -> (N, Cin + growth_rate, H, W) f32."""
    N, Cin, H, W = x_nchw.shape
    g1, be1, m1, v1 = params["bn1"]
    g2, be2, m2, v2 = params["bn2"]
    w1 = params["conv1"]                      # (Cin, Cmid)
    w2 = params["conv2"]                      # (3, 3, Cmid, Cout)
    Cmid = w1.shape[1]
    Cout = w2.shape[-1]

    # Fold inference-mode BatchNorm into per-channel scale/shift.
    s1 = g1 / jnp.sqrt(v1 + eps)
    b1 = be1 - m1 * s1
    s2 = g2 / jnp.sqrt(v2 + eps)
    b2 = be2 - m2 * s2

    x_nhwc = jnp.transpose(x_nchw, (0, 2, 3, 1))   # channels-last for the kernel
    w2_flat = w2.reshape(9, Cmid, Cout)

    out_nhwc = pl.pallas_call(
        _dense_layer_kernel,
        out_shape=jax.ShapeDtypeStruct((N, H, W, Cout), jnp.float32),
        grid=(N,),
        in_specs=[
            pl.BlockSpec((None, H, W, Cin), lambda n: (n, 0, 0, 0)),
            pl.BlockSpec((1, Cin), lambda n: (0, 0)),
            pl.BlockSpec((1, Cin), lambda n: (0, 0)),
            pl.BlockSpec((Cin, Cmid), lambda n: (0, 0)),
            pl.BlockSpec((1, Cmid), lambda n: (0, 0)),
            pl.BlockSpec((1, Cmid), lambda n: (0, 0)),
            pl.BlockSpec((9, Cmid, Cout), lambda n: (0, 0, 0)),
        ],
        out_specs=pl.BlockSpec((None, H, W, Cout), lambda n: (n, 0, 0, 0)),
        scratch_shapes=[pltpu.VMEM((H + 2, W + 2, Cmid), jnp.float32)],
        compiler_params=pltpu.CompilerParams(
            dimension_semantics=("parallel",)),
    )(x_nhwc, s1.reshape(1, Cin), b1.reshape(1, Cin), w1,
      s2.reshape(1, Cmid), b2.reshape(1, Cmid), w2_flat)

    out_nchw = jnp.transpose(out_nhwc, (0, 3, 1, 2))
    # TODO(synk): training-mode dropout (drop_rate > 0) is not implemented;
    # inference-mode dropout is the identity, which is what we compute here.
    return jnp.concatenate([x_nchw, out_nchw], axis=1)


# ----------------------------------------------------------------------------
# Pure-JAX reference (for a correctness check against the Pallas path)
# ----------------------------------------------------------------------------
def reference_forward(x_nchw, params, eps=1e-5):
    g1, be1, m1, v1 = params["bn1"]
    g2, be2, m2, v2 = params["bn2"]
    w1 = params["conv1"]
    w2 = params["conv2"]

    def bn(x, g, b, m, v):
        g, b, m, v = (t[None, :, None, None] for t in (g, b, m, v))
        return (x - m) / jnp.sqrt(v + eps) * g + b

    out = jax.nn.relu(bn(x_nchw, g1, be1, m1, v1))
    out = jnp.einsum('nchw,cm->nmhw', out, w1)
    out = jax.nn.relu(bn(out, g2, be2, m2, v2))
    out = jax.lax.conv_general_dilated(
        out, w2, window_strides=(1, 1), padding=((1, 1), (1, 1)),
        dimension_numbers=('NCHW', 'HWIO', 'NCHW'))
    return jnp.concatenate([x_nchw, out], axis=1)


# ----------------------------------------------------------------------------
# Deterministic parameters
# ----------------------------------------------------------------------------
def init_params(key, num_input_features, growth_rate, bn_size):
    Cin = num_input_features
    Cmid = bn_size * growth_rate
    Cout = growth_rate
    ks = jax.random.split(key, 10)

    def uni(k, shape, bound):
        return jax.random.uniform(k, shape, jnp.float32, -bound, bound)

    params = {
        "bn1": (1.0 + 0.1 * jax.random.normal(ks[0], (Cin,), jnp.float32),   # gamma
                0.1 * jax.random.normal(ks[1], (Cin,), jnp.float32),         # beta
                0.1 * jax.random.normal(ks[2], (Cin,), jnp.float32),         # running_mean
                1.0 + 0.5 * jax.random.uniform(ks[3], (Cin,), jnp.float32)), # running_var > 0
        "bn2": (1.0 + 0.1 * jax.random.normal(ks[4], (Cmid,), jnp.float32),
                0.1 * jax.random.normal(ks[5], (Cmid,), jnp.float32),
                0.1 * jax.random.normal(ks[6], (Cmid,), jnp.float32),
                1.0 + 0.5 * jax.random.uniform(ks[7], (Cmid,), jnp.float32)),
        "conv1": uni(ks[8], (Cin, Cmid), 1.0 / jnp.sqrt(float(Cin))),
        "conv2": uni(ks[9], (3, 3, Cmid, Cout), 1.0 / jnp.sqrt(float(9 * Cmid))),
    }
    return params


if __name__ == "__main__":
    key = jax.random.PRNGKey(0)
    pkey, xkey = jax.random.split(key)

    # _DenseLayer(num_input_features=32, growth_rate=16, bn_size=4, drop_rate=0)
    num_input_features, growth_rate, bn_size = 32, 16, 4
    N, H, W = 2, 16, 16

    params = init_params(pkey, num_input_features, growth_rate, bn_size)
    x = jax.random.normal(xkey, (N, num_input_features, H, W), jnp.float32)

    fwd = jax.jit(functools.partial(dense_layer_forward, params=params))
    out = fwd(x)
    jax.block_until_ready(out)
    assert out.shape == (N, num_input_features + growth_rate, H, W), out.shape

    ref = jax.jit(functools.partial(reference_forward, params=params))(x)
    jax.block_until_ready(ref)
    max_err = float(jnp.max(jnp.abs(out - ref)))
    assert max_err < 5e-2, f"mismatch vs reference: {max_err}"

    print("KERNEL_OK")
</pallas_src>

<mosaic_0001>
module attributes {stable_mosaic.version = 11 : i64} {
  func.func @_dense_layer_kernel(%arg0: i32, %arg1: memref<1x16x16x32xf32, #tpu.memory_space<vmem>>, %arg2: memref<1x32xf32, #tpu.memory_space<vmem>>, %arg3: memref<1x32xf32, #tpu.memory_space<vmem>>, %arg4: memref<32x64xf32, #tpu.memory_space<vmem>>, %arg5: memref<1x64xf32, #tpu.memory_space<vmem>>, %arg6: memref<1x64xf32, #tpu.memory_space<vmem>>, %arg7: memref<9x64x16xf32, #tpu.memory_space<vmem>>, %arg8: memref<1x16x16x16xf32, #tpu.memory_space<vmem>>, %arg9: memref<18x18x64xf32, #tpu.memory_space<vmem>>) attributes {dimension_semantics = [#tpu.dimension_semantics<parallel>], iteration_bounds = array<i64: 2>, scalar_prefetch = 0 : i64, scratch_operands = 1 : i64, tpu.core_type = #tpu.core_type<tc>, window_params = [{transform_indices = @transform_0, window_bounds = array<i64: 1, 16, 16, 32>}, {pipeline_mode = #tpu.pipeline_mode<synchronous>, transform_indices = @transform_1, window_bounds = array<i64: 1, 32>}, {pipeline_mode = #tpu.pipeline_mode<synchronous>, transform_indices = @transform_2, window_bounds = array<i64: 1, 32>}, {pipeline_mode = #tpu.pipeline_mode<synchronous>, transform_indices = @transform_3, window_bounds = array<i64: 32, 64>}, {pipeline_mode = #tpu.pipeline_mode<synchronous>, transform_indices = @transform_4, window_bounds = array<i64: 1, 64>}, {pipeline_mode = #tpu.pipeline_mode<synchronous>, transform_indices = @transform_5, window_bounds = array<i64: 1, 64>}, {pipeline_mode = #tpu.pipeline_mode<synchronous>, transform_indices = @transform_6, window_bounds = array<i64: 9, 64, 16>}, {transform_indices = @transform_7, window_bounds = array<i64: 1, 16, 16, 16>}]} {
    %c0 = arith.constant 0 : index
    %c0_0 = arith.constant 0 : index
    %c0_1 = arith.constant 0 : index
    %c0_2 = arith.constant 0 : index
    %0 = vector.load %arg1[%c0, %c0_0, %c0_1, %c0_2] : memref<1x16x16x32xf32, #tpu.memory_space<vmem>>, vector<1x16x16x32xf32>
    %1 = vector.shape_cast %0 : vector<1x16x16x32xf32> to vector<16x16x32xf32>
    %2 = vector.shape_cast %1 : vector<16x16x32xf32> to vector<256x32xf32>
    %c0_3 = arith.constant 0 : index
    %c0_4 = arith.constant 0 : index
    %3 = vector.load %arg2[%c0_3, %c0_4] : memref<1x32xf32, #tpu.memory_space<vmem>>, vector<1x32xf32>
    %4 = vector.broadcast %3 : vector<1x32xf32> to vector<256x32xf32>
    %5 = arith.mulf %2, %4 : vector<256x32xf32>
    %c0_5 = arith.constant 0 : index
    %c0_6 = arith.constant 0 : index
    %6 = vector.load %arg3[%c0_5, %c0_6] : memref<1x32xf32, #tpu.memory_space<vmem>>, vector<1x32xf32>
    %7 = vector.broadcast %6 : vector<1x32xf32> to vector<256x32xf32>
    %8 = arith.addf %5, %7 : vector<256x32xf32>
    %cst = arith.constant 0.000000e+00 : f32
    %9 = vector.broadcast %cst : f32 to vector<256x32xf32>
    %10 = arith.maximumf %8, %9 : vector<256x32xf32>
    %c0_7 = arith.constant 0 : index
    %c0_8 = arith.constant 0 : index
    %11 = vector.load %arg4[%c0_7, %c0_8] : memref<32x64xf32, #tpu.memory_space<vmem>>, vector<32x64xf32>
    %cst_9 = arith.constant dense<0.000000e+00> : vector<256x64xf32>
    %12 = tpu.matmul %10, %11, %cst_9 {dimension_numbers = #tpu.dot_dimension_numbers<[1], [0], [0], [1], [0, 0, 1, 1], [], []>} : vector<256x32xf32>, vector<32x64xf32>, vector<256x64xf32> -> vector<256x64xf32>
    %c0_10 = arith.constant 0 : index
    %c0_11 = arith.constant 0 : index
    %13 = vector.load %arg5[%c0_10, %c0_11] : memref<1x64xf32, #tpu.memory_space<vmem>>, vector<1x64xf32>
    %14 = vector.broadcast %13 : vector<1x64xf32> to vector<256x64xf32>
    %15 = arith.mulf %12, %14 : vector<256x64xf32>
    %c0_12 = arith.constant 0 : index
    %c0_13 = arith.constant 0 : index
    %16 = vector.load %arg6[%c0_12, %c0_13] : memref<1x64xf32, #tpu.memory_space<vmem>>, vector<1x64xf32>
    %17 = vector.broadcast %16 : vector<1x64xf32> to vector<256x64xf32>
    %18 = arith.addf %15, %17 : vector<256x64xf32>
    %cst_14 = arith.constant 0.000000e+00 : f32
    %19 = vector.broadcast %cst_14 : f32 to vector<256x64xf32>
    %20 = arith.maximumf %18, %19 : vector<256x64xf32>
    %cst_15 = arith.constant 0.000000e+00 : f32
    %21 = vector.broadcast %cst_15 : f32 to vector<18x18x64xf32>
    %c0_16 = arith.constant 0 : index
    %c0_17 = arith.constant 0 : index
    %c0_18 = arith.constant 0 : index
    %22 = vector.load %arg9[%c0_16, %c0_17, %c0_18] : memref<18x18x64xf32, #tpu.memory_space<vmem>>, vector<18x18x64xf32>
    tpu.vector_store %arg9[%c0_16, %c0_17, %c0_18], %21 {strides = array<i32>} : memref<18x18x64xf32, #tpu.memory_space<vmem>>, vector<18x18x64xf32>,
    %23 = vector.shape_cast %20 : vector<256x64xf32> to vector<16x16x64xf32>
    %c1 = arith.constant 1 : index
    %c1_19 = arith.constant 1 : index
    %c0_20 = arith.constant 0 : index
    %24 = vector.load %arg9[%c1, %c1_19, %c0_20] : memref<18x18x64xf32, #tpu.memory_space<vmem>>, vector<16x16x64xf32>
    tpu.vector_store %arg9[%c1, %c1_19, %c0_20], %23 {strides = array<i32>} : memref<18x18x64xf32, #tpu.memory_space<vmem>>, vector<16x16x64xf32>,
    %c0_21 = arith.constant 0 : index
    %c0_22 = arith.constant 0 : index
    %c0_23 = arith.constant 0 : index
    %25 = vector.load %arg7[%c0_21, %c0_22, %c0_23] : memref<9x64x16xf32, #tpu.memory_space<vmem>>, vector<9x64x16xf32>
    %cst_24 = arith.constant 0.000000e+00 : f32
    %26 = vector.broadcast %cst_24 : f32 to vector<256x16xf32>
    %c0_25 = arith.constant 0 : index
    %c0_26 = arith.constant 0 : index
    %c0_27 = arith.constant 0 : index
    %27 = vector.load %arg9[%c0_25, %c0_26, %c0_27] : memref<18x18x64xf32, #tpu.memory_space<vmem>>, vector<16x16x64xf32>
    %28 = vector.shape_cast %27 : vector<16x16x64xf32> to vector<256x64xf32>
    %29 = vector.extract_strided_slice %25 {offsets = [0, 0, 0], sizes = [1, 64, 16], strides = [1, 1, 1]} : vector<9x64x16xf32> to vector<1x64x16xf32>
    %30 = vector.shape_cast %29 : vector<1x64x16xf32> to vector<64x16xf32>
    %cst_28 = arith.constant dense<0.000000e+00> : vector<256x16xf32>
    %31 = tpu.matmul %28, %30, %cst_28 {dimension_numbers = #tpu.dot_dimension_numbers<[1], [0], [0], [1], [0, 0, 1, 1], [], []>} : vector<256x64xf32>, vector<64x16xf32>, vector<256x16xf32> -> vector<256x16xf32>
    %32 = arith.addf %26, %31 : vector<256x16xf32>
    %c0_29 = arith.constant 0 : index
    %c1_30 = arith.constant 1 : index
    %c0_31 = arith.constant 0 : index
    %33 = vector.load %arg9[%c0_29, %c1_30, %c0_31] : memref<18x18x64xf32, #tpu.memory_space<vmem>>, vector<16x16x64xf32>
    %34 = vector.shape_cast %33 : vector<16x16x64xf32> to vector<256x64xf32>
    %35 = vector.extract_strided_slice %25 {offsets = [1, 0, 0], sizes = [1, 64, 16], strides = [1, 1, 1]} : vector<9x64x16xf32> to vector<1x64x16xf32>
    %36 = vector.shape_cast %35 : vector<1x64x16xf32> to vector<64x16xf32>
    %cst_32 = arith.constant dense<0.000000e+00> : vector<256x16xf32>
    %37 = tpu.matmul %34, %36, %cst_32 {dimension_numbers = #tpu.dot_dimension_numbers<[1], [0], [0], [1], [0, 0, 1, 1], [], []>} : vector<256x64xf32>, vector<64x16xf32>, vector<256x16xf32> -> vector<256x16xf32>
    %38 = arith.addf %32, %37 : vector<256x16xf32>
    %c0_33 = arith.constant 0 : index
    %c2 = arith.constant 2 : index
    %c0_34 = arith.constant 0 : index
    %39 = vector.load %arg9[%c0_33, %c2, %c0_34] : memref<18x18x64xf32, #tpu.memory_space<vmem>>, vector<16x16x64xf32>
    %40 = vector.shape_cast %39 : vector<16x16x64xf32> to vector<256x64xf32>
    %41 = vector.extract_strided_slice %25 {offsets = [2, 0, 0], sizes = [1, 64, 16], strides = [1, 1, 1]} : vector<9x64x16xf32> to vector<1x64x16xf32>
    %42 = vector.shape_cast %41 : vector<1x64x16xf32> to vector<64x16xf32>
    %cst_35 = arith.constant dense<0.000000e+00> : vector<256x16xf32>
    %43 = tpu.matmul %40, %42, %cst_35 {dimension_numbers = #tpu.dot_dimension_numbers<[1], [0], [0], [1], [0, 0, 1, 1], [], []>} : vector<256x64xf32>, vector<64x16xf32>, vector<256x16xf32> -> vector<256x16xf32>
    %44 = arith.addf %38, %43 : vector<256x16xf32>
    %c1_36 = arith.constant 1 : index
    %c0_37 = arith.constant 0 : index
    %c0_38 = arith.constant 0 : index
    %45 = vector.load %arg9[%c1_36, %c0_37, %c0_38] : memref<18x18x64xf32, #tpu.memory_space<vmem>>, vector<16x16x64xf32>
    %46 = vector.shape_cast %45 : vector<16x16x64xf32> to vector<256x64xf32>
    %47 = vector.extract_strided_slice %25 {offsets = [3, 0, 0], sizes = [1, 64, 16], strides = [1, 1, 1]} : vector<9x64x16xf32> to vector<1x64x16xf32>
    %48 = vector.shape_cast %47 : vector<1x64x16xf32> to vector<64x16xf32>
    %cst_39 = arith.constant dense<0.000000e+00> : vector<256x16xf32>
    %49 = tpu.matmul %46, %48, %cst_39 {dimension_numbers = #tpu.dot_dimension_numbers<[1], [0], [0], [1], [0, 0, 1, 1], [], []>} : vector<256x64xf32>, vector<64x16xf32>, vector<256x16xf32> -> vector<256x16xf32>
    %50 = arith.addf %44, %49 : vector<256x16xf32>
    %c1_40 = arith.constant 1 : index
    %c1_41 = arith.constant 1 : index
    %c0_42 = arith.constant 0 : index
    %51 = vector.load %arg9[%c1_40, %c1_41, %c0_42] : memref<18x18x64xf32, #tpu.memory_space<vmem>>, vector<16x16x64xf32>
    %52 = vector.shape_cast %51 : vector<16x16x64xf32> to vector<256x64xf32>
    %53 = vector.extract_strided_slice %25 {offsets = [4, 0, 0], sizes = [1, 64, 16], strides = [1, 1, 1]} : vector<9x64x16xf32> to vector<1x64x16xf32>
    %54 = vector.shape_cast %53 : vector<1x64x16xf32> to vector<64x16xf32>
    %cst_43 = arith.constant dense<0.000000e+00> : vector<256x16xf32>
    %55 = tpu.matmul %52, %54, %cst_43 {dimension_numbers = #tpu.dot_dimension_numbers<[1], [0], [0], [1], [0, 0, 1, 1], [], []>} : vector<256x64xf32>, vector<64x16xf32>, vector<256x16xf32> -> vector<256x16xf32>
    %56 = arith.addf %50, %55 : vector<256x16xf32>
    %c1_44 = arith.constant 1 : index
    %c2_45 = arith.constant 2 : index
    %c0_46 = arith.constant 0 : index
    %57 = vector.load %arg9[%c1_44, %c2_45, %c0_46] : memref<18x18x64xf32, #tpu.memory_space<vmem>>, vector<16x16x64xf32>
    %58 = vector.shape_cast %57 : vector<16x16x64xf32> to vector<256x64xf32>
    %59 = vector.extract_strided_slice %25 {offsets = [5, 0, 0], sizes = [1, 64, 16], strides = [1, 1, 1]} : vector<9x64x16xf32> to vector<1x64x16xf32>
    %60 = vector.shape_cast %59 : vector<1x64x16xf32> to vector<64x16xf32>
    %cst_47 = arith.constant dense<0.000000e+00> : vector<256x16xf32>
    %61 = tpu.matmul %58, %60, %cst_47 {dimension_numbers = #tpu.dot_dimension_numbers<[1], [0], [0], [1], [0, 0, 1, 1], [], []>} : vector<256x64xf32>, vector<64x16xf32>, vector<256x16xf32> -> vector<256x16xf32>
    %62 = arith.addf %56, %61 : vector<256x16xf32>
    %c2_48 = arith.constant 2 : index
    %c0_49 = arith.constant 0 : index
    %c0_50 = arith.constant 0 : index
    %63 = vector.load %arg9[%c2_48, %c0_49, %c0_50] : memref<18x18x64xf32, #tpu.memory_space<vmem>>, vector<16x16x64xf32>
    %64 = vector.shape_cast %63 : vector<16x16x64xf32> to vector<256x64xf32>
    %65 = vector.extract_strided_slice %25 {offsets = [6, 0, 0], sizes = [1, 64, 16], strides = [1, 1, 1]} : vector<9x64x16xf32> to vector<1x64x16xf32>
    %66 = vector.shape_cast %65 : vector<1x64x16xf32> to vector<64x16xf32>
    %cst_51 = arith.constant dense<0.000000e+00> : vector<256x16xf32>
    %67 = tpu.matmul %64, %66, %cst_51 {dimension_numbers = #tpu.dot_dimension_numbers<[1], [0], [0], [1], [0, 0, 1, 1], [], []>} : vector<256x64xf32>, vector<64x16xf32>, vector<256x16xf32> -> vector<256x16xf32>
    %68 = arith.addf %62, %67 : vector<256x16xf32>
    %c2_52 = arith.constant 2 : index
    %c1_53 = arith.constant 1 : index
    %c0_54 = arith.constant 0 : index
    %69 = vector.load %arg9[%c2_52, %c1_53, %c0_54] : memref<18x18x64xf32, #tpu.memory_space<vmem>>, vector<16x16x64xf32>
    %70 = vector.shape_cast %69 : vector<16x16x64xf32> to vector<256x64xf32>
    %71 = vector.extract_strided_slice %25 {offsets = [7, 0, 0], sizes = [1, 64, 16], strides = [1, 1, 1]} : vector<9x64x16xf32> to vector<1x64x16xf32>
    %72 = vector.shape_cast %71 : vector<1x64x16xf32> to vector<64x16xf32>
    %cst_55 = arith.constant dense<0.000000e+00> : vector<256x16xf32>
    %73 = tpu.matmul %70, %72, %cst_55 {dimension_numbers = #tpu.dot_dimension_numbers<[1], [0], [0], [1], [0, 0, 1, 1], [], []>} : vector<256x64xf32>, vector<64x16xf32>, vector<256x16xf32> -> vector<256x16xf32>
    %74 = arith.addf %68, %73 : vector<256x16xf32>
    %c2_56 = arith.constant 2 : index
    %c2_57 = arith.constant 2 : index
    %c0_58 = arith.constant 0 : index
    %75 = vector.load %arg9[%c2_56, %c2_57, %c0_58] : memref<18x18x64xf32, #tpu.memory_space<vmem>>, vector<16x16x64xf32>
    %76 = vector.shape_cast %75 : vector<16x16x64xf32> to vector<256x64xf32>
    %77 = vector.extract_strided_slice %25 {offsets = [8, 0, 0], sizes = [1, 64, 16], strides = [1, 1, 1]} : vector<9x64x16xf32> to vector<1x64x16xf32>
    %78 = vector.shape_cast %77 : vector<1x64x16xf32> to vector<64x16xf32>
    %cst_59 = arith.constant dense<0.000000e+00> : vector<256x16xf32>
    %79 = tpu.matmul %76, %78, %cst_59 {dimension_numbers = #tpu.dot_dimension_numbers<[1], [0], [0], [1], [0, 0, 1, 1], [], []>} : vector<256x64xf32>, vector<64x16xf32>, vector<256x16xf32> -> vector<256x16xf32>
    %80 = arith.addf %74, %79 : vector<256x16xf32>
    %81 = vector.shape_cast %80 : vector<256x16xf32> to vector<16x16x16xf32>
    %c0_60 = arith.constant 0 : index
    %c0_61 = arith.constant 0 : index
    %c0_62 = arith.constant 0 : index
    %c0_63 = arith.constant 0 : index
    %82 = vector.load %arg8[%c0_60, %c0_61, %c0_62, %c0_63] : memref<1x16x16x16xf32, #tpu.memory_space<vmem>>, vector<1x16x16x16xf32>
    %83 = vector.shape_cast %82 : vector<1x16x16x16xf32> to vector<16x16x16xf32>
    %84 = vector.shape_cast %81 : vector<16x16x16xf32> to vector<1x16x16x16xf32>
    tpu.vector_store %arg8[%c0_60, %c0_61, %c0_62, %c0_63], %84 {strides = array<i32>} : memref<1x16x16x16xf32, #tpu.memory_space<vmem>>, vector<1x16x16x16xf32>,
    return
  }
  func.func @transform_0(%arg0: i32) -> (i32, i32, i32, i32) {
    %c0_i32 = arith.constant 0 : i32
    %c0_i32_0 = arith.constant 0 : i32
    %c0_i32_1 = arith.constant 0 : i32
    %c0_i32_2 = arith.constant 0 : i32
    return %arg0, %c0_i32, %c0_i32_0, %c0_i32_1 : i32, i32, i32, i32
  }
  func.func @transform_1(%arg0: i32) -> (i32, i32) {
    %c0_i32 = arith.constant 0 : i32
    %c0_i32_0 = arith.constant 0 : i32
    %c0_i32_1 = arith.constant 0 : i32
    return %c0_i32, %c0_i32_0 : i32, i32
  }
  func.func @transform_2(%arg0: i32) -> (i32, i32) {
    %c0_i32 = arith.constant 0 : i32
    %c0_i32_0 = arith.constant 0 : i32
    %c0_i32_1 = arith.constant 0 : i32
    return %c0_i32, %c0_i32_0 : i32, i32
  }
  func.func @transform_3(%arg0: i32) -> (i32, i32) {
    %c0_i32 = arith.constant 0 : i32
    %c0_i32_0 = arith.constant 0 : i32
    %c0_i32_1 = arith.constant 0 : i32
    return %c0_i32, %c0_i32_0 : i32, i32
  }
  func.func @transform_4(%arg0: i32) -> (i32, i32) {
    %c0_i32 = arith.constant 0 : i32
    %c0_i32_0 = arith.constant 0 : i32
    %c0_i32_1 = arith.constant 0 : i32
    return %c0_i32, %c0_i32_0 : i32, i32
  }
  func.func @transform_5(%arg0: i32) -> (i32, i32) {
    %c0_i32 = arith.constant 0 : i32
    %c0_i32_0 = arith.constant 0 : i32
    %c0_i32_1 = arith.constant 0 : i32
    return %c0_i32, %c0_i32_0 : i32, i32
  }
  func.func @transform_6(%arg0: i32) -> (i32, i32, i32) {
    %c0_i32 = arith.constant 0 : i32
    %c0_i32_0 = arith.constant 0 : i32
    %c0_i32_1 = arith.constant 0 : i32
    %c0_i32_2 = arith.constant 0 : i32
    return %c0_i32, %c0_i32_0, %c0_i32_1 : i32, i32, i32
  }
  func.func @transform_7(%arg0: i32) -> (i32, i32, i32, i32) {
    %c0_i32 = arith.constant 0 : i32
    %c0_i32_0 = arith.constant 0 : i32
    %c0_i32_1 = arith.constant 0 : i32
    %c0_i32_2 = arith.constant 0 : i32
    return %arg0, %c0_i32, %c0_i32_0, %c0_i32_1 : i32, i32, i32, i32
  }
}

</mosaic_0001>

<llo_original>
// kernel: dense_layer_forward.1
$region0: #{dense_layer_forward.1}
  #allocation0 [shape = 'u32[]', space=smem, size = 0x4, offset = 0x4, fixed_abs, tag = 'smem constant byte address 0x4 - core index']
  #allocation1 [shape = 'u32[144,128]{1,0:T(1,128)}', space=vmem, size = 0x12000, scoped, tag = 'internal scratch']
  #allocation2 [shape = 'f32[18,18,64]{2,1,0:T(8,128)}', space=vmem, size = 0x36000, scoped, tag = 'scratch operand']
  %s0 = inlined_call_operand.hbm [shape: f32[2,16,16,32], index: 0, kind: input, shape index: {}]
  %s1 = inlined_call_operand.vmem [shape: f32[1,32], index: 1, kind: input, shape index: {}]
  %s2 = inlined_call_operand.vmem [shape: f32[1,32], index: 2, kind: input, shape index: {}]
  %s3 = inlined_call_operand.hbm [shape: f32[32,64], index: 3, kind: input, shape index: {}]
  %s4 = inlined_call_operand.vmem [shape: f32[1,64], index: 4, kind: input, shape index: {}]
  %s5 = inlined_call_operand.hbm [shape: f32[1,64], index: 5, kind: input, shape index: {}]
  %s6 = inlined_call_operand.hbm [shape: f32[9,64,16], index: 6, kind: input, shape index: {}]
  %s7 = inlined_call_operand.vmem [shape: f32[2,16,16,16], index: 7, kind: output, shape index: {}]
  %s8 = sld [smem:[#allocation0]]
  $region77: #{dense_layer_forward.1} parent=0
    _
  %s10 = ssub.s32 1, %s8
  %s11 = scalar_select 0, %s10, %s8
  $region1: #{dense_layer_forward.1} parent=0
    #allocation3 [shape = 'u8[262144]{0}', space=vmem, size = 0x40000, scoped, tag = 'input window, operand 0']
    #allocation4 [shape = 's32[2]{0}', space=sflag, size = 0x8, scoped, tag = 'scoped memory for dense_layer_forward.1']
    #allocation5 [shape = 'u8[16384]{0}', space=vmem, size = 0x4000, scoped, tag = 'input window, operand 3, single buffered']
    #allocation6 [shape = 's32[1]{0}', space=sflag, size = 0x4, scoped, tag = 'scoped memory for dense_layer_forward.1']
    #allocation7 [shape = 'u8[512]{0}', space=vmem, size = 0x400, scoped, tag = 'input window, operand 5, single buffered']
    #allocation8 [shape = 'u8[294912]{0}', space=vmem, size = 0x48000, scoped, tag = 'input window, operand 6, single buffered']
    #allocation9 [shape = 's32[1]{0}', space=sflag, size = 0x4, scoped, tag = 'scoped memory for dense_layer_forward.1']
    %12 = vsyncpa [#allocation4], 0
    %s13 = scalar_lea.sflag [#allocation4], 1
    %14 = vsyncpa %s13, 0
    %15 = vsyncpa [#allocation6], 0
    %16 = vsyncpa [#allocation9], 0
    loop: start=0, step=1, limit=4
    $region2: #{dense_layer_forward.1} parent=1 // loop_pre_header
      _
    $region3: #{dense_layer_forward.1} parent=1 // loop_header
      %s18 = sphi 0, %s22
      %p19 = scmp.ge.s32.totalorder %s18, 4
      %s28 = sphi 0, %s30
      %s31 = sphi 0, %s28
      %s32 = sphi 0, %s31
      %s48 = sphi 0, %s32
      %s52 = sphi 0, %s52
      %s54 = sphi 0, %s52
      %s55 = sphi 0, %s54
      %s69 = sphi 0, %s55
      %s73 = sphi 0, %s73
      %s75 = sphi 0, %s73
      %s76 = sphi 0, %s75
      %s90 = sphi 0, %s76
      %s94 = sphi 0, %s94
      %s96 = sphi 0, %s94
      %s97 = sphi 0, %s96
      %s111 = sphi 0, %s97
      %s115 = sphi 0, %s115
      %s117 = sphi 0, %s115
      %s118 = sphi 0, %s117
      %s132 = sphi 0, %s118
      %s136 = sphi 0, %s136
      %s138 = sphi 0, %s136
      %s139 = sphi 0, %s138
      %s153 = sphi 0, %s139
      %s157 = sphi 0, %s157
      %s159 = sphi 0, %s157
      %s160 = sphi 0, %s159
      %s174 = sphi 0, %s160
      %s180 = sphi 0, %s182
      %s183 = sphi 0, %s180
      %s184 = sphi 0, %s183
      %s200 = sphi 0, %s184
    $region4: #{dense_layer_forward.1} parent=1 // loop_header_branch
      %21 = sbr.rel (%p19) target = $region8
    $region5: #{dense_layer_forward.1} parent=1 // loop_body
      %s23 = ssub.s32 %s18, 1
      %s24 = ssub.s32 %s18, 2
      %s25 = sadd.s32 %s18, 1
      %s26 = ssub.s32 %s18, %s25
      %p27 = scmp.eq.s32.totalorder %s26, 0
      %s29 = sadd.s32 %s28, 1
      %s30 = scalar_select %p27, %s28, %s29
      %p33 = pneg %p27
      %p34 = scmp.eq.s32.totalorder %s18, 1
      %p35 = por %p33, %p34
      %p36 = scmp.ne.s32.totalorder %s28, %s31
      %p37 = scmp.eq.s32.totalorder %s18, 0
      %p38 = por %p36, %p37
      %p39 = scmp.ne.s32.totalorder %s28, %s31
      %p40 = scmp.eq.s32.totalorder %s23, 1
      %p41 = por %p39, %p40
      %p42 = scmp.ne.s32.totalorder %s31, %s32
      %p43 = scmp.eq.s32.totalorder %s23, 0
      %p44 = por %p42, %p43
      %p45 = scmp.ne.s32.totalorder %s31, %s32
      %p46 = scmp.eq.s32.totalorder %s24, 1
      %p47 = por %p45, %p46
      %p49 = scmp.ne.s32.totalorder %s32, %s48
      %p50 = scmp.eq.s32.totalorder %s24, 0
      %p51 = por %p49, %p50
      %s53 = sadd.s32 %s52, 1
      %p56 = scmp.eq.s32.totalorder %s18, 1
      %p57 = scmp.ne.s32.totalorder %s52, %s54
      %p58 = scmp.eq.s32.totalorder %s18, 0
      %p59 = por %p57, %p58
      %p60 = scmp.ne.s32.totalorder %s52, %s54
      %p61 = scmp.eq.s32.totalorder %s23, 1
      %p62 = por %p60, %p61
      %p63 = scmp.ne.s32.totalorder %s54, %s55
      %p64 = scmp.eq.s32.totalorder %s23, 0
      %p65 = por %p63, %p64
      %p66 = scmp.ne.s32.totalorder %s54, %s55
      %p67 = scmp.eq.s32.totalorder %s24, 1
      %p68 = por %p66, %p67
      %p70 = scmp.ne.s32.totalorder %s55, %s69
      %p71 = scmp.eq.s32.totalorder %s24, 0
      %p72 = por %p70, %p71
      %s74 = sadd.s32 %s73, 1
      %p77 = scmp.eq.s32.totalorder %s18, 1
      %p78 = scmp.ne.s32.totalorder %s73, %s75
      %p79 = scmp.eq.s32.totalorder %s18, 0
      %p80 = por %p78, %p79
      %p81 = scmp.ne.s32.totalorder %s73, %s75
      %p82 = scmp.eq.s32.totalorder %s23, 1
      %p83 = por %p81, %p82
      %p84 = scmp.ne.s32.totalorder %s75, %s76
      %p85 = scmp.eq.s32.totalorder %s23, 0
      %p86 = por %p84, %p85
      %p87 = scmp.ne.s32.totalorder %s75, %s76
      %p88 = scmp.eq.s32.totalorder %s24, 1
      %p89 = por %p87, %p88
      %p91 = scmp.ne.s32.totalorder %s76, %s90
      %p92 = scmp.eq.s32.totalorder %s24, 0
      %p93 = por %p91, %p92
      %s95 = sadd.s32 %s94, 1
      %p98 = scmp.eq.s32.totalorder %s18, 1
      %p99 = scmp.ne.s32.totalorder %s94, %s96
      %p100 = scmp.eq.s32.totalorder %s18, 0
      %p101 = por %p99, %p100
      %p102 = scmp.ne.s32.totalorder %s94, %s96
      %p103 = scmp.eq.s32.totalorder %s23, 1
      %p104 = por %p102, %p103
      %p105 = scmp.ne.s32.totalorder %s96, %s97
      %p106 = scmp.eq.s32.totalorder %s23, 0
      %p107 = por %p105, %p106
      %p108 = scmp.ne.s32.totalorder %s96, %s97
      %p109 = scmp.eq.s32.totalorder %s24, 1
      %p110 = por %p108, %p109
      %p112 = scmp.ne.s32.totalorder %s97, %s111
      %p113 = scmp.eq.s32.totalorder %s24, 0
      %p114 = por %p112, %p113
      %s116 = sadd.s32 %s115, 1
      %p119 = scmp.eq.s32.totalorder %s18, 1
      %p120 = scmp.ne.s32.totalorder %s115, %s117
      %p121 = scmp.eq.s32.totalorder %s18, 0
      %p122 = por %p120, %p121
      %p123 = scmp.ne.s32.totalorder %s115, %s117
      %p124 = scmp.eq.s32.totalorder %s23, 1
      %p125 = por %p123, %p124
      %p126 = scmp.ne.s32.totalorder %s117, %s118
      %p127 = scmp.eq.s32.totalorder %s23, 0
      %p128 = por %p126, %p127
      %p129 = scmp.ne.s32.totalorder %s117, %s118
      %p130 = scmp.eq.s32.totalorder %s24, 1
      %p131 = por %p129, %p130
      %p133 = scmp.ne.s32.totalorder %s118, %s132
      %p134 = scmp.eq.s32.totalorder %s24, 0
      %p135 = por %p133, %p134
      %s137 = sadd.s32 %s136, 1
      %p140 = scmp.eq.s32.totalorder %s18, 1
      %p141 = scmp.ne.s32.totalorder %s136, %s138
      %p142 = scmp.eq.s32.totalorder %s18, 0
      %p143 = por %p141, %p142
      %p144 = scmp.ne.s32.totalorder %s136, %s138
      %p145 = scmp.eq.s32.totalorder %s23, 1
      %p146 = por %p144, %p145
      %p147 = scmp.ne.s32.totalorder %s138, %s139
      %p148 = scmp.eq.s32.totalorder %s23, 0
      %p149 = por %p147, %p148
      %p150 = scmp.ne.s32.totalorder %s138, %s139
      %p151 = scmp.eq.s32.totalorder %s24, 1
      %p152 = por %p150, %p151
      %p154 = scmp.ne.s32.totalorder %s139, %s153
      %p155 = scmp.eq.s32.totalorder %s24, 0
      %p156 = por %p154, %p155
      %s158 = sadd.s32 %s157, 1
      %p161 = scmp.eq.s32.totalorder %s18, 1
      %p162 = scmp.ne.s32.totalorder %s157, %s159
      %p163 = scmp.eq.s32.totalorder %s18, 0
      %p164 = por %p162, %p163
      %p165 = scmp.ne.s32.totalorder %s157, %s159
      %p166 = scmp.eq.s32.totalorder %s23, 1
      %p167 = por %p165, %p166
      %p168 = scmp.ne.s32.totalorder %s159, %s160
      %p169 = scmp.eq.s32.totalorder %s23, 0
      %p170 = por %p168, %p169
      %p171 = scmp.ne.s32.totalorder %s159, %s160
      %p172 = scmp.eq.s32.totalorder %s24, 1
      %p173 = por %p171, %p172
      %p175 = scmp.ne.s32.totalorder %s160, %s174
      %p176 = scmp.eq.s32.totalorder %s24, 0
      %p177 = por %p175, %p176
      %s178 = ssub.s32 %s18, %s25
      %p179 = scmp.eq.s32.totalorder %s178, 0
      %s181 = sadd.s32 %s180, 1
      %s182 = scalar_select %p179, %s180, %s181
      %p185 = pneg %p179
      %p186 = scmp.eq.s32.totalorder %s18, 1
      %p187 = por %p185, %p186
      %p188 = scmp.ne.s32.totalorder %s180, %s183
      %p189 = scmp.eq.s32.totalorder %s18, 0
      %p190 = por %p188, %p189
      %p191 = scmp.ne.s32.totalorder %s180, %s183
      %p192 = scmp.eq.s32.totalorder %s23, 1
      %p193 = por %p191, %p192
      %p194 = scmp.ne.s32.totalorder %s183, %s184
      %p195 = scmp.eq.s32.totalorder %s23, 0
      %p196 = por %p194, %p195
      %p197 = scmp.ne.s32.totalorder %s183, %s184
      %p198 = scmp.eq.s32.totalorder %s24, 1
      %p199 = por %p197, %p198
      %p201 = scmp.ne.s32.totalorder %s184, %s200
      %p202 = scmp.eq.s32.totalorder %s24, 0
      %p203 = por %p201, %p202
      %p204 = scmp.le.s32.totalorder 1, %s18
      %p205 = scmp.lt.s32.totalorder %s18, 3
      %p206 = pnand %p204, %p205
      %p207 = pneg %p206
      // Predicated region
      $region9: #{dense_layer_forward.1} parent=5 // pred_check
        _
      $region10: #{dense_layer_forward.1} parent=5 // pred_check_branch
        %209 = sbr.rel (%p206) target = $region12
      $region11: #{dense_layer_forward.1} parent=5 // pred_region
        %s210 = ssub.s32 %s18, 1
        // Predicated region
        $region13: #{dense_layer_forward.1} parent=11 // pred_check
          %p211 = pneg %p65
        $region14: #{dense_layer_forward.1} parent=11 // pred_check_branch
          %213 = sbr.rel (%p211) target = $region16
        $region15: #{dense_layer_forward.1} parent=11 // pred_region
          _
        $region16: #{dense_layer_forward.1} parent=11 // pred_fallthru
          _
        // Predicated region
        $region17: #{dense_layer_forward.1} parent=11 // pred_check
          %p214 = pneg %p86
        $region18: #{dense_layer_forward.1} parent=11 // pred_check_branch
          %216 = sbr.rel (%p214) target = $region20
        $region19: #{dense_layer_forward.1} parent=11 // pred_region
          _
        $region20: #{dense_layer_forward.1} parent=11 // pred_fallthru
          _
        // Predicated region
        $region21: #{dense_layer_forward.1} parent=11 // pred_check
          %p217 = pneg %p107
        $region22: #{dense_layer_forward.1} parent=11 // pred_check_branch
          %219 = sbr.rel (%p217) target = $region24
        $region23: #{dense_layer_forward.1} parent=11 // pred_region
          %s221 = ssub.s32 512, 512
          %222 = vsyncadd [#allocation6], %s221
          %s223 = sshll.u32 [#allocation5], 4
          %s224 = int_to_ptr.vmem [resolvable:$true] %s223
          %229 = dma.hbm_to_vmem [thread:$0]  %s3, 512, %s224, [#allocation6], 128, 128, 8
        $region24: #{dense_layer_forward.1} parent=11 // pred_fallthru
          _
        // Predicated region
        $region25: #{dense_layer_forward.1} parent=11 // pred_check
          %p230 = pneg %p128
        $region26: #{dense_layer_forward.1} parent=11 // pred_check_branch
          %232 = sbr.rel (%p230) target = $region28
        $region27: #{dense_layer_forward.1} parent=11 // pred_region
          _
        $region28: #{dense_layer_forward.1} parent=11 // pred_fallthru
          _
        // Predicated region
        $region29: #{dense_layer_forward.1} parent=11 // pred_check
          %p233 = pneg %p149
        $region30: #{dense_layer_forward.1} parent=11 // pred_check_branch
          %235 = sbr.rel (%p233) target = $region32
        $region31: #{dense_layer_forward.1} parent=11 // pred_region
          %s237 = ssub.s32 16, 16
          %238 = vsyncadd [#allocation6], %s237
          %s240 = sshll.u32 [#allocation7], 4
          %s241 = int_to_ptr.vmem [resolvable:$true] %s240
          %243 = dma.hbm_to_vmem [thread:$0]  %s5, 16, %s241, [#allocation6]
        $region32: #{dense_layer_forward.1} parent=11 // pred_fallthru
          _
        // Predicated region
        $region33: #{dense_layer_forward.1} parent=11 // pred_check
          %p244 = pneg %p170
        $region34: #{dense_layer_forward.1} parent=11 // pred_check_branch
          %246 = sbr.rel (%p244) target = $region36
        $region35: #{dense_layer_forward.1} parent=11 // pred_region
          %s248 = ssub.s32 9216, 9216
          %249 = vsyncadd [#allocation9], %s248
          %s250 = sshll.u32 [#allocation8], 4
          %s251 = int_to_ptr.vmem [resolvable:$true] %s250
          %256 = dma.hbm_to_vmem [thread:$0]  %s6, 9216, %s251, [#allocation9], 128, 128, 8
        $region36: #{dense_layer_forward.1} parent=11 // pred_fallthru
          _
      $region12: #{dense_layer_forward.1} parent=5 // pred_fallthru
        _
      %p257 = scmp.lt.s32.totalorder %s18, 2
      // Predicated region
      $region37: #{dense_layer_forward.1} parent=5 // pred_check
        %p258 = pneg %p257
      $region38: #{dense_layer_forward.1} parent=5 // pred_check_branch
        %260 = sbr.rel (%p258) target = $region40
      $region39: #{dense_layer_forward.1} parent=5 // pred_region
        // Predicated region
        $region41: #{dense_layer_forward.1} parent=39 // pred_check
          %p261 = pneg %p38
        $region42: #{dense_layer_forward.1} parent=39 // pred_check_branch
          %263 = sbr.rel (%p261) target = $region44
        $region43: #{dense_layer_forward.1} parent=39 // pred_region
          %s264 = sand.u32 %s28, 1
          %s265 = scalar_lea.sflag [#allocation4], %s264
          %s266 = sand.u32 %s28, 1
          %s267 = smul.addr %s266, 256
          %s268 = scalar_lea.vmem [#allocation3], %s267
          %s270 = ssub.s32 4096, 4096
          %271 = vsyncadd %s265, %s270
          %s272 = smul.addr %s18, 32
          %s273 = smul.addr %s272, 128
          %s274 = scalar_lea.hbm %s0, %s273
          %s275 = sshll.u32 %s268, 4
          %s276 = int_to_ptr.vmem [resolvable:$true] %s275
          %281 = dma.hbm_to_vmem [thread:$0]  %s274, 4096, %s276, %s265, 128, 128, 8
        $region44: #{dense_layer_forward.1} parent=39 // pred_fallthru
          _
      $region40: #{dense_layer_forward.1} parent=5 // pred_fallthru
        _
      %p282 = scmp.le.s32.totalorder 1, %s18
      %p283 = scmp.lt.s32.totalorder %s18, 3
      %p284 = pnand %p282, %p283
      %p285 = pneg %p284
      // Predicated region
      $region45: #{dense_layer_forward.1} parent=5 // pred_check
        _
      $region46: #{dense_layer_forward.1} parent=5 // pred_check_branch
        %287 = sbr.rel (%p284) target = $region48
      $region47: #{dense_layer_forward.1} parent=5 // pred_region
        %s288 = ssub.s32 %s18, 1
        %s289 = sand.u32 %s31, 1
        %s290 = scalar_lea.sflag [#allocation4], %s289
        %s291 = sand.u32 %s31, 1
        %s292 = smul.addr %s291, 256
        %s293 = scalar_lea.vmem [#allocation3], %s292
        // Predicated region
        $region49: #{dense_layer_forward.1} parent=47 // pred_check
          %p294 = pneg %p44
        $region50: #{dense_layer_forward.1} parent=47 // pred_check_branch
          %296 = sbr.rel (%p294) target = $region52
        $region51: #{dense_layer_forward.1} parent=47 // pred_region
          %297 = dma.done %s290, 4096
        $region52: #{dense_layer_forward.1} parent=47 // pred_fallthru
          _
        // Predicated region
        $region53: #{dense_layer_forward.1} parent=47 // pred_check
          %p298 = pneg %p107
        $region54: #{dense_layer_forward.1} parent=47 // pred_check_branch
          %300 = sbr.rel (%p298) target = $region56
        $region55: #{dense_layer_forward.1} parent=47 // pred_region
          %301 = dma.done [#allocation6], 512
        $region56: #{dense_layer_forward.1} parent=47 // pred_fallthru
          _
        // Predicated region
        $region57: #{dense_layer_forward.1} parent=47 // pred_check
          %p302 = pneg %p149
        $region58: #{dense_layer_forward.1} parent=47 // pred_check_branch
          %304 = sbr.rel (%p302) target = $region60
        $region59: #{dense_layer_forward.1} parent=47 // pred_region
          %305 = dma.done [#allocation6], 16
        $region60: #{dense_layer_forward.1} parent=47 // pred_fallthru
          _
        // Predicated region
        $region61: #{dense_layer_forward.1} parent=47 // pred_check
          %p306 = pneg %p170
        $region62: #{dense_layer_forward.1} parent=47 // pred_check_branch
          %308 = sbr.rel (%p306) target = $region64
        $region63: #{dense_layer_forward.1} parent=47 // pred_region
          %309 = dma.done [#allocation9], 9216
        $region64: #{dense_layer_forward.1} parent=47 // pred_fallthru
          _
        %s310 = sand.u32 %s31, 1
        %s311 = scalar_lea.sflag [#allocation4], %s310
        %s312 = sand.u32 %s31, 1
        %s313 = smul.addr %s312, 256
        %s314 = scalar_lea.vmem [#allocation3], %s313
        %p315 = pneg %p44
        %p316 = pneg %p41
        %p317 = pneg %p65
        %p318 = pneg %p62
        %p319 = pneg %p86
        %p320 = pneg %p83
        %p321 = pneg %p107
        %p322 = pneg %p104
        %p323 = pneg %p128
        %p324 = pneg %p125
        %p325 = pneg %p149
        %p326 = pneg %p146
        %p327 = pneg %p170
        %p328 = pneg %p167
        %p329 = pneg %p196
        %p330 = pneg %p193
        %p331 = scmp.lt.s32.totalorder %s23, 1
        %s332 = scalar_select %p331, %s23, 1
        %s333 = smul.addr %s332, 32
        %s334 = smul.addr %s333, 8
        %s335 = scalar_lea.vmem %s7, %s334
        %p336 = scmp.lt.s32.totalorder %s23, 1
        %s337 = scalar_select %p336, %s23, 1
        %s338 = smul.addr %s337, 32
        %s339 = smul.addr %s338, 8
        %s340 = scalar_lea.vmem %s7, %s339
        %v341 = vld [vmem:[%s293] sm:$0xff]
        %v342 = vld [vmem:[%s293 + $0x8] sm:$0xff]
        %v343 = vld [vmem:[%s293 + $0x10] sm:$0xff]
        %v344 = vld [vmem:[%s293 + $0x18] sm:$0xff]
        %v345 = vld [vmem:[%s293 + $0x20] sm:$0xff]
        %v346 = vld [vmem:[%s293 + $0x28] sm:$0xff]
        %v347 = vld [vmem:[%s293 + $0x30] sm:$0xff]
        %v348 = vld [vmem:[%s293 + $0x38] sm:$0xff]
        %v349 = vld [vmem:[%s293 + $0x40] sm:$0xff]
        %v350 = vld [vmem:[%s293 + $0x48] sm:$0xff]
        %v351 = vld [vmem:[%s293 + $0x50] sm:$0xff]
        %v352 = vld [vmem:[%s293 + $0x58] sm:$0xff]
        %v353 = vld [vmem:[%s293 + $0x60] sm:$0xff]
        %v354 = vld [vmem:[%s293 + $0x68] sm:$0xff]
        %v355 = vld [vmem:[%s293 + $0x70] sm:$0xff]
        %v356 = vld [vmem:[%s293 + $0x78] sm:$0xff]
        %v357 = vld [vmem:[%s293 + $0x80] sm:$0xff]
        %v358 = vld [vmem:[%s293 + $0x88] sm:$0xff]
        %v359 = vld [vmem:[%s293 + $0x90] sm:$0xff]
        %v360 = vld [vmem:[%s293 + $0x98] sm:$0xff]
        %v361 = vld [vmem:[%s293 + $0xa0] sm:$0xff]
        %v362 = vld [vmem:[%s293 + $0xa8] sm:$0xff]
        %v363 = vld [vmem:[%s293 + $0xb0] sm:$0xff]
        %v364 = vld [vmem:[%s293 + $0xb8] sm:$0xff]
        %v365 = vld [vmem:[%s293 + $0xc0] sm:$0xff]
        %v366 = vld [vmem:[%s293 + $0xc8] sm:$0xff]
        %v367 = vld [vmem:[%s293 + $0xd0] sm:$0xff]
        %v368 = vld [vmem:[%s293 + $0xd8] sm:$0xff]
        %v369 = vld [vmem:[%s293 + $0xe0] sm:$0xff]
        %v370 = vld [vmem:[%s293 + $0xe8] sm:$0xff]
        %v371 = vld [vmem:[%s293 + $0xf0] sm:$0xff]
        %v372 = vld [vmem:[%s293 + $0xf8] sm:$0xff]
        %v373 = vld [vmem:[%s1] sm:$0x1]
        %v375 = vlaneseq
        %v376 = vshrl.u32 %v375, 7
        %v377 = vsub.s32 0, %v376
        %v378 = vrot.slane %v373, %v377
        %v380 = vmul.f32 %v341, %v378
        %v381 = vmul.f32 %v342, %v378
        %v382 = vmul.f32 %v343, %v378
        %v383 = vmul.f32 %v344, %v378
        %v384 = vmul.f32 %v345, %v378
        %v385 = vmul.f32 %v346, %v378
        %v386 = vmul.f32 %v347, %v378
        %v387 = vmul.f32 %v348, %v378
        %v388 = vmul.f32 %v349, %v378
        %v389 = vmul.f32 %v350, %v378
        %v390 = vmul.f32 %v351, %v378
        %v391 = vmul.f32 %v352, %v378
        %v392 = vmul.f32 %v353, %v378
        %v393 = vmul.f32 %v354, %v378
        %v394 = vmul.f32 %v355, %v378
        %v395 = vmul.f32 %v356, %v378
        %v396 = vmul.f32 %v357, %v378
        %v397 = vmul.f32 %v358, %v378
        %v398 = vmul.f32 %v359, %v378
        %v399 = vmul.f32 %v360, %v378
        %v400 = vmul.f32 %v361, %v378
        %v401 = vmul.f32 %v362, %v378
        %v402 = vmul.f32 %v363, %v378
        %v403 = vmul.f32 %v364, %v378
        %v404 = vmul.f32 %v365, %v378
        %v405 = vmul.f32 %v366, %v378
        %v406 = vmul.f32 %v367, %v378
        %v407 = vmul.f32 %v368, %v378
        %v408 = vmul.f32 %v369, %v378
        %v409 = vmul.f32 %v370, %v378
        %v410 = vmul.f32 %v371, %v378
        %v411 = vmul.f32 %v372, %v378
        %v412 = vld [vmem:[%s2] sm:$0x1]
        %v414 = vlaneseq
        %v415 = vshrl.u32 %v414, 7
        %v416 = vsub.s32 0, %v415
        %v417 = vrot.slane %v412, %v416
        %v419 = vadd.f32 %v380, %v417
        %v420 = vadd.f32 %v381, %v417
        %v421 = vadd.f32 %v382, %v417
        %v422 = vadd.f32 %v383, %v417
        %v423 = vadd.f32 %v384, %v417
        %v424 = vadd.f32 %v385, %v417
        %v425 = vadd.f32 %v386, %v417
        %v426 = vadd.f32 %v387, %v417
        %v427 = vadd.f32 %v388, %v417
        %v428 = vadd.f32 %v389, %v417
        %v429 = vadd.f32 %v390, %v417
        %v430 = vadd.f32 %v391, %v417
        %v431 = vadd.f32 %v392, %v417
        %v432 = vadd.f32 %v393, %v417
        %v433 = vadd.f32 %v394, %v417
        %v434 = vadd.f32 %v395, %v417
        %v435 = vadd.f32 %v396, %v417
        %v436 = vadd.f32 %v397, %v417
        %v437 = vadd.f32 %v398, %v417
        %v438 = vadd.f32 %v399, %v417
        %v439 = vadd.f32 %v400, %v417
        %v440 = vadd.f32 %v401, %v417
        %v441 = vadd.f32 %v402, %v417
        %v442 = vadd.f32 %v403, %v417
        %v443 = vadd.f32 %v404, %v417
        %v444 = vadd.f32 %v405, %v417
        %v445 = vadd.f32 %v406, %v417
        %v446 = vadd.f32 %v407, %v417
        %v447 = vadd.f32 %v408, %v417
        %v448 = vadd.f32 %v409, %v417
        %v449 = vadd.f32 %v410, %v417
        %v450 = vadd.f32 %v411, %v417
        %v451 = vmax.f32 %v419, 0.0
        %v452 = vmax.f32 %v420, 0.0
        %v453 = vmax.f32 %v421, 0.0
        %v454 = vmax.f32 %v422, 0.0
        %v455 = vmax.f32 %v423, 0.0
        %v456 = vmax.f32 %v424, 0.0
        %v457 = vmax.f32 %v425, 0.0
        %v458 = vmax.f32 %v426, 0.0
        %v459 = vmax.f32 %v427, 0.0
        %v460 = vmax.f32 %v428, 0.0
        %v461 = vmax.f32 %v429, 0.0
        %v462 = vmax.f32 %v430, 0.0
        %v463 = vmax.f32 %v431, 0.0
        %v464 = vmax.f32 %v432, 0.0
        %v465 = vmax.f32 %v433, 0.0
        %v466 = vmax.f32 %v434, 0.0
        %v467 = vmax.f32 %v435, 0.0
        %v468 = vmax.f32 %v436, 0.0
        %v469 = vmax.f32 %v437, 0.0
        %v470 = vmax.f32 %v438, 0.0
        %v471 = vmax.f32 %v439, 0.0
        %v472 = vmax.f32 %v440, 0.0
        %v473 = vmax.f32 %v441, 0.0
        %v474 = vmax.f32 %v442, 0.0
        %v475 = vmax.f32 %v443, 0.0
        %v476 = vmax.f32 %v444, 0.0
        %v477 = vmax.f32 %v445, 0.0
        %v478 = vmax.f32 %v446, 0.0
        %v479 = vmax.f32 %v447, 0.0
        %v480 = vmax.f32 %v448, 0.0
        %v481 = vmax.f32 %v449, 0.0
        %v482 = vmax.f32 %v450, 0.0
        %v483 = vld [vmem:[#allocation5] sm:$0xff]
        %v484 = vld [vmem:[#allocation5 + $0x8] sm:$0xff]
        %v485 = vld [vmem:[#allocation5 + $0x10] sm:$0xff]
        %v486 = vld [vmem:[#allocation5 + $0x18] sm:$0xff]
        %vm487 = vcmask 261120
        %v489 = vsel %vm487, %v451, 0
        %v492 = vsel %vm487, %v452, 0
        %v495 = vsel %vm487, %v453, 0
        %v498 = vsel %vm487, %v454, 0
        %v501 = vsel %vm487, %v455, 0
        %v504 = vsel %vm487, %v456, 0
        %v507 = vsel %vm487, %v457, 0
        %v510 = vsel %vm487, %v458, 0
        %v513 = vsel %vm487, %v459, 0
        %v516 = vsel %vm487, %v460, 0
        %v519 = vsel %vm487, %v461, 0
        %v522 = vsel %vm487, %v462, 0
        %v525 = vsel %vm487, %v463, 0
        %v528 = vsel %vm487, %v464, 0
        %v531 = vsel %vm487, %v465, 0
        %v534 = vsel %vm487, %v466, 0
        %v537 = vsel %vm487, %v467, 0
        %v540 = vsel %vm487, %v468, 0
        %v543 = vsel %vm487, %v469, 0
        %v546 = vsel %vm487, %v470, 0
        %v549 = vsel %vm487, %v471, 0
        %v552 = vsel %vm487, %v472, 0
        %v555 = vsel %vm487, %v473, 0
        %v558 = vsel %vm487, %v474, 0
        %v561 = vsel %vm487, %v475, 0
        %v564 = vsel %vm487, %v476, 0
        %v567 = vsel %vm487, %v477, 0
        %v570 = vsel %vm487, %v478, 0
        %v573 = vsel %vm487, %v479, 0
        %v576 = vsel %vm487, %v480, 0
        %v579 = vsel %vm487, %v481, 0
        %v582 = vsel %vm487, %v482, 0
        %584 = vmatprep.subr.mxu0 0.0
        %585 = vmatpush1.msra.mxu0 0.0
        %586 = vmatprep.subr.mxu0 0.0
        %587 = vmatpush1.msra.mxu0 0.0
        %588 = vmatprep.subr.mxu0 0.0
        %589 = vmatpush1.msra.mxu0 0.0
        %590 = vmatprep.subr.mxu0 0.0
        %591 = vmatpush1.msra.mxu0 0.0
        %592 = vmatprep.subr.mxu0 0.0
        %593 = vmatpush1.msra.mxu0 0.0
        %594 = vmatprep.subr.mxu0 0.0
        %595 = vmatpush1.msra.mxu0 0.0
        %596 = vmatprep.subr.mxu0 0.0
        %597 = vmatpush1.msra.mxu0 0.0
        %598 = vmatprep.subr.mxu0 0.0
        %599 = vmatpush1.msra.mxu0 0.0
        %600 = vmatprep.subr.mxu0 0.0
        %601 = vmatpush1.msra.mxu0 0.0
        %602 = vmatprep.subr.mxu0 0.0
        %603 = vmatpush1.msra.mxu0 0.0
        %604 = vmatprep.subr.mxu0 0.0
        %605 = vmatpush1.msra.mxu0 0.0
        %606 = vmatprep.subr.mxu0 0.0
        %607 = vmatpush1.msra.mxu0 0.0
        %608 = vmatprep.subr.mxu0 0.0
        %609 = vmatpush1.msra.mxu0 %v486
        %610 = vmatprep.subr.mxu0 0.0
        %611 = vmatpush1.msra.mxu0 %v485
        %612 = vmatprep.subr.mxu0 0.0
        %613 = vmatpush1.msra.mxu0 %v484
        %614 = vmatprep.subr.mxu0 0.0
        %615 = vmatpush1.msra.mxu0 %v483
        %616 = vmatprep.subr.mxu0 0.0
        %617 = vmatpush2.msra.mxu0 0.0
        %618 = vmatprep.subr.mxu0 0.0
        %619 = vmatpush2.msra.mxu0 0.0
        %620 = vmatprep.subr.mxu0 0.0
        %621 = vmatpush2.msra.mxu0 0.0
        %622 = vmatprep.subr.mxu0 0.0
        %623 = vmatpush2.msra.mxu0 0.0
        %624 = vmatprep.subr.mxu0 0.0
        %625 = vmatpush2.msra.mxu0 0.0
        %626 = vmatprep.subr.mxu0 0.0
        %627 = vmatpush2.msra.mxu0 0.0
        %628 = vmatprep.subr.mxu0 0.0
        %629 = vmatpush2.msra.mxu0 0.0
        %630 = vmatprep.subr.mxu0 0.0
        %631 = vmatpush2.msra.mxu0 0.0
        %632 = vmatprep.subr.mxu0 0.0
        %633 = vmatpush2.msra.mxu0 0.0
        %634 = vmatprep.subr.mxu0 0.0
        %635 = vmatpush2.msra.mxu0 0.0
        %636 = vmatprep.subr.mxu0 0.0
        %637 = vmatpush2.msra.mxu0 0.0
        %638 = vmatprep.subr.mxu0 0.0
        %639 = vmatpush2.msra.mxu0 0.0
        %640 = vmatprep.subr.mxu0 0.0
        %641 = vmatpush2.msra.mxu0 0.0
        %642 = vmatprep.subr.mxu0 0.0
        %643 = vmatpush2.msra.mxu0 0.0
        %644 = vmatprep.subr.mxu0 0.0
        %645 = vmatpush2.msra.mxu0 0.0
        %646 = vmatprep.subr.mxu0 0.0
        %647 = vmatpush2.msra.mxu0 0.0
        %648 = vmatprep.mubr.f32.mxu0 0.0
        %649 = vmatmul.mubr.f32.gmra.mxu0 %v489
        %v650 = vpop.f32.mrf.mxu0
        %v651 = vadd.f32 0.0, %v650
        %v652 = vpop.f32.mrf.mxu0
        %653 = vmatprep.mubr.f32.mxu0 0.0
        %654 = vmatmul.mubr.f32.gmra.mxu0 %v492
        %v655 = vpop.f32.mrf.mxu0
        %v656 = vadd.f32 0.0, %v655
        %v657 = vpop.f32.mrf.mxu0
        %658 = vmatprep.mubr.f32.mxu0 0.0
        %659 = vmatmul.mubr.f32.gmra.mxu0 %v495
        %v660 = vpop.f32.mrf.mxu0
        %v661 = vadd.f32 0.0, %v660
        %v662 = vpop.f32.mrf.mxu0
        %663 = vmatprep.mubr.f32.mxu0 0.0
        %664 = vmatmul.mubr.f32.gmra.mxu0 %v498
        %v665 = vpop.f32.mrf.mxu0
        %v666 = vadd.f32 0.0, %v665
        %v667 = vpop.f32.mrf.mxu0
        %668 = vmatprep.mubr.f32.mxu0 0.0
        %669 = vmatmul.mubr.f32.gmra.mxu0 %v501
        %v670 = vpop.f32.mrf.mxu0
        %v671 = vadd.f32 0.0, %v670
        %v672 = vpop.f32.mrf.mxu0
        %673 = vmatprep.mubr.f32.mxu0 0.0
        %674 = vmatmul.mubr.f32.gmra.mxu0 %v504
        %v675 = vpop.f32.mrf.mxu0
        %v676 = vadd.f32 0.0, %v675
        %v677 = vpop.f32.mrf.mxu0
        %678 = vmatprep.mubr.f32.mxu0 0.0
        %679 = vmatmul.mubr.f32.gmra.mxu0 %v507
        %v680 = vpop.f32.mrf.mxu0
        %v681 = vadd.f32 0.0, %v680
        %v682 = vpop.f32.mrf.mxu0
        %683 = vmatprep.mubr.f32.mxu0 0.0
        %684 = vmatmul.mubr.f32.gmra.mxu0 %v510
        %v685 = vpop.f32.mrf.mxu0
        %v686 = vadd.f32 0.0, %v685
        %v687 = vpop.f32.mrf.mxu0
        %688 = vmatprep.mubr.f32.mxu0 0.0
        %689 = vmatmul.mubr.f32.gmra.mxu0 %v513
        %v690 = vpop.f32.mrf.mxu0
        %v691 = vadd.f32 0.0, %v690
        %v692 = vpop.f32.mrf.mxu0
        %693 = vmatprep.mubr.f32.mxu0 0.0
        %694 = vmatmul.mubr.f32.gmra.mxu0 %v516
        %v695 = vpop.f32.mrf.mxu0
        %v696 = vadd.f32 0.0, %v695
        %v697 = vpop.f32.mrf.mxu0
        %698 = vmatprep.mubr.f32.mxu0 0.0
        %699 = vmatmul.mubr.f32.gmra.mxu0 %v519
        %v700 = vpop.f32.mrf.mxu0
        %v701 = vadd.f32 0.0, %v700
        %v702 = vpop.f32.mrf.mxu0
        %703 = vmatprep.mubr.f32.mxu0 0.0
        %704 = vmatmul.mubr.f32.gmra.mxu0 %v522
        %v705 = vpop.f32.mrf.mxu0
        %v706 = vadd.f32 0.0, %v705
        %v707 = vpop.f32.mrf.mxu0
        %708 = vmatprep.mubr.f32.mxu0 0.0
        %709 = vmatmul.mubr.f32.gmra.mxu0 %v525
        %v710 = vpop.f32.mrf.mxu0
        %v711 = vadd.f32 0.0, %v710
        %v712 = vpop.f32.mrf.mxu0
        %713 = vmatprep.mubr.f32.mxu0 0.0
        %714 = vmatmul.mubr.f32.gmra.mxu0 %v528
        %v715 = vpop.f32.mrf.mxu0
        %v716 = vadd.f32 0.0, %v715
        %v717 = vpop.f32.mrf.mxu0
        %718 = vmatprep.mubr.f32.mxu0 0.0
        %719 = vmatmul.mubr.f32.gmra.mxu0 %v531
        %v720 = vpop.f32.mrf.mxu0
        %v721 = vadd.f32 0.0, %v720
        %v722 = vpop.f32.mrf.mxu0
        %723 = vmatprep.mubr.f32.mxu0 0.0
        %724 = vmatmul.mubr.f32.gmra.mxu0 %v534
        %v725 = vpop.f32.mrf.mxu0
        %v726 = vadd.f32 0.0, %v725
        %v727 = vpop.f32.mrf.mxu0
        %728 = vmatprep.mubr.f32.mxu0 0.0
        %729 = vmatmul.mubr.f32.gmra.mxu0 %v537
        %v730 = vpop.f32.mrf.mxu0
        %v731 = vadd.f32 0.0, %v730
        %v732 = vpop.f32.mrf.mxu0
        %733 = vmatprep.mubr.f32.mxu0 0.0
        %734 = vmatmul.mubr.f32.gmra.mxu0 %v540
        %v735 = vpop.f32.mrf.mxu0
        %v736 = vadd.f32 0.0, %v735
        %v737 = vpop.f32.mrf.mxu0
        %738 = vmatprep.mubr.f32.mxu0 0.0
        %739 = vmatmul.mubr.f32.gmra.mxu0 %v543
        %v740 = vpop.f32.mrf.mxu0
        %v741 = vadd.f32 0.0, %v740
        %v742 = vpop.f32.mrf.mxu0
        %743 = vmatprep.mubr.f32.mxu0 0.0
        %744 = vmatmul.mubr.f32.gmra.mxu0 %v546
        %v745 = vpop.f32.mrf.mxu0
        %v746 = vadd.f32 0.0, %v745
        %v747 = vpop.f32.mrf.mxu0
        %748 = vmatprep.mubr.f32.mxu0 0.0
        %749 = vmatmul.mubr.f32.gmra.mxu0 %v549
        %v750 = vpop.f32.mrf.mxu0
        %v751 = vadd.f32 0.0, %v750
        %v752 = vpop.f32.mrf.mxu0
        %753 = vmatprep.mubr.f32.mxu0 0.0
        %754 = vmatmul.mubr.f32.gmra.mxu0 %v552
        %v755 = vpop.f32.mrf.mxu0
        %v756 = vadd.f32 0.0, %v755
        %v757 = vpop.f32.mrf.mxu0
        %758 = vmatprep.mubr.f32.mxu0 0.0
        %759 = vmatmul.mubr.f32.gmra.mxu0 %v555
        %v760 = vpop.f32.mrf.mxu0
        %v761 = vadd.f32 0.0, %v760
        %v762 = vpop.f32.mrf.mxu0
        %763 = vmatprep.mubr.f32.mxu0 0.0
        %764 = vmatmul.mubr.f32.gmra.mxu0 %v558
        %v765 = vpop.f32.mrf.mxu0
        %v766 = vadd.f32 0.0, %v765
        %v767 = vpop.f32.mrf.mxu0
        %768 = vmatprep.mubr.f32.mxu0 0.0
        %769 = vmatmul.mubr.f32.gmra.mxu0 %v561
        %v770 = vpop.f32.mrf.mxu0
        %v771 = vadd.f32 0.0, %v770
        %v772 = vpop.f32.mrf.mxu0
        %773 = vmatprep.mubr.f32.mxu0 0.0
        %774 = vmatmul.mubr.f32.gmra.mxu0 %v564
        %v775 = vpop.f32.mrf.mxu0
        %v776 = vadd.f32 0.0, %v775
        %v777 = vpop.f32.mrf.mxu0
        %778 = vmatprep.mubr.f32.mxu0 0.0
        %779 = vmatmul.mubr.f32.gmra.mxu0 %v567
        %v780 = vpop.f32.mrf.mxu0
        %v781 = vadd.f32 0.0, %v780
        %v782 = vpop.f32.mrf.mxu0
        %783 = vmatprep.mubr.f32.mxu0 0.0
        %784 = vmatmul.mubr.f32.gmra.mxu0 %v570
        %v785 = vpop.f32.mrf.mxu0
        %v786 = vadd.f32 0.0, %v785
        %v787 = vpop.f32.mrf.mxu0
        %788 = vmatprep.mubr.f32.mxu0 0.0
        %789 = vmatmul.mubr.f32.gmra.mxu0 %v573
        %v790 = vpop.f32.mrf.mxu0
        %v791 = vadd.f32 0.0, %v790
        %v792 = vpop.f32.mrf.mxu0
        %793 = vmatprep.mubr.f32.mxu0 0.0
        %794 = vmatmul.mubr.f32.gmra.mxu0 %v576
        %v795 = vpop.f32.mrf.mxu0
        %v796 = vadd.f32 0.0, %v795
        %v797 = vpop.f32.mrf.mxu0
        %798 = vmatprep.mubr.f32.mxu0 0.0
        %799 = vmatmul.mubr.f32.gmra.mxu0 %v579
        %v800 = vpop.f32.mrf.mxu0
        %v801 = vadd.f32 0.0, %v800
        %v802 = vpop.f32.mrf.mxu0
        %803 = vmatprep.mubr.f32.mxu0 0.0
        %804 = vmatmul.mubr.f32.gmra.mxu0 %v582
        %v805 = vpop.f32.mrf.mxu0
        %v806 = vadd.f32 0.0, %v805
        %v807 = vpop.f32.mrf.mxu0
        %808 = vdwg.mxu0
        %v809 = vld [vmem:[%s4] sm:$0x1]
        %v811 = vlaneseq
        %v812 = vshrl.u32 %v811, 7
        %v813 = vsub.s32 0, %v812
        %v814 = vrot.slane %v809, %v813
        %v816 = vmul.f32 %v651, %v814
        %v817 = vmul.f32 %v656, %v814
        %v818 = vmul.f32 %v661, %v814
        %v819 = vmul.f32 %v666, %v814
        %v820 = vmul.f32 %v671, %v814
        %v821 = vmul.f32 %v676, %v814
        %v822 = vmul.f32 %v681, %v814
        %v823 = vmul.f32 %v686, %v814
        %v824 = vmul.f32 %v691, %v814
        %v825 = vmul.f32 %v696, %v814
        %v826 = vmul.f32 %v701, %v814
        %v827 = vmul.f32 %v706, %v814
        %v828 = vmul.f32 %v711, %v814
        %v829 = vmul.f32 %v716, %v814
        %v830 = vmul.f32 %v721, %v814
        %v831 = vmul.f32 %v726, %v814
        %v832 = vmul.f32 %v731, %v814
        %v833 = vmul.f32 %v736, %v814
        %v834 = vmul.f32 %v741, %v814
        %v835 = vmul.f32 %v746, %v814
        %v836 = vmul.f32 %v751, %v814
        %v837 = vmul.f32 %v756, %v814
        %v838 = vmul.f32 %v761, %v814
        %v839 = vmul.f32 %v766, %v814
        %v840 = vmul.f32 %v771, %v814
        %v841 = vmul.f32 %v776, %v814
        %v842 = vmul.f32 %v781, %v814
        %v843 = vmul.f32 %v786, %v814
        %v844 = vmul.f32 %v791, %v814
        %v845 = vmul.f32 %v796, %v814
        %v846 = vmul.f32 %v801, %v814
        %v847 = vmul.f32 %v806, %v814
        %v848 = vld [vmem:[#allocation7] sm:$0x1]
        %v850 = vlaneseq
        %v851 = vshrl.u32 %v850, 7
        %v852 = vsub.s32 0, %v851
        %v853 = vrot.slane %v848, %v852
        %v855 = vadd.f32 %v816, %v853
        %v856 = vadd.f32 %v817, %v853
        %v857 = vadd.f32 %v818, %v853
        %v858 = vadd.f32 %v819, %v853
        %v859 = vadd.f32 %v820, %v853
        %v860 = vadd.f32 %v821, %v853
        %v861 = vadd.f32 %v822, %v853
        %v862 = vadd.f32 %v823, %v853
        %v863 = vadd.f32 %v824, %v853
        %v864 = vadd.f32 %v825, %v853
        %v865 = vadd.f32 %v826, %v853
        %v866 = vadd.f32 %v827, %v853
        %v867 = vadd.f32 %v828, %v853
        %v868 = vadd.f32 %v829, %v853
        %v869 = vadd.f32 %v830, %v853
        %v870 = vadd.f32 %v831, %v853
        %v871 = vadd.f32 %v832, %v853
        %v872 = vadd.f32 %v833, %v853
        %v873 = vadd.f32 %v834, %v853
        %v874 = vadd.f32 %v835, %v853
        %v875 = vadd.f32 %v836, %v853
        %v876 = vadd.f32 %v837, %v853
        %v877 = vadd.f32 %v838, %v853
        %v878 = vadd.f32 %v839, %v853
        %v879 = vadd.f32 %v840, %v853
        %v880 = vadd.f32 %v841, %v853
        %v881 = vadd.f32 %v842, %v853
        %v882 = vadd.f32 %v843, %v853
        %v883 = vadd.f32 %v844, %v853
        %v884 = vadd.f32 %v845, %v853
        %v885 = vadd.f32 %v846, %v853
        %v886 = vadd.f32 %v847, %v853
        %v887 = vmax.f32 %v855, 0.0
        %v888 = vmax.f32 %v856, 0.0
        %v889 = vmax.f32 %v857, 0.0
        %v890 = vmax.f32 %v858, 0.0
        %v891 = vmax.f32 %v859, 0.0
        %v892 = vmax.f32 %v860, 0.0
        %v893 = vmax.f32 %v861, 0.0
        %v894 = vmax.f32 %v862, 0.0
        %v895 = vmax.f32 %v863, 0.0
        %v896 = vmax.f32 %v864, 0.0
        %v897 = vmax.f32 %v865, 0.0
        %v898 = vmax.f32 %v866, 0.0
        %v899 = vmax.f32 %v867, 0.0
        %v900 = vmax.f32 %v868, 0.0
        %v901 = vmax.f32 %v869, 0.0
        %v902 = vmax.f32 %v870, 0.0
        %v903 = vmax.f32 %v871, 0.0
        %v904 = vmax.f32 %v872, 0.0
        %v905 = vmax.f32 %v873, 0.0
        %v906 = vmax.f32 %v874, 0.0
        %v907 = vmax.f32 %v875, 0.0
        %v908 = vmax.f32 %v876, 0.0
        %v909 = vmax.f32 %v877, 0.0
        %v910 = vmax.f32 %v878, 0.0
        %v911 = vmax.f32 %v879, 0.0
        %v912 = vmax.f32 %v880, 0.0
        %v913 = vmax.f32 %v881, 0.0
        %v914 = vmax.f32 %v882, 0.0
        %v915 = vmax.f32 %v883, 0.0
        %v916 = vmax.f32 %v884, 0.0
        %v917 = vmax.f32 %v885, 0.0
        %v918 = vmax.f32 %v886, 0.0
        %vm919 = vcmask 523264
        %920 = vst.msk [vmem:[#allocation2] sm:$0xff] %vm919, 0.0
        %921 = vst.msk [vmem:[#allocation2 + $0x8] sm:$0xff] %vm919, 0.0
        %vm922 = vcmask 517120
        %923 = vst.msk [vmem:[#allocation2 + $0x10] sm:$0x3] %vm922, 0.0
        %924 = vst.msk [vmem:[#allocation2 + $0x18] sm:$0xff] %vm919, 0.0
        %925 = vst.msk [vmem:[#allocation2 + $0x20] sm:$0xff] %vm919, 0.0
        %926 = vst.msk [vmem:[#allocation2 + $0x28] sm:$0x3] %vm922, 0.0
        %927 = vst.msk [vmem:[#allocation2 + $0x30] sm:$0xff] %vm919, 0.0
        %928 = vst.msk [vmem:[#allocation2 + $0x38] sm:$0xff] %vm919, 0.0
        %929 = vst.msk [vmem:[#allocation2 + $0x40] sm:$0x3] %vm922, 0.0
        %930 = vst.msk [vmem:[#allocation2 + $0x48] sm:$0xff] %vm919, 0.0
        %931 = vst.msk [vmem:[#allocation2 + $0x50] sm:$0xff] %vm919, 0.0
        %932 = vst.msk [vmem:[#allocation2 + $0x58] sm:$0x3] %vm922, 0.0
        %933 = vst.msk [vmem:[#allocation2 + $0x60] sm:$0xff] %vm919, 0.0
        %934 = vst.msk [vmem:[#allocation2 + $0x68] sm:$0xff] %vm919, 0.0
        %935 = vst.msk [vmem:[#allocation2 + $0x70] sm:$0x3] %vm922, 0.0
        %936 = vst.msk [vmem:[#allocation2 + $0x78] sm:$0xff] %vm919, 0.0
        %937 = vst.msk [vmem:[#allocation2 + $0x80] sm:$0xff] %vm919, 0.0
        %938 = vst.msk [vmem:[#allocation2 + $0x88] sm:$0x3] %vm922, 0.0
        %939 = vst.msk [vmem:[#allocation2 + $0x90] sm:$0xff] %vm919, 0.0
        %940 = vst.msk [vmem:[#allocation2 + $0x98] sm:$0xff] %vm919, 0.0
        %941 = vst.msk [vmem:[#allocation2 + $0xa0] sm:$0x3] %vm922, 0.0
        %942 = vst.msk [vmem:[#allocation2 + $0xa8] sm:$0xff] %vm919, 0.0
        %943 = vst.msk [vmem:[#allocation2 + $0xb0] sm:$0xff] %vm919, 0.0
        %944 = vst.msk [vmem:[#allocation2 + $0xb8] sm:$0x3] %vm922, 0.0
        %945 = vst.msk [vmem:[#allocation2 + $0xc0] sm:$0xff] %vm919, 0.0
        %946 = vst.msk [vmem:[#allocation2 + $0xc8] sm:$0xff] %vm919, 0.0
        %947 = vst.msk [vmem:[#allocation2 + $0xd0] sm:$0x3] %vm922, 0.0
        %948 = vst.msk [vmem:[#allocation2 + $0xd8] sm:$0xff] %vm919, 0.0
        %949 = vst.msk [vmem:[#allocation2 + $0xe0] sm:$0xff] %vm919, 0.0
        %950 = vst.msk [vmem:[#allocation2 + $0xe8] sm:$0x3] %vm922, 0.0
        %951 = vst.msk [vmem:[#allocation2 + $0xf0] sm:$0xff] %vm919, 0.0
        %952 = vst.msk [vmem:[#allocation2 + $0xf8] sm:$0xff] %vm919, 0.0
        %953 = vst.msk [vmem:[#allocation2 + $0x100] sm:$0x3] %vm922, 0.0
        %954 = vst.msk [vmem:[#allocation2 + $0x108] sm:$0xff] %vm919, 0.0
        %955 = vst.msk [vmem:[#allocation2 + $0x110] sm:$0xff] %vm919, 0.0
        %956 = vst.msk [vmem:[#allocation2 + $0x118] sm:$0x3] %vm922, 0.0
        %957 = vst.msk [vmem:[#allocation2 + $0x120] sm:$0xff] %vm919, 0.0
        %958 = vst.msk [vmem:[#allocation2 + $0x128] sm:$0xff] %vm919, 0.0
        %959 = vst.msk [vmem:[#allocation2 + $0x130] sm:$0x3] %vm922, 0.0
        %960 = vst.msk [vmem:[#allocation2 + $0x138] sm:$0xff] %vm919, 0.0
        %961 = vst.msk [vmem:[#allocation2 + $0x140] sm:$0xff] %vm919, 0.0
        %962 = vst.msk [vmem:[#allocation2 + $0x148] sm:$0x3] %vm922, 0.0
        %963 = vst.msk [vmem:[#allocation2 + $0x150] sm:$0xff] %vm919, 0.0
        %964 = vst.msk [vmem:[#allocation2 + $0x158] sm:$0xff] %vm919, 0.0
        %965 = vst.msk [vmem:[#allocation2 + $0x160] sm:$0x3] %vm922, 0.0
        %966 = vst.msk [vmem:[#allocation2 + $0x168] sm:$0xff] %vm919, 0.0
        %967 = vst.msk [vmem:[#allocation2 + $0x170] sm:$0xff] %vm919, 0.0
        %968 = vst.msk [vmem:[#allocation2 + $0x178] sm:$0x3] %vm922, 0.0
        %969 = vst.msk [vmem:[#allocation2 + $0x180] sm:$0xff] %vm919, 0.0
        %970 = vst.msk [vmem:[#allocation2 + $0x188] sm:$0xff] %vm919, 0.0
        %971 = vst.msk [vmem:[#allocation2 + $0x190] sm:$0x3] %vm922, 0.0
        %972 = vst.msk [vmem:[#allocation2 + $0x198] sm:$0xff] %vm919, 0.0
        %973 = vst.msk [vmem:[#allocation2 + $0x1a0] sm:$0xff] %vm919, 0.0
        %974 = vst.msk [vmem:[#allocation2 + $0x1a8] sm:$0x3] %vm922, 0.0
        %s975 = scalar_lea.vmem [#allocation2], 24
        %976 = vst.msk [vmem:[%s975 + $0x1] sm:$0xff] %vm919, %v887
        %977 = vst.msk [vmem:[%s975 + $0x9] sm:$0xff] %vm919, %v888
        %978 = vst.msk [vmem:[%s975 + $0x19] sm:$0xff] %vm919, %v889
        %979 = vst.msk [vmem:[%s975 + $0x21] sm:$0xff] %vm919, %v890
        %980 = vst.msk [vmem:[%s975 + $0x31] sm:$0xff] %vm919, %v891
        %981 = vst.msk [vmem:[%s975 + $0x39] sm:$0xff] %vm919, %v892
        %982 = vst.msk [vmem:[%s975 + $0x49] sm:$0xff] %vm919, %v893
        %983 = vst.msk [vmem:[%s975 + $0x51] sm:$0xff] %vm919, %v894
        %984 = vst.msk [vmem:[%s975 + $0x61] sm:$0xff] %vm919, %v895
        %985 = vst.msk [vmem:[%s975 + $0x69] sm:$0xff] %vm919, %v896
        %986 = vst.msk [vmem:[%s975 + $0x79] sm:$0xff] %vm919, %v897
        %987 = vst.msk [vmem:[%s975 + $0x81] sm:$0xff] %vm919, %v898
        %988 = vst.msk [vmem:[%s975 + $0x91] sm:$0xff] %vm919, %v899
        %989 = vst.msk [vmem:[%s975 + $0x99] sm:$0xff] %vm919, %v900
        %990 = vst.msk [vmem:[%s975 + $0xa9] sm:$0xff] %vm919, %v901
        %991 = vst.msk [vmem:[%s975 + $0xb1] sm:$0xff] %vm919, %v902
        %992 = vst.msk [vmem:[%s975 + $0xc1] sm:$0xff] %vm919, %v903
        %993 = vst.msk [vmem:[%s975 + $0xc9] sm:$0xff] %vm919, %v904
        %994 = vst.msk [vmem:[%s975 + $0xd9] sm:$0xff] %vm919, %v905
        %995 = vst.msk [vmem:[%s975 + $0xe1] sm:$0xff] %vm919, %v906
        %996 = vst.msk [vmem:[%s975 + $0xf1] sm:$0xff] %vm919, %v907
        %997 = vst.msk [vmem:[%s975 + $0xf9] sm:$0xff] %vm919, %v908
        %998 = vst.msk [vmem:[%s975 + $0x109] sm:$0xff] %vm919, %v909
        %999 = vst.msk [vmem:[%s975 + $0x111] sm:$0xff] %vm919, %v910
        %1000 = vst.msk [vmem:[%s975 + $0x121] sm:$0xff] %vm919, %v911
        %1001 = vst.msk [vmem:[%s975 + $0x129] sm:$0xff] %vm919, %v912
        %1002 = vst.msk [vmem:[%s975 + $0x139] sm:$0xff] %vm919, %v913
        %1003 = vst.msk [vmem:[%s975 + $0x141] sm:$0xff] %vm919, %v914
        %1004 = vst.msk [vmem:[%s975 + $0x151] sm:$0xff] %vm919, %v915
        %1005 = vst.msk [vmem:[%s975 + $0x159] sm:$0xff] %vm919, %v916
        %1006 = vst.msk [vmem:[%s975 + $0x169] sm:$0xff] %vm919, %v917
        %1007 = vst.msk [vmem:[%s975 + $0x171] sm:$0xff] %vm919, %v918
        %v1008 = vld [vmem:[#allocation8] sm:$0xff]
        %v1009 = vld [vmem:[#allocation8 + $0x8] sm:$0xff]
        %v1010 = vld [vmem:[#allocation8 + $0x10] sm:$0xff]
        %v1011 = vld [vmem:[#allocation8 + $0x18] sm:$0xff]
        %v1012 = vld [vmem:[#allocation8 + $0x20] sm:$0xff]
        %v1013 = vld [vmem:[#allocation8 + $0x28] sm:$0xff]
        %v1014 = vld [vmem:[#allocation8 + $0x30] sm:$0xff]
        %v1015 = vld [vmem:[#allocation8 + $0x38] sm:$0xff]
        %v1016 = vld [vmem:[#allocation8 + $0x40] sm:$0xff]
        %v1017 = vld [vmem:[#allocation8 + $0x48] sm:$0xff]
        %v1018 = vld [vmem:[#allocation8 + $0x50] sm:$0xff]
        %v1019 = vld [vmem:[#allocation8 + $0x58] sm:$0xff]
        %v1020 = vld [vmem:[#allocation8 + $0x60] sm:$0xff]
        %v1021 = vld [vmem:[#allocation8 + $0x68] sm:$0xff]
        %v1022 = vld [vmem:[#allocation8 + $0x70] sm:$0xff]
        %v1023 = vld [vmem:[#allocation8 + $0x78] sm:$0xff]
        %v1024 = vld [vmem:[#allocation8 + $0x80] sm:$0xff]
        %v1025 = vld [vmem:[#allocation8 + $0x88] sm:$0xff]
        %v1026 = vld [vmem:[#allocation8 + $0x90] sm:$0xff]
        %v1027 = vld [vmem:[#allocation8 + $0x98] sm:$0xff]
        %v1028 = vld [vmem:[#allocation8 + $0xa0] sm:$0xff]
        %v1029 = vld [vmem:[#allocation8 + $0xa8] sm:$0xff]
        %v1030 = vld [vmem:[#allocation8 + $0xb0] sm:$0xff]
        %v1031 = vld [vmem:[#allocation8 + $0xb8] sm:$0xff]
        %v1032 = vld [vmem:[#allocation8 + $0xc0] sm:$0xff]
        %v1033 = vld [vmem:[#allocation8 + $0xc8] sm:$0xff]
        %v1034 = vld [vmem:[#allocation8 + $0xd0] sm:$0xff]
        %v1035 = vld [vmem:[#allocation8 + $0xd8] sm:$0xff]
        %v1036 = vld [vmem:[#allocation8 + $0xe0] sm:$0xff]
        %v1037 = vld [vmem:[#allocation8 + $0xe8] sm:$0xff]
        %v1038 = vld [vmem:[#allocation8 + $0xf0] sm:$0xff]
        %v1039 = vld [vmem:[#allocation8 + $0xf8] sm:$0xff]
        %v1040 = vld [vmem:[#allocation8 + $0x100] sm:$0xff]
        %v1041 = vld [vmem:[#allocation8 + $0x108] sm:$0xff]
        %v1042 = vld [vmem:[#allocation8 + $0x110] sm:$0xff]
        %v1043 = vld [vmem:[#allocation8 + $0x118] sm:$0xff]
        %v1044 = vld [vmem:[#allocation8 + $0x120] sm:$0xff]
        %v1045 = vld [vmem:[#allocation8 + $0x128] sm:$0xff]
        %v1046 = vld [vmem:[#allocation8 + $0x130] sm:$0xff]
        %v1047 = vld [vmem:[#allocation8 + $0x138] sm:$0xff]
        %v1048 = vld [vmem:[#allocation8 + $0x140] sm:$0xff]
        %v1049 = vld [vmem:[#allocation8 + $0x148] sm:$0xff]
        %v1050 = vld [vmem:[#allocation8 + $0x150] sm:$0xff]
        %v1051 = vld [vmem:[#allocation8 + $0x158] sm:$0xff]
        %v1052 = vld [vmem:[#allocation8 + $0x160] sm:$0xff]
        %v1053 = vld [vmem:[#allocation8 + $0x168] sm:$0xff]
        %v1054 = vld [vmem:[#allocation8 + $0x170] sm:$0xff]
        %v1055 = vld [vmem:[#allocation8 + $0x178] sm:$0xff]
        %v1056 = vld [vmem:[#allocation8 + $0x180] sm:$0xff]
        %v1057 = vld [vmem:[#allocation8 + $0x188] sm:$0xff]
        %v1058 = vld [vmem:[#allocation8 + $0x190] sm:$0xff]
        %v1059 = vld [vmem:[#allocation8 + $0x198] sm:$0xff]
        %v1060 = vld [vmem:[#allocation8 + $0x1a0] sm:$0xff]
        %v1061 = vld [vmem:[#allocation8 + $0x1a8] sm:$0xff]
        %v1062 = vld [vmem:[#allocation8 + $0x1b0] sm:$0xff]
        %v1063 = vld [vmem:[#allocation8 + $0x1b8] sm:$0xff]
        %v1064 = vld [vmem:[#allocation8 + $0x1c0] sm:$0xff]
        %v1065 = vld [vmem:[#allocation8 + $0x1c8] sm:$0xff]
        %v1066 = vld [vmem:[#allocation8 + $0x1d0] sm:$0xff]
        %v1067 = vld [vmem:[#allocation8 + $0x1d8] sm:$0xff]
        %v1068 = vld [vmem:[#allocation8 + $0x1e0] sm:$0xff]
        %v1069 = vld [vmem:[#allocation8 + $0x1e8] sm:$0xff]
        %v1070 = vld [vmem:[#allocation8 + $0x1f0] sm:$0xff]
        %v1071 = vld [vmem:[#allocation8 + $0x1f8] sm:$0xff]
        %v1072 = vld [vmem:[#allocation8 + $0x200] sm:$0xff]
        %v1073 = vld [vmem:[#allocation8 + $0x208] sm:$0xff]
        %v1074 = vld [vmem:[#allocation8 + $0x210] sm:$0xff]
        %v1075 = vld [vmem:[#allocation8 + $0x218] sm:$0xff]
        %v1076 = vld [vmem:[#allocation8 + $0x220] sm:$0xff]
        %v1077 = vld [vmem:[#allocation8 + $0x228] sm:$0xff]
        %v1078 = vld [vmem:[#allocation8 + $0x230] sm:$0xff]
        %v1079 = vld [vmem:[#allocation8 + $0x238] sm:$0xff]
        %v1080 = vld [vmem:[#allocation2] sm:$0xff]
        %v1081 = vld [vmem:[#allocation2 + $0x8] sm:$0xff]
        %v1082 = vld [vmem:[#allocation2 + $0x18] sm:$0xff]
        %v1083 = vld [vmem:[#allocation2 + $0x20] sm:$0xff]
        %v1084 = vld [vmem:[#allocation2 + $0x30] sm:$0xff]
        %v1085 = vld [vmem:[#allocation2 + $0x38] sm:$0xff]
        %v1086 = vld [vmem:[#allocation2 + $0x48] sm:$0xff]
        %v1087 = vld [vmem:[#allocation2 + $0x50] sm:$0xff]
        %v1088 = vld [vmem:[#allocation2 + $0x60] sm:$0xff]
        %v1089 = vld [vmem:[#allocation2 + $0x68] sm:$0xff]
        %v1090 = vld [vmem:[#allocation2 + $0x78] sm:$0xff]
        %v1091 = vld [vmem:[#allocation2 + $0x80] sm:$0xff]
        %v1092 = vld [vmem:[#allocation2 + $0x90] sm:$0xff]
        %v1093 = vld [vmem:[#allocation2 + $0x98] sm:$0xff]
        %v1094 = vld [vmem:[#allocation2 + $0xa8] sm:$0xff]
        %v1095 = vld [vmem:[#allocation2 + $0xb0] sm:$0xff]
        %v1096 = vld [vmem:[#allocation2 + $0xc0] sm:$0xff]
        %v1097 = vld [vmem:[#allocation2 + $0xc8] sm:$0xff]
        %v1098 = vld [vmem:[#allocation2 + $0xd8] sm:$0xff]
        %v1099 = vld [vmem:[#allocation2 + $0xe0] sm:$0xff]
        %v1100 = vld [vmem:[#allocation2 + $0xf0] sm:$0xff]
        %v1101 = vld [vmem:[#allocation2 + $0xf8] sm:$0xff]
        %v1102 = vld [vmem:[#allocation2 + $0x108] sm:$0xff]
        %v1103 = vld [vmem:[#allocation2 + $0x110] sm:$0xff]
        %v1104 = vld [vmem:[#allocation2 + $0x120] sm:$0xff]
        %v1105 = vld [vmem:[#allocation2 + $0x128] sm:$0xff]
        %v1106 = vld [vmem:[#allocation2 + $0x138] sm:$0xff]
        %v1107 = vld [vmem:[#allocation2 + $0x140] sm:$0xff]
        %v1108 = vld [vmem:[#allocation2 + $0x150] sm:$0xff]
        %v1109 = vld [vmem:[#allocation2 + $0x158] sm:$0xff]
        %v1110 = vld [vmem:[#allocation2 + $0x168] sm:$0xff]
        %v1111 = vld [vmem:[#allocation2 + $0x170] sm:$0xff]
        %v1112 = vld [vmem:[#allocation2 + $0x1] sm:$0xff]
        %v1113 = vld [vmem:[#allocation2 + $0x9] sm:$0xff]
        %v1114 = vld [vmem:[#allocation2 + $0x19] sm:$0xff]
        %v1115 = vld [vmem:[#allocation2 + $0x21] sm:$0xff]
        %v1116 = vld [vmem:[#allocation2 + $0x31] sm:$0xff]
        %v1117 = vld [vmem:[#allocation2 + $0x39] sm:$0xff]
        %v1118 = vld [vmem:[#allocation2 + $0x49] sm:$0xff]
        %v1119 = vld [vmem:[#allocation2 + $0x51] sm:$0xff]
        %v1120 = vld [vmem:[#allocation2 + $0x61] sm:$0xff]
        %v1121 = vld [vmem:[#allocation2 + $0x69] sm:$0xff]
        %v1122 = vld [vmem:[#allocation2 + $0x79] sm:$0xff]
        %v1123 = vld [vmem:[#allocation2 + $0x81] sm:$0xff]
        %v1124 = vld [vmem:[#allocation2 + $0x91] sm:$0xff]
        %v1125 = vld [vmem:[#allocation2 + $0x99] sm:$0xff]
        %v1126 = vld [vmem:[#allocation2 + $0xa9] sm:$0xff]
        %v1127 = vld [vmem:[#allocation2 + $0xb1] sm:$0xff]
        %v1128 = vld [vmem:[#allocation2 + $0xc1] sm:$0xff]
        %v1129 = vld [vmem:[#allocation2 + $0xc9] sm:$0xff]
        %v1130 = vld [vmem:[#allocation2 + $0xd9] sm:$0xff]
        %v1131 = vld [vmem:[#allocation2 + $0xe1] sm:$0xff]
        %v1132 = vld [vmem:[#allocation2 + $0xf1] sm:$0xff]
        %v1133 = vld [vmem:[#allocation2 + $0xf9] sm:$0xff]
        %v1134 = vld [vmem:[#allocation2 + $0x109] sm:$0xff]
        %v1135 = vld [vmem:[#allocation2 + $0x111] sm:$0xff]
        %v1136 = vld [vmem:[#allocation2 + $0x121] sm:$0xff]
        %v1137 = vld [vmem:[#allocation2 + $0x129] sm:$0xff]
        %v1138 = vld [vmem:[#allocation2 + $0x139] sm:$0xff]
        %v1139 = vld [vmem:[#allocation2 + $0x141] sm:$0xff]
        %v1140 = vld [vmem:[#allocation2 + $0x151] sm:$0xff]
        %v1141 = vld [vmem:[#allocation2 + $0x159] sm:$0xff]
        %v1142 = vld [vmem:[#allocation2 + $0x169] sm:$0xff]
        %v1143 = vld [vmem:[#allocation2 + $0x171] sm:$0xff]
        %v1145 = vsel %vm919, %v1112, 0
        %v1148 = vsel %vm919, %v1113, 0
        %v1151 = vsel %vm919, %v1114, 0
        %v1154 = vsel %vm919, %v1115, 0
        %v1157 = vsel %vm919, %v1116, 0
        %v1160 = vsel %vm919, %v1117, 0
        %v1163 = vsel %vm919, %v1118, 0
        %v1166 = vsel %vm919, %v1119, 0
        %v1169 = vsel %vm919, %v1120, 0
        %v1172 = vsel %vm919, %v1121, 0
        %v1175 = vsel %vm919, %v1122, 0
        %v1178 = vsel %vm919, %v1123, 0
        %v1181 = vsel %vm919, %v1124, 0
        %v1184 = vsel %vm919, %v1125, 0
        %v1187 = vsel %vm919, %v1126, 0
        %v1190 = vsel %vm919, %v1127, 0
        %v1193 = vsel %vm919, %v1128, 0
        %v1196 = vsel %vm919, %v1129, 0
        %v1199 = vsel %vm919, %v1130, 0
        %v1202 = vsel %vm919, %v1131, 0
        %v1205 = vsel %vm919, %v1132, 0
        %v1208 = vsel %vm919, %v1133, 0
        %v1211 = vsel %vm919, %v1134, 0
        %v1214 = vsel %vm919, %v1135, 0
        %v1217 = vsel %vm919, %v1136, 0
        %v1220 = vsel %vm919, %v1137, 0
        %v1223 = vsel %vm919, %v1138, 0
        %v1226 = vsel %vm919, %v1139, 0
        %v1229 = vsel %vm919, %v1140, 0
        %v1232 = vsel %vm919, %v1141, 0
        %v1235 = vsel %vm919, %v1142, 0
        %v1238 = vsel %vm919, %v1143, 0
        %1240 = vmatprep.subr.mxu0 0.0
        %1241 = vmatpush1.msra.mxu0 0.0
        %1242 = vmatprep.subr.mxu0 0.0
        %1243 = vmatpush1.msra.mxu0 0.0
        %1244 = vmatprep.subr.mxu0 0.0
        %1245 = vmatpush1.msra.mxu0 0.0
        %1246 = vmatprep.subr.mxu0 0.0
        %1247 = vmatpush1.msra.mxu0 0.0
        %1248 = vmatprep.subr.mxu0 0.0
        %1249 = vmatpush1.msra.mxu0 0.0
        %1250 = vmatprep.subr.mxu0 0.0
        %1251 = vmatpush1.msra.mxu0 0.0
        %1252 = vmatprep.subr.mxu0 0.0
        %1253 = vmatpush1.msra.mxu0 0.0
        %1254 = vmatprep.subr.mxu0 0.0
        %1255 = vmatpush1.msra.mxu0 0.0
        %1256 = vmatprep.subr.mxu0 0.0
        %1257 = vmatpush1.msra.mxu0 %v1023
        %1258 = vmatprep.subr.mxu0 0.0
        %1259 = vmatpush1.msra.mxu0 %v1022
        %1260 = vmatprep.subr.mxu0 0.0
        %1261 = vmatpush1.msra.mxu0 %v1021
        %1262 = vmatprep.subr.mxu0 0.0
        %1263 = vmatpush1.msra.mxu0 %v1020
        %1264 = vmatprep.subr.mxu0 0.0
        %1265 = vmatpush1.msra.mxu0 %v1019
        %1266 = vmatprep.subr.mxu0 0.0
        %1267 = vmatpush1.msra.mxu0 %v1018
        %1268 = vmatprep.subr.mxu0 0.0
        %1269 = vmatpush1.msra.mxu0 %v1017
        %1270 = vmatprep.subr.mxu0 0.0
        %1271 = vmatpush1.msra.mxu0 %v1016
        %1272 = vmatprep.subr.mxu0 0.0
        %1273 = vmatpush2.msra.mxu0 0.0
        %1274 = vmatprep.subr.mxu0 0.0
        %1275 = vmatpush2.msra.mxu0 0.0
        %1276 = vmatprep.subr.mxu0 0.0
        %1277 = vmatpush2.msra.mxu0 0.0
        %1278 = vmatprep.subr.mxu0 0.0
        %1279 = vmatpush2.msra.mxu0 0.0
        %1280 = vmatprep.subr.mxu0 0.0
        %1281 = vmatpush2.msra.mxu0 0.0
        %1282 = vmatprep.subr.mxu0 0.0
        %1283 = vmatpush2.msra.mxu0 0.0
        %1284 = vmatprep.subr.mxu0 0.0
        %1285 = vmatpush2.msra.mxu0 0.0
        %1286 = vmatprep.subr.mxu0 0.0
        %1287 = vmatpush2.msra.mxu0 0.0
        %1288 = vmatprep.subr.mxu0 0.0
        %1289 = vmatpush2.msra.mxu0 0.0
        %1290 = vmatprep.subr.mxu0 0.0
        %1291 = vmatpush2.msra.mxu0 0.0
        %1292 = vmatprep.subr.mxu0 0.0
        %1293 = vmatpush2.msra.mxu0 0.0
        %1294 = vmatprep.subr.mxu0 0.0
        %1295 = vmatpush2.msra.mxu0 0.0
        %1296 = vmatprep.subr.mxu0 0.0
        %1297 = vmatpush2.msra.mxu0 0.0
        %1298 = vmatprep.subr.mxu0 0.0
        %1299 = vmatpush2.msra.mxu0 0.0
        %1300 = vmatprep.subr.mxu0 0.0
        %1301 = vmatpush2.msra.mxu0 0.0
        %1302 = vmatprep.subr.mxu0 0.0
        %1303 = vmatpush2.msra.mxu0 0.0
        %1304 = vmatprep.mubr.f32.mxu0 0.0
        %1305 = vmatmul.mubr.f32.gmra.mxu0 %v1145
        %v1306 = vpop.f32.mrf.mxu0
        %v1307 = vadd.f32 0.0, %v1306
        %v1308 = vpop.f32.mrf.mxu0
        %1309 = vmatprep.mubr.f32.mxu0 0.0
        %1310 = vmatmul.mubr.f32.gmra.mxu0 %v1148
        %v1311 = vpop.f32.mrf.mxu0
        %v1312 = vadd.f32 0.0, %v1311
        %v1313 = vpop.f32.mrf.mxu0
        %1314 = vmatprep.mubr.f32.mxu0 0.0
        %1315 = vmatmul.mubr.f32.gmra.mxu0 %v1151
        %v1316 = vpop.f32.mrf.mxu0
        %v1317 = vadd.f32 0.0, %v1316
        %v1318 = vpop.f32.mrf.mxu0
        %1319 = vmatprep.mubr.f32.mxu0 0.0
        %1320 = vmatmul.mubr.f32.gmra.mxu0 %v1154
        %v1321 = vpop.f32.mrf.mxu0
        %v1322 = vadd.f32 0.0, %v1321
        %v1323 = vpop.f32.mrf.mxu0
        %1324 = vmatprep.mubr.f32.mxu0 0.0
        %1325 = vmatmul.mubr.f32.gmra.mxu0 %v1157
        %v1326 = vpop.f32.mrf.mxu0
        %v1327 = vadd.f32 0.0, %v1326
        %v1328 = vpop.f32.mrf.mxu0
        %1329 = vmatprep.mubr.f32.mxu0 0.0
        %1330 = vmatmul.mubr.f32.gmra.mxu0 %v1160
        %v1331 = vpop.f32.mrf.mxu0
        %v1332 = vadd.f32 0.0, %v1331
        %v1333 = vpop.f32.mrf.mxu0
        %1334 = vmatprep.mubr.f32.mxu0 0.0
        %1335 = vmatmul.mubr.f32.gmra.mxu0 %v1163
        %v1336 = vpop.f32.mrf.mxu0
        %v1337 = vadd.f32 0.0, %v1336
        %v1338 = vpop.f32.mrf.mxu0
        %1339 = vmatprep.mubr.f32.mxu0 0.0
        %1340 = vmatmul.mubr.f32.gmra.mxu0 %v1166
        %v1341 = vpop.f32.mrf.mxu0
        %v1342 = vadd.f32 0.0, %v1341
        %v1343 = vpop.f32.mrf.mxu0
        %1344 = vmatprep.mubr.f32.mxu0 0.0
        %1345 = vmatmul.mubr.f32.gmra.mxu0 %v1169
        %v1346 = vpop.f32.mrf.mxu0
        %v1347 = vadd.f32 0.0, %v1346
        %v1348 = vpop.f32.mrf.mxu0
        %1349 = vmatprep.mubr.f32.mxu0 0.0
        %1350 = vmatmul.mubr.f32.gmra.mxu0 %v1172
        %v1351 = vpop.f32.mrf.mxu0
        %v1352 = vadd.f32 0.0, %v1351
        %v1353 = vpop.f32.mrf.mxu0
        %1354 = vmatprep.mubr.f32.mxu0 0.0
        %1355 = vmatmul.mubr.f32.gmra.mxu0 %v1175
        %v1356 = vpop.f32.mrf.mxu0
        %v1357 = vadd.f32 0.0, %v1356
        %v1358 = vpop.f32.mrf.mxu0
        %1359 = vmatprep.mubr.f32.mxu0 0.0
        %1360 = vmatmul.mubr.f32.gmra.mxu0 %v1178
        %v1361 = vpop.f32.mrf.mxu0
        %v1362 = vadd.f32 0.0, %v1361
        %v1363 = vpop.f32.mrf.mxu0
        %1364 = vmatprep.mubr.f32.mxu0 0.0
        %1365 = vmatmul.mubr.f32.gmra.mxu0 %v1181
        %v1366 = vpop.f32.mrf.mxu0
        %v1367 = vadd.f32 0.0, %v1366
        %v1368 = vpop.f32.mrf.mxu0
        %1369 = vmatprep.mubr.f32.mxu0 0.0
        %1370 = vmatmul.mubr.f32.gmra.mxu0 %v1184
        %v1371 = vpop.f32.mrf.mxu0
        %v1372 = vadd.f32 0.0, %v1371
        %v1373 = vpop.f32.mrf.mxu0
        %1374 = vmatprep.mubr.f32.mxu0 0.0
        %1375 = vmatmul.mubr.f32.gmra.mxu0 %v1187
        %v1376 = vpop.f32.mrf.mxu0
        %v1377 = vadd.f32 0.0, %v1376
        %v1378 = vpop.f32.mrf.mxu0
        %1379 = vmatprep.mubr.f32.mxu0 0.0
        %1380 = vmatmul.mubr.f32.gmra.mxu0 %v1190
        %v1381 = vpop.f32.mrf.mxu0
        %v1382 = vadd.f32 0.0, %v1381
        %v1383 = vpop.f32.mrf.mxu0
        %1384 = vmatprep.mubr.f32.mxu0 0.0
        %1385 = vmatmul.mubr.f32.gmra.mxu0 %v1193
        %v1386 = vpop.f32.mrf.mxu0
        %v1387 = vadd.f32 0.0, %v1386
        %v1388 = vpop.f32.mrf.mxu0
        %1389 = vmatprep.mubr.f32.mxu0 0.0
        %1390 = vmatmul.mubr.f32.gmra.mxu0 %v1196
        %v1391 = vpop.f32.mrf.mxu0
        %v1392 = vadd.f32 0.0, %v1391
        %v1393 = vpop.f32.mrf.mxu0
        %1394 = vmatprep.mubr.f32.mxu0 0.0
        %1395 = vmatmul.mubr.f32.gmra.mxu0 %v1199
        %v1396 = vpop.f32.mrf.mxu0
        %v1397 = vadd.f32 0.0, %v1396
        %v1398 = vpop.f32.mrf.mxu0
        %1399 = vmatprep.mubr.f32.mxu0 0.0
        %1400 = vmatmul.mubr.f32.gmra.mxu0 %v1202
        %v1401 = vpop.f32.mrf.mxu0
        %v1402 = vadd.f32 0.0, %v1401
        %v1403 = vpop.f32.mrf.mxu0
        %1404 = vmatprep.mubr.f32.mxu0 0.0
        %1405 = vmatmul.mubr.f32.gmra.mxu0 %v1205
        %v1406 = vpop.f32.mrf.mxu0
        %v1407 = vadd.f32 0.0, %v1406
        %v1408 = vpop.f32.mrf.mxu0
        %1409 = vmatprep.mubr.f32.mxu0 0.0
        %1410 = vmatmul.mubr.f32.gmra.mxu0 %v1208
        %v1411 = vpop.f32.mrf.mxu0
        %v1412 = vadd.f32 0.0, %v1411
        %v1413 = vpop.f32.mrf.mxu0
        %1414 = vmatprep.mubr.f32.mxu0 0.0
        %1415 = vmatmul.mubr.f32.gmra.mxu0 %v1211
        %v1416 = vpop.f32.mrf.mxu0
        %v1417 = vadd.f32 0.0, %v1416
        %v1418 = vpop.f32.mrf.mxu0
        %1419 = vmatprep.mubr.f32.mxu0 0.0
        %1420 = vmatmul.mubr.f32.gmra.mxu0 %v1214
        %v1421 = vpop.f32.mrf.mxu0
        %v1422 = vadd.f32 0.0, %v1421
        %v1423 = vpop.f32.mrf.mxu0
        %1424 = vmatprep.mubr.f32.mxu0 0.0
        %1425 = vmatmul.mubr.f32.gmra.mxu0 %v1217
        %v1426 = vpop.f32.mrf.mxu0
        %v1427 = vadd.f32 0.0, %v1426
        %v1428 = vpop.f32.mrf.mxu0
        %1429 = vmatprep.mubr.f32.mxu0 0.0
        %1430 = vmatmul.mubr.f32.gmra.mxu0 %v1220
        %v1431 = vpop.f32.mrf.mxu0
        %v1432 = vadd.f32 0.0, %v1431
        %v1433 = vpop.f32.mrf.mxu0
        %1434 = vmatprep.mubr.f32.mxu0 0.0
        %1435 = vmatmul.mubr.f32.gmra.mxu0 %v1223
        %v1436 = vpop.f32.mrf.mxu0
        %v1437 = vadd.f32 0.0, %v1436
        %v1438 = vpop.f32.mrf.mxu0
        %1439 = vmatprep.mubr.f32.mxu0 0.0
        %1440 = vmatmul.mubr.f32.gmra.mxu0 %v1226
        %v1441 = vpop.f32.mrf.mxu0
        %v1442 = vadd.f32 0.0, %v1441
        %v1443 = vpop.f32.mrf.mxu0
        %1444 = vmatprep.mubr.f32.mxu0 0.0
        %1445 = vmatmul.mubr.f32.gmra.mxu0 %v1229
        %v1446 = vpop.f32.mrf.mxu0
        %v1447 = vadd.f32 0.0, %v1446
        %v1448 = vpop.f32.mrf.mxu0
        %1449 = vmatprep.mubr.f32.mxu0 0.0
        %1450 = vmatmul.mubr.f32.gmra.mxu0 %v1232
        %v1451 = vpop.f32.mrf.mxu0
        %v1452 = vadd.f32 0.0, %v1451
        %v1453 = vpop.f32.mrf.mxu0
        %1454 = vmatprep.mubr.f32.mxu0 0.0
        %1455 = vmatmul.mubr.f32.gmra.mxu0 %v1235
        %v1456 = vpop.f32.mrf.mxu0
        %v1457 = vadd.f32 0.0, %v1456
        %v1458 = vpop.f32.mrf.mxu0
        %1459 = vmatprep.mubr.f32.mxu0 0.0
        %1460 = vmatmul.mubr.f32.gmra.mxu0 %v1238
        %v1461 = vpop.f32.mrf.mxu0
        %v1462 = vadd.f32 0.0, %v1461
        %v1463 = vpop.f32.mrf.mxu0
        %1464 = vdwg.mxu0
        %v1466 = vsel %vm919, %v1080, 0
        %v1469 = vsel %vm919, %v1081, 0
        %v1472 = vsel %vm919, %v1082, 0
        %v1475 = vsel %vm919, %v1083, 0
        %v1478 = vsel %vm919, %v1084, 0
        %v1481 = vsel %vm919, %v1085, 0
        %v1484 = vsel %vm919, %v1086, 0
        %v1487 = vsel %vm919, %v1087, 0
        %v1490 = vsel %vm919, %v1088, 0
        %v1493 = vsel %vm919, %v1089, 0
        %v1496 = vsel %vm919, %v1090, 0
        %v1499 = vsel %vm919, %v1091, 0
        %v1502 = vsel %vm919, %v1092, 0
        %v1505 = vsel %vm919, %v1093, 0
        %v1508 = vsel %vm919, %v1094, 0
        %v1511 = vsel %vm919, %v1095, 0
        %v1514 = vsel %vm919, %v1096, 0
        %v1517 = vsel %vm919, %v1097, 0
        %v1520 = vsel %vm919, %v1098, 0
        %v1523 = vsel %vm919, %v1099, 0
        %v1526 = vsel %vm919, %v1100, 0
        %v1529 = vsel %vm919, %v1101, 0
        %v1532 = vsel %vm919, %v1102, 0
        %v1535 = vsel %vm919, %v1103, 0
        %v1538 = vsel %vm919, %v1104, 0
        %v1541 = vsel %vm919, %v1105, 0
        %v1544 = vsel %vm919, %v1106, 0
        %v1547 = vsel %vm919, %v1107, 0
        %v1550 = vsel %vm919, %v1108, 0
        %v1553 = vsel %vm919, %v1109, 0
        %v1556 = vsel %vm919, %v1110, 0
        %v1559 = vsel %vm919, %v1111, 0
        %1561 = vmatprep.subr.mxu0 0.0
        %1562 = vmatpush1.msra.mxu0 0.0
        %1563 = vmatprep.subr.mxu0 0.0
        %1564 = vmatpush1.msra.mxu0 0.0
        %1565 = vmatprep.subr.mxu0 0.0
        %1566 = vmatpush1.msra.mxu0 0.0
        %1567 = vmatprep.subr.mxu0 0.0
        %1568 = vmatpush1.msra.mxu0 0.0
        %1569 = vmatprep.subr.mxu0 0.0
        %1570 = vmatpush1.msra.mxu0 0.0
        %1571 = vmatprep.subr.mxu0 0.0
        %1572 = vmatpush1.msra.mxu0 0.0
        %1573 = vmatprep.subr.mxu0 0.0
        %1574 = vmatpush1.msra.mxu0 0.0
        %1575 = vmatprep.subr.mxu0 0.0
        %1576 = vmatpush1.msra.mxu0 0.0
        %1577 = vmatprep.subr.mxu0 0.0
        %1578 = vmatpush1.msra.mxu0 %v1015
        %1579 = vmatprep.subr.mxu0 0.0
        %1580 = vmatpush1.msra.mxu0 %v1014
        %1581 = vmatprep.subr.mxu0 0.0
        %1582 = vmatpush1.msra.mxu0 %v1013
        %1583 = vmatprep.subr.mxu0 0.0
        %1584 = vmatpush1.msra.mxu0 %v1012
        %1585 = vmatprep.subr.mxu0 0.0
        %1586 = vmatpush1.msra.mxu0 %v1011
        %1587 = vmatprep.subr.mxu0 0.0
        %1588 = vmatpush1.msra.mxu0 %v1010
        %1589 = vmatprep.subr.mxu0 0.0
        %1590 = vmatpush1.msra.mxu0 %v1009
        %1591 = vmatprep.subr.mxu0 0.0
        %1592 = vmatpush1.msra.mxu0 %v1008
        %1593 = vmatprep.subr.mxu0 0.0
        %1594 = vmatpush2.msra.mxu0 0.0
        %1595 = vmatprep.subr.mxu0 0.0
        %1596 = vmatpush2.msra.mxu0 0.0
        %1597 = vmatprep.subr.mxu0 0.0
        %1598 = vmatpush2.msra.mxu0 0.0
        %1599 = vmatprep.subr.mxu0 0.0
        %1600 = vmatpush2.msra.mxu0 0.0
        %1601 = vmatprep.subr.mxu0 0.0
        %1602 = vmatpush2.msra.mxu0 0.0
        %1603 = vmatprep.subr.mxu0 0.0
        %1604 = vmatpush2.msra.mxu0 0.0
        %1605 = vmatprep.subr.mxu0 0.0
        %1606 = vmatpush2.msra.mxu0 0.0
        %1607 = vmatprep.subr.mxu0 0.0
        %1608 = vmatpush2.msra.mxu0 0.0
        %1609 = vmatprep.subr.mxu0 0.0
        %1610 = vmatpush2.msra.mxu0 0.0
        %1611 = vmatprep.subr.mxu0 0.0
        %1612 = vmatpush2.msra.mxu0 0.0
        %1613 = vmatprep.subr.mxu0 0.0
        %1614 = vmatpush2.msra.mxu0 0.0
        %1615 = vmatprep.subr.mxu0 0.0
        %1616 = vmatpush2.msra.mxu0 0.0
        %1617 = vmatprep.subr.mxu0 0.0
        %1618 = vmatpush2.msra.mxu0 0.0
        %1619 = vmatprep.subr.mxu0 0.0
        %1620 = vmatpush2.msra.mxu0 0.0
        %1621 = vmatprep.subr.mxu0 0.0
        %1622 = vmatpush2.msra.mxu0 0.0
        %1623 = vmatprep.subr.mxu0 0.0
        %1624 = vmatpush2.msra.mxu0 0.0
        %1625 = vmatprep.mubr.f32.mxu0 0.0
        %1626 = vmatmul.mubr.f32.gmra.mxu0 %v1466
        %v1627 = vpop.f32.mrf.mxu0
        %v1628 = vadd.f32 %v1307, %v1627
        %v1629 = vpop.f32.mrf.mxu0
        %1630 = vmatprep.mubr.f32.mxu0 0.0
        %1631 = vmatmul.mubr.f32.gmra.mxu0 %v1469
        %v1632 = vpop.f32.mrf.mxu0
        %v1633 = vadd.f32 %v1312, %v1632
        %v1634 = vpop.f32.mrf.mxu0
        %1635 = vmatprep.mubr.f32.mxu0 0.0
        %1636 = vmatmul.mubr.f32.gmra.mxu0 %v1472
        %v1637 = vpop.f32.mrf.mxu0
        %v1638 = vadd.f32 %v1317, %v1637
        %v1639 = vpop.f32.mrf.mxu0
        %1640 = vmatprep.mubr.f32.mxu0 0.0
        %1641 = vmatmul.mubr.f32.gmra.mxu0 %v1475
        %v1642 = vpop.f32.mrf.mxu0
        %v1643 = vadd.f32 %v1322, %v1642
        %v1644 = vpop.f32.mrf.mxu0
        %1645 = vmatprep.mubr.f32.mxu0 0.0
        %1646 = vmatmul.mubr.f32.gmra.mxu0 %v1478
        %v1647 = vpop.f32.mrf.mxu0
        %v1648 = vadd.f32 %v1327, %v1647
        %v1649 = vpop.f32.mrf.mxu0
        %1650 = vmatprep.mubr.f32.mxu0 0.0
        %1651 = vmatmul.mubr.f32.gmra.mxu0 %v1481
        %v1652 = vpop.f32.mrf.mxu0
        %v1653 = vadd.f32 %v1332, %v1652
        %v1654 = vpop.f32.mrf.mxu0
        %1655 = vmatprep.mubr.f32.mxu0 0.0
        %1656 = vmatmul.mubr.f32.gmra.mxu0 %v1484
        %v1657 = vpop.f32.mrf.mxu0
        %v1658 = vadd.f32 %v1337, %v1657
        %v1659 = vpop.f32.mrf.mxu0
        %1660 = vmatprep.mubr.f32.mxu0 0.0
        %1661 = vmatmul.mubr.f32.gmra.mxu0 %v1487
        %v1662 = vpop.f32.mrf.mxu0
        %v1663 = vadd.f32 %v1342, %v1662
        %v1664 = vpop.f32.mrf.mxu0
        %1665 = vmatprep.mubr.f32.mxu0 0.0
        %1666 = vmatmul.mubr.f32.gmra.mxu0 %v1490
        %v1667 = vpop.f32.mrf.mxu0
        %v1668 = vadd.f32 %v1347, %v1667
        %v1669 = vpop.f32.mrf.mxu0
        %1670 = vmatprep.mubr.f32.mxu0 0.0
        %1671 = vmatmul.mubr.f32.gmra.mxu0 %v1493
        %v1672 = vpop.f32.mrf.mxu0
        %v1673 = vadd.f32 %v1352, %v1672
        %v1674 = vpop.f32.mrf.mxu0
        %1675 = vmatprep.mubr.f32.mxu0 0.0
        %1676 = vmatmul.mubr.f32.gmra.mxu0 %v1496
        %v1677 = vpop.f32.mrf.mxu0
        %v1678 = vadd.f32 %v1357, %v1677
        %v1679 = vpop.f32.mrf.mxu0
        %1680 = vmatprep.mubr.f32.mxu0 0.0
        %1681 = vmatmul.mubr.f32.gmra.mxu0 %v1499
        %v1682 = vpop.f32.mrf.mxu0
        %v1683 = vadd.f32 %v1362, %v1682
        %v1684 = vpop.f32.mrf.mxu0
        %1685 = vmatprep.mubr.f32.mxu0 0.0
        %1686 = vmatmul.mubr.f32.gmra.mxu0 %v1502
        %v1687 = vpop.f32.mrf.mxu0
        %v1688 = vadd.f32 %v1367, %v1687
        %v1689 = vpop.f32.mrf.mxu0
        %1690 = vmatprep.mubr.f32.mxu0 0.0
        %1691 = vmatmul.mubr.f32.gmra.mxu0 %v1505
        %v1692 = vpop.f32.mrf.mxu0
        %v1693 = vadd.f32 %v1372, %v1692
        %v1694 = vpop.f32.mrf.mxu0
        %1695 = vmatprep.mubr.f32.mxu0 0.0
        %1696 = vmatmul.mubr.f32.gmra.mxu0 %v1508
        %v1697 = vpop.f32.mrf.mxu0
        %v1698 = vadd.f32 %v1377, %v1697
        %v1699 = vpop.f32.mrf.mxu0
        %1700 = vmatprep.mubr.f32.mxu0 0.0
        %1701 = vmatmul.mubr.f32.gmra.mxu0 %v1511
        %v1702 = vpop.f32.mrf.mxu0
        %v1703 = vadd.f32 %v1382, %v1702
        %v1704 = vpop.f32.mrf.mxu0
        %1705 = vmatprep.mubr.f32.mxu0 0.0
        %1706 = vmatmul.mubr.f32.gmra.mxu0 %v1514
        %v1707 = vpop.f32.mrf.mxu0
        %v1708 = vadd.f32 %v1387, %v1707
        %v1709 = vpop.f32.mrf.mxu0
        %1710 = vmatprep.mubr.f32.mxu0 0.0
        %1711 = vmatmul.mubr.f32.gmra.mxu0 %v1517
        %v1712 = vpop.f32.mrf.mxu0
        %v1713 = vadd.f32 %v1392, %v1712
        %v1714 = vpop.f32.mrf.mxu0
        %1715 = vmatprep.mubr.f32.mxu0 0.0
        %1716 = vmatmul.mubr.f32.gmra.mxu0 %v1520
        %v1717 = vpop.f32.mrf.mxu0
        %v1718 = vadd.f32 %v1397, %v1717
        %v1719 = vpop.f32.mrf.mxu0
        %1720 = vmatprep.mubr.f32.mxu0 0.0
        %1721 = vmatmul.mubr.f32.gmra.mxu0 %v1523
        %v1722 = vpop.f32.mrf.mxu0
        %v1723 = vadd.f32 %v1402, %v1722
        %v1724 = vpop.f32.mrf.mxu0
        %1725 = vmatprep.mubr.f32.mxu0 0.0
        %1726 = vmatmul.mubr.f32.gmra.mxu0 %v1526
        %v1727 = vpop.f32.mrf.mxu0
        %v1728 = vadd.f32 %v1407, %v1727
        %v1729 = vpop.f32.mrf.mxu0
        %1730 = vmatprep.mubr.f32.mxu0 0.0
        %1731 = vmatmul.mubr.f32.gmra.mxu0 %v1529
        %v1732 = vpop.f32.mrf.mxu0
        %v1733 = vadd.f32 %v1412, %v1732
        %v1734 = vpop.f32.mrf.mxu0
        %1735 = vmatprep.mubr.f32.mxu0 0.0
        %1736 = vmatmul.mubr.f32.gmra.mxu0 %v1532
        %v1737 = vpop.f32.mrf.mxu0
        %v1738 = vadd.f32 %v1417, %v1737
        %v1739 = vpop.f32.mrf.mxu0
        %1740 = vmatprep.mubr.f32.mxu0 0.0
        %1741 = vmatmul.mubr.f32.gmra.mxu0 %v1535
        %v1742 = vpop.f32.mrf.mxu0
        %v1743 = vadd.f32 %v1422, %v1742
        %v1744 = vpop.f32.mrf.mxu0
        %1745 = vmatprep.mubr.f32.mxu0 0.0
        %1746 = vmatmul.mubr.f32.gmra.mxu0 %v1538
        %v1747 = vpop.f32.mrf.mxu0
        %v1748 = vadd.f32 %v1427, %v1747
        %v1749 = vpop.f32.mrf.mxu0
        %1750 = vmatprep.mubr.f32.mxu0 0.0
        %1751 = vmatmul.mubr.f32.gmra.mxu0 %v1541
        %v1752 = vpop.f32.mrf.mxu0
        %v1753 = vadd.f32 %v1432, %v1752
        %v1754 = vpop.f32.mrf.mxu0
        %1755 = vmatprep.mubr.f32.mxu0 0.0
        %1756 = vmatmul.mubr.f32.gmra.mxu0 %v1544
        %v1757 = vpop.f32.mrf.mxu0
        %v1758 = vadd.f32 %v1437, %v1757
        %v1759 = vpop.f32.mrf.mxu0
        %1760 = vmatprep.mubr.f32.mxu0 0.0
        %1761 = vmatmul.mubr.f32.gmra.mxu0 %v1547
        %v1762 = vpop.f32.mrf.mxu0
        %v1763 = vadd.f32 %v1442, %v1762
        %v1764 = vpop.f32.mrf.mxu0
        %1765 = vmatprep.mubr.f32.mxu0 0.0
        %1766 = vmatmul.mubr.f32.gmra.mxu0 %v1550
        %v1767 = vpop.f32.mrf.mxu0
        %v1768 = vadd.f32 %v1447, %v1767
        %v1769 = vpop.f32.mrf.mxu0
        %1770 = vmatprep.mubr.f32.mxu0 0.0
        %1771 = vmatmul.mubr.f32.gmra.mxu0 %v1553
        %v1772 = vpop.f32.mrf.mxu0
        %v1773 = vadd.f32 %v1452, %v1772
        %v1774 = vpop.f32.mrf.mxu0
        %1775 = vmatprep.mubr.f32.mxu0 0.0
        %1776 = vmatmul.mubr.f32.gmra.mxu0 %v1556
        %v1777 = vpop.f32.mrf.mxu0
        %v1778 = vadd.f32 %v1457, %v1777
        %v1779 = vpop.f32.mrf.mxu0
        %1780 = vmatprep.mubr.f32.mxu0 0.0
        %1781 = vmatmul.mubr.f32.gmra.mxu0 %v1559
        %v1782 = vpop.f32.mrf.mxu0
        %v1783 = vadd.f32 %v1462, %v1782
        %v1784 = vpop.f32.mrf.mxu0
        %1785 = vdwg.mxu0
        %v1786 = vld [vmem:[#allocation2 + $0x2] sm:$0xff]
        %v1787 = vld [vmem:[#allocation2 + $0xa] sm:$0xff]
        %v1788 = vld [vmem:[#allocation2 + $0x1a] sm:$0xff]
        %v1789 = vld [vmem:[#allocation2 + $0x22] sm:$0xff]
        %v1790 = vld [vmem:[#allocation2 + $0x32] sm:$0xff]
        %v1791 = vld [vmem:[#allocation2 + $0x3a] sm:$0xff]
        %v1792 = vld [vmem:[#allocation2 + $0x4a] sm:$0xff]
        %v1793 = vld [vmem:[#allocation2 + $0x52] sm:$0xff]
        %v1794 = vld [vmem:[#allocation2 + $0x62] sm:$0xff]
        %v1795 = vld [vmem:[#allocation2 + $0x6a] sm:$0xff]
        %v1796 = vld [vmem:[#allocation2 + $0x7a] sm:$0xff]
        %v1797 = vld [vmem:[#allocation2 + $0x82] sm:$0xff]
        %v1798 = vld [vmem:[#allocation2 + $0x92] sm:$0xff]
        %v1799 = vld [vmem:[#allocation2 + $0x9a] sm:$0xff]
        %v1800 = vld [vmem:[#allocation2 + $0xaa] sm:$0xff]
        %v1801 = vld [vmem:[#allocation2 + $0xb2] sm:$0xff]
        %v1802 = vld [vmem:[#allocation2 + $0xc2] sm:$0xff]
        %v1803 = vld [vmem:[#allocation2 + $0xca] sm:$0xff]
        %v1804 = vld [vmem:[#allocation2 + $0xda] sm:$0xff]
        %v1805 = vld [vmem:[#allocation2 + $0xe2] sm:$0xff]
        %v1806 = vld [vmem:[#allocation2 + $0xf2] sm:$0xff]
        %v1807 = vld [vmem:[#allocation2 + $0xfa] sm:$0xff]
        %v1808 = vld [vmem:[#allocation2 + $0x10a] sm:$0xff]
        %v1809 = vld [vmem:[#allocation2 + $0x112] sm:$0xff]
        %v1810 = vld [vmem:[#allocation2 + $0x122] sm:$0xff]
        %v1811 = vld [vmem:[#allocation2 + $0x12a] sm:$0xff]
        %v1812 = vld [vmem:[#allocation2 + $0x13a] sm:$0xff]
        %v1813 = vld [vmem:[#allocation2 + $0x142] sm:$0xff]
        %v1814 = vld [vmem:[#allocation2 + $0x152] sm:$0xff]
        %v1815 = vld [vmem:[#allocation2 + $0x15a] sm:$0xff]
        %v1816 = vld [vmem:[#allocation2 + $0x16a] sm:$0xff]
        %v1817 = vld [vmem:[#allocation2 + $0x172] sm:$0xff]
        %v1819 = vsel %vm919, %v1786, 0
        %v1822 = vsel %vm919, %v1787, 0
        %v1825 = vsel %vm919, %v1788, 0
        %v1828 = vsel %vm919, %v1789, 0
        %v1831 = vsel %vm919, %v1790, 0
        %v1834 = vsel %vm919, %v1791, 0
        %v1837 = vsel %vm919, %v1792, 0
        %v1840 = vsel %vm919, %v1793, 0
        %v1843 = vsel %vm919, %v1794, 0
        %v1846 = vsel %vm919, %v1795, 0
        %v1849 = vsel %vm919, %v1796, 0
        %v1852 = vsel %vm919, %v1797, 0
        %v1855 = vsel %vm919, %v1798, 0
        %v1858 = vsel %vm919, %v1799, 0
        %v1861 = vsel %vm919, %v1800, 0
        %v1864 = vsel %vm919, %v1801, 0
        %v1867 = vsel %vm919, %v1802, 0
        %v1870 = vsel %vm919, %v1803, 0
        %v1873 = vsel %vm919, %v1804, 0
        %v1876 = vsel %vm919, %v1805, 0
        %v1879 = vsel %vm919, %v1806, 0
        %v1882 = vsel %vm919, %v1807, 0
        %v1885 = vsel %vm919, %v1808, 0
        %v1888 = vsel %vm919, %v1809, 0
        %v1891 = vsel %vm919, %v1810, 0
        %v1894 = vsel %vm919, %v1811, 0
        %v1897 = vsel %vm919, %v1812, 0
        %v1900 = vsel %vm919, %v1813, 0
        %v1903 = vsel %vm919, %v1814, 0
        %v1906 = vsel %vm919, %v1815, 0
        %v1909 = vsel %vm919, %v1816, 0
        %v1912 = vsel %vm919, %v1817, 0
        %1914 = vmatprep.subr.mxu0 0.0
        %1915 = vmatpush1.msra.mxu0 0.0
        %1916 = vmatprep.subr.mxu0 0.0
        %1917 = vmatpush1.msra.mxu0 0.0
        %1918 = vmatprep.subr.mxu0 0.0
        %1919 = vmatpush1.msra.mxu0 0.0
        %1920 = vmatprep.subr.mxu0 0.0
        %1921 = vmatpush1.msra.mxu0 0.0
        %1922 = vmatprep.subr.mxu0 0.0
        %1923 = vmatpush1.msra.mxu0 0.0
        %1924 = vmatprep.subr.mxu0 0.0
        %1925 = vmatpush1.msra.mxu0 0.0
        %1926 = vmatprep.subr.mxu0 0.0
        %1927 = vmatpush1.msra.mxu0 0.0
        %1928 = vmatprep.subr.mxu0 0.0
        %1929 = vmatpush1.msra.mxu0 0.0
        %1930 = vmatprep.subr.mxu0 0.0
        %1931 = vmatpush1.msra.mxu0 %v1031
        %1932 = vmatprep.subr.mxu0 0.0
        %1933 = vmatpush1.msra.mxu0 %v1030
        %1934 = vmatprep.subr.mxu0 0.0
        %1935 = vmatpush1.msra.mxu0 %v1029
        %1936 = vmatprep.subr.mxu0 0.0
        %1937 = vmatpush1.msra.mxu0 %v1028
        %1938 = vmatprep.subr.mxu0 0.0
        %1939 = vmatpush1.msra.mxu0 %v1027
        %1940 = vmatprep.subr.mxu0 0.0
        %1941 = vmatpush1.msra.mxu0 %v1026
        %1942 = vmatprep.subr.mxu0 0.0
        %1943 = vmatpush1.msra.mxu0 %v1025
        %1944 = vmatprep.subr.mxu0 0.0
        %1945 = vmatpush1.msra.mxu0 %v1024
        %1946 = vmatprep.subr.mxu0 0.0
        %1947 = vmatpush2.msra.mxu0 0.0
        %1948 = vmatprep.subr.mxu0 0.0
        %1949 = vmatpush2.msra.mxu0 0.0
        %1950 = vmatprep.subr.mxu0 0.0
        %1951 = vmatpush2.msra.mxu0 0.0
        %1952 = vmatprep.subr.mxu0 0.0
        %1953 = vmatpush2.msra.mxu0 0.0
        %1954 = vmatprep.subr.mxu0 0.0
        %1955 = vmatpush2.msra.mxu0 0.0
        %1956 = vmatprep.subr.mxu0 0.0
        %1957 = vmatpush2.msra.mxu0 0.0
        %1958 = vmatprep.subr.mxu0 0.0
        %1959 = vmatpush2.msra.mxu0 0.0
        %1960 = vmatprep.subr.mxu0 0.0
        %1961 = vmatpush2.msra.mxu0 0.0
        %1962 = vmatprep.subr.mxu0 0.0
        %1963 = vmatpush2.msra.mxu0 0.0
        %1964 = vmatprep.subr.mxu0 0.0
        %1965 = vmatpush2.msra.mxu0 0.0
        %1966 = vmatprep.subr.mxu0 0.0
        %1967 = vmatpush2.msra.mxu0 0.0
        %1968 = vmatprep.subr.mxu0 0.0
        %1969 = vmatpush2.msra.mxu0 0.0
        %1970 = vmatprep.subr.mxu0 0.0
        %1971 = vmatpush2.msra.mxu0 0.0
        %1972 = vmatprep.subr.mxu0 0.0
        %1973 = vmatpush2.msra.mxu0 0.0
        %1974 = vmatprep.subr.mxu0 0.0
        %1975 = vmatpush2.msra.mxu0 0.0
        %1976 = vmatprep.subr.mxu0 0.0
        %1977 = vmatpush2.msra.mxu0 0.0
        %1978 = vmatprep.mubr.f32.mxu0 0.0
        %1979 = vmatmul.mubr.f32.gmra.mxu0 %v1819
        %v1980 = vpop.f32.mrf.mxu0
        %v1981 = vadd.f32 0.0, %v1980
        %v1982 = vpop.f32.mrf.mxu0
        %1983 = vmatprep.mubr.f32.mxu0 0.0
        %1984 = vmatmul.mubr.f32.gmra.mxu0 %v1822
        %v1985 = vpop.f32.mrf.mxu0
        %v1986 = vadd.f32 0.0, %v1985
        %v1987 = vpop.f32.mrf.mxu0
        %1988 = vmatprep.mubr.f32.mxu0 0.0
        %1989 = vmatmul.mubr.f32.gmra.mxu0 %v1825
        %v1990 = vpop.f32.mrf.mxu0
        %v1991 = vadd.f32 0.0, %v1990
        %v1992 = vpop.f32.mrf.mxu0
        %1993 = vmatprep.mubr.f32.mxu0 0.0
        %1994 = vmatmul.mubr.f32.gmra.mxu0 %v1828
        %v1995 = vpop.f32.mrf.mxu0
        %v1996 = vadd.f32 0.0, %v1995
        %v1997 = vpop.f32.mrf.mxu0
        %1998 = vmatprep.mubr.f32.mxu0 0.0
        %1999 = vmatmul.mubr.f32.gmra.mxu0 %v1831
        %v2000 = vpop.f32.mrf.mxu0
        %v2001 = vadd.f32 0.0, %v2000
        %v2002 = vpop.f32.mrf.mxu0
        %2003 = vmatprep.mubr.f32.mxu0 0.0
        %2004 = vmatmul.mubr.f32.gmra.mxu0 %v1834
        %v2005 = vpop.f32.mrf.mxu0
        %v2006 = vadd.f32 0.0, %v2005
        %v2007 = vpop.f32.mrf.mxu0
        %2008 = vmatprep.mubr.f32.mxu0 0.0
        %2009 = vmatmul.mubr.f32.gmra.mxu0 %v1837
        %v2010 = vpop.f32.mrf.mxu0
        %v2011 = vadd.f32 0.0, %v2010
        %v2012 = vpop.f32.mrf.mxu0
        %2013 = vmatprep.mubr.f32.mxu0 0.0
        %2014 = vmatmul.mubr.f32.gmra.mxu0 %v1840
        %v2015 = vpop.f32.mrf.mxu0
        %v2016 = vadd.f32 0.0, %v2015
        %v2017 = vpop.f32.mrf.mxu0
        %2018 = vmatprep.mubr.f32.mxu0 0.0
        %2019 = vmatmul.mubr.f32.gmra.mxu0 %v1843
        %v2020 = vpop.f32.mrf.mxu0
        %v2021 = vadd.f32 0.0, %v2020
        %v2022 = vpop.f32.mrf.mxu0
        %2023 = vmatprep.mubr.f32.mxu0 0.0
        %2024 = vmatmul.mubr.f32.gmra.mxu0 %v1846
        %v2025 = vpop.f32.mrf.mxu0
        %v2026 = vadd.f32 0.0, %v2025
        %v2027 = vpop.f32.mrf.mxu0
        %2028 = vmatprep.mubr.f32.mxu0 0.0
        %2029 = vmatmul.mubr.f32.gmra.mxu0 %v1849
        %v2030 = vpop.f32.mrf.mxu0
        %v2031 = vadd.f32 0.0, %v2030
        %v2032 = vpop.f32.mrf.mxu0
        %2033 = vmatprep.mubr.f32.mxu0 0.0
        %2034 = vmatmul.mubr.f32.gmra.mxu0 %v1852
        %v2035 = vpop.f32.mrf.mxu0
        %v2036 = vadd.f32 0.0, %v2035
        %v2037 = vpop.f32.mrf.mxu0
        %2038 = vmatprep.mubr.f32.mxu0 0.0
        %2039 = vmatmul.mubr.f32.gmra.mxu0 %v1855
        %v2040 = vpop.f32.mrf.mxu0
        %v2041 = vadd.f32 0.0, %v2040
        %v2042 = vpop.f32.mrf.mxu0
        %2043 = vmatprep.mubr.f32.mxu0 0.0
        %2044 = vmatmul.mubr.f32.gmra.mxu0 %v1858
        %v2045 = vpop.f32.mrf.mxu0
        %v2046 = vadd.f32 0.0, %v2045
        %v2047 = vpop.f32.mrf.mxu0
        %2048 = vmatprep.mubr.f32.mxu0 0.0
        %2049 = vmatmul.mubr.f32.gmra.mxu0 %v1861
        %v2050 = vpop.f32.mrf.mxu0
        %v2051 = vadd.f32 0.0, %v2050
        %v2052 = vpop.f32.mrf.mxu0
        %2053 = vmatprep.mubr.f32.mxu0 0.0
        %2054 = vmatmul.mubr.f32.gmra.mxu0 %v1864
        %v2055 = vpop.f32.mrf.mxu0
        %v2056 = vadd.f32 0.0, %v2055
        %v2057 = vpop.f32.mrf.mxu0
        %2058 = vmatprep.mubr.f32.mxu0 0.0
        %2059 = vmatmul.mubr.f32.gmra.mxu0 %v1867
        %v2060 = vpop.f32.mrf.mxu0
        %v2061 = vadd.f32 0.0, %v2060
        %v2062 = vpop.f32.mrf.mxu0
        %2063 = vmatprep.mubr.f32.mxu0 0.0
        %2064 = vmatmul.mubr.f32.gmra.mxu0 %v1870
        %v2065 = vpop.f32.mrf.mxu0
        %v2066 = vadd.f32 0.0, %v2065
        %v2067 = vpop.f32.mrf.mxu0
        %2068 = vmatprep.mubr.f32.mxu0 0.0
        %2069 = vmatmul.mubr.f32.gmra.mxu0 %v1873
        %v2070 = vpop.f32.mrf.mxu0
        %v2071 = vadd.f32 0.0, %v2070
        %v2072 = vpop.f32.mrf.mxu0
        %2073 = vmatprep.mubr.f32.mxu0 0.0
        %2074 = vmatmul.mubr.f32.gmra.mxu0 %v1876
        %v2075 = vpop.f32.mrf.mxu0
        %v2076 = vadd.f32 0.0, %v2075
        %v2077 = vpop.f32.mrf.mxu0
        %2078 = vmatprep.mubr.f32.mxu0 0.0
        %2079 = vmatmul.mubr.f32.gmra.mxu0 %v1879
        %v2080 = vpop.f32.mrf.mxu0
        %v2081 = vadd.f32 0.0, %v2080
        %v2082 = vpop.f32.mrf.mxu0
        %2083 = vmatprep.mubr.f32.mxu0 0.0
        %2084 = vmatmul.mubr.f32.gmra.mxu0 %v1882
        %v2085 = vpop.f32.mrf.mxu0
        %v2086 = vadd.f32 0.0, %v2085
        %v2087 = vpop.f32.mrf.mxu0
        %2088 = vmatprep.mubr.f32.mxu0 0.0
        %2089 = vmatmul.mubr.f32.gmra.mxu0 %v1885
        %v2090 = vpop.f32.mrf.mxu0
        %v2091 = vadd.f32 0.0, %v2090
        %v2092 = vpop.f32.mrf.mxu0
        %2093 = vmatprep.mubr.f32.mxu0 0.0
        %2094 = vmatmul.mubr.f32.gmra.mxu0 %v1888
        %v2095 = vpop.f32.mrf.mxu0
        %v2096 = vadd.f32 0.0, %v2095
        %v2097 = vpop.f32.mrf.mxu0
        %2098 = vmatprep.mubr.f32.mxu0 0.0
        %2099 = vmatmul.mubr.f32.gmra.mxu0 %v1891
        %v2100 = vpop.f32.mrf.mxu0
        %v2101 = vadd.f32 0.0, %v2100
        %v2102 = vpop.f32.mrf.mxu0
        %2103 = vmatprep.mubr.f32.mxu0 0.0
        %2104 = vmatmul.mubr.f32.gmra.mxu0 %v1894
        %v2105 = vpop.f32.mrf.mxu0
        %v2106 = vadd.f32 0.0, %v2105
        %v2107 = vpop.f32.mrf.mxu0
        %2108 = vmatprep.mubr.f32.mxu0 0.0
        %2109 = vmatmul.mubr.f32.gmra.mxu0 %v1897
        %v2110 = vpop.f32.mrf.mxu0
        %v2111 = vadd.f32 0.0, %v2110
        %v2112 = vpop.f32.mrf.mxu0
        %2113 = vmatprep.mubr.f32.mxu0 0.0
        %2114 = vmatmul.mubr.f32.gmra.mxu0 %v1900
        %v2115 = vpop.f32.mrf.mxu0
        %v2116 = vadd.f32 0.0, %v2115
        %v2117 = vpop.f32.mrf.mxu0
        %2118 = vmatprep.mubr.f32.mxu0 0.0
        %2119 = vmatmul.mubr.f32.gmra.mxu0 %v1903
        %v2120 = vpop.f32.mrf.mxu0
        %v2121 = vadd.f32 0.0, %v2120
        %v2122 = vpop.f32.mrf.mxu0
        %2123 = vmatprep.mubr.f32.mxu0 0.0
        %2124 = vmatmul.mubr.f32.gmra.mxu0 %v1906
        %v2125 = vpop.f32.mrf.mxu0
        %v2126 = vadd.f32 0.0, %v2125
        %v2127 = vpop.f32.mrf.mxu0
        %2128 = vmatprep.mubr.f32.mxu0 0.0
        %2129 = vmatmul.mubr.f32.gmra.mxu0 %v1909
        %v2130 = vpop.f32.mrf.mxu0
        %v2131 = vadd.f32 0.0, %v2130
        %v2132 = vpop.f32.mrf.mxu0
        %2133 = vmatprep.mubr.f32.mxu0 0.0
        %2134 = vmatmul.mubr.f32.gmra.mxu0 %v1912
        %v2135 = vpop.f32.mrf.mxu0
        %v2136 = vadd.f32 0.0, %v2135
        %v2137 = vpop.f32.mrf.mxu0
        %2138 = vdwg.mxu0
        %v2139 = vadd.f32 %v1628, %v1981
        %v2140 = vadd.f32 %v1633, %v1986
        %v2141 = vadd.f32 %v1638, %v1991
        %v2142 = vadd.f32 %v1643, %v1996
        %v2143 = vadd.f32 %v1648, %v2001
        %v2144 = vadd.f32 %v1653, %v2006
        %v2145 = vadd.f32 %v1658, %v2011
        %v2146 = vadd.f32 %v1663, %v2016
        %v2147 = vadd.f32 %v1668, %v2021
        %v2148 = vadd.f32 %v1673, %v2026
        %v2149 = vadd.f32 %v1678, %v2031
        %v2150 = vadd.f32 %v1683, %v2036
        %v2151 = vadd.f32 %v1688, %v2041
        %v2152 = vadd.f32 %v1693, %v2046
        %v2153 = vadd.f32 %v1698, %v2051
        %v2154 = vadd.f32 %v1703, %v2056
        %v2155 = vadd.f32 %v1708, %v2061
        %v2156 = vadd.f32 %v1713, %v2066
        %v2157 = vadd.f32 %v1718, %v2071
        %v2158 = vadd.f32 %v1723, %v2076
        %v2159 = vadd.f32 %v1728, %v2081
        %v2160 = vadd.f32 %v1733, %v2086
        %v2161 = vadd.f32 %v1738, %v2091
        %v2162 = vadd.f32 %v1743, %v2096
        %v2163 = vadd.f32 %v1748, %v2101
        %v2164 = vadd.f32 %v1753, %v2106
        %v2165 = vadd.f32 %v1758, %v2111
        %v2166 = vadd.f32 %v1763, %v2116
        %v2167 = vadd.f32 %v1768, %v2121
        %v2168 = vadd.f32 %v1773, %v2126
        %v2169 = vadd.f32 %v1778, %v2131
        %v2170 = vadd.f32 %v1783, %v2136
        %v2171 = vld [vmem:[%s975] sm:$0xff]
        %v2172 = vld [vmem:[%s975 + $0x8] sm:$0xff]
        %v2173 = vld [vmem:[%s975 + $0x18] sm:$0xff]
        %v2174 = vld [vmem:[%s975 + $0x20] sm:$0xff]
        %v2175 = vld [vmem:[%s975 + $0x30] sm:$0xff]
        %v2176 = vld [vmem:[%s975 + $0x38] sm:$0xff]
        %v2177 = vld [vmem:[%s975 + $0x48] sm:$0xff]
        %v2178 = vld [vmem:[%s975 + $0x50] sm:$0xff]
        %v2179 = vld [vmem:[%s975 + $0x60] sm:$0xff]
        %v2180 = vld [vmem:[%s975 + $0x68] sm:$0xff]
        %v2181 = vld [vmem:[%s975 + $0x78] sm:$0xff]
        %v2182 = vld [vmem:[%s975 + $0x80] sm:$0xff]
        %v2183 = vld [vmem:[%s975 + $0x90] sm:$0xff]
        %v2184 = vld [vmem:[%s975 + $0x98] sm:$0xff]
        %v2185 = vld [vmem:[%s975 + $0xa8] sm:$0xff]
        %v2186 = vld [vmem:[%s975 + $0xb0] sm:$0xff]
        %v2187 = vld [vmem:[%s975 + $0xc0] sm:$0xff]
        %v2188 = vld [vmem:[%s975 + $0xc8] sm:$0xff]
        %v2189 = vld [vmem:[%s975 + $0xd8] sm:$0xff]
        %v2190 = vld [vmem:[%s975 + $0xe0] sm:$0xff]
        %v2191 = vld [vmem:[%s975 + $0xf0] sm:$0xff]
        %v2192 = vld [vmem:[%s975 + $0xf8] sm:$0xff]
        %v2193 = vld [vmem:[%s975 + $0x108] sm:$0xff]
        %v2194 = vld [vmem:[%s975 + $0x110] sm:$0xff]
        %v2195 = vld [vmem:[%s975 + $0x120] sm:$0xff]
        %v2196 = vld [vmem:[%s975 + $0x128] sm:$0xff]
        %v2197 = vld [vmem:[%s975 + $0x138] sm:$0xff]
        %v2198 = vld [vmem:[%s975 + $0x140] sm:$0xff]
        %v2199 = vld [vmem:[%s975 + $0x150] sm:$0xff]
        %v2200 = vld [vmem:[%s975 + $0x158] sm:$0xff]
        %v2201 = vld [vmem:[%s975 + $0x168] sm:$0xff]
        %v2202 = vld [vmem:[%s975 + $0x170] sm:$0xff]
        %v2204 = vsel %vm919, %v2171, 0
        %v2207 = vsel %vm919, %v2172, 0
        %v2210 = vsel %vm919, %v2173, 0
        %v2213 = vsel %vm919, %v2174, 0
        %v2216 = vsel %vm919, %v2175, 0
        %v2219 = vsel %vm919, %v2176, 0
        %v2222 = vsel %vm919, %v2177, 0
        %v2225 = vsel %vm919, %v2178, 0
        %v2228 = vsel %vm919, %v2179, 0
        %v2231 = vsel %vm919, %v2180, 0
        %v2234 = vsel %vm919, %v2181, 0
        %v2237 = vsel %vm919, %v2182, 0
        %v2240 = vsel %vm919, %v2183, 0
        %v2243 = vsel %vm919, %v2184, 0
        %v2246 = vsel %vm919, %v2185, 0
        %v2249 = vsel %vm919, %v2186, 0
        %v2252 = vsel %vm919, %v2187, 0
        %v2255 = vsel %vm919, %v2188, 0
        %v2258 = vsel %vm919, %v2189, 0
        %v2261 = vsel %vm919, %v2190, 0
        %v2264 = vsel %vm919, %v2191, 0
        %v2267 = vsel %vm919, %v2192, 0
        %v2270 = vsel %vm919, %v2193, 0
        %v2273 = vsel %vm919, %v2194, 0
        %v2276 = vsel %vm919, %v2195, 0
        %v2279 = vsel %vm919, %v2196, 0
        %v2282 = vsel %vm919, %v2197, 0
        %v2285 = vsel %vm919, %v2198, 0
        %v2288 = vsel %vm919, %v2199, 0
        %v2291 = vsel %vm919, %v2200, 0
        %v2294 = vsel %vm919, %v2201, 0
        %v2297 = vsel %vm919, %v2202, 0
        %2299 = vmatprep.subr.mxu0 0.0
        %2300 = vmatpush1.msra.mxu0 0.0
        %2301 = vmatprep.subr.mxu0 0.0
        %2302 = vmatpush1.msra.mxu0 0.0
        %2303 = vmatprep.subr.mxu0 0.0
        %2304 = vmatpush1.msra.mxu0 0.0
        %2305 = vmatprep.subr.mxu0 0.0
        %2306 = vmatpush1.msra.mxu0 0.0
        %2307 = vmatprep.subr.mxu0 0.0
        %2308 = vmatpush1.msra.mxu0 0.0
        %2309 = vmatprep.subr.mxu0 0.0
        %2310 = vmatpush1.msra.mxu0 0.0
        %2311 = vmatprep.subr.mxu0 0.0
        %2312 = vmatpush1.msra.mxu0 0.0
        %2313 = vmatprep.subr.mxu0 0.0
        %2314 = vmatpush1.msra.mxu0 0.0
        %2315 = vmatprep.subr.mxu0 0.0
        %2316 = vmatpush1.msra.mxu0 %v1039
        %2317 = vmatprep.subr.mxu0 0.0
        %2318 = vmatpush1.msra.mxu0 %v1038
        %2319 = vmatprep.subr.mxu0 0.0
        %2320 = vmatpush1.msra.mxu0 %v1037
        %2321 = vmatprep.subr.mxu0 0.0
        %2322 = vmatpush1.msra.mxu0 %v1036
        %2323 = vmatprep.subr.mxu0 0.0
        %2324 = vmatpush1.msra.mxu0 %v1035
        %2325 = vmatprep.subr.mxu0 0.0
        %2326 = vmatpush1.msra.mxu0 %v1034
        %2327 = vmatprep.subr.mxu0 0.0
        %2328 = vmatpush1.msra.mxu0 %v1033
        %2329 = vmatprep.subr.mxu0 0.0
        %2330 = vmatpush1.msra.mxu0 %v1032
        %2331 = vmatprep.subr.mxu0 0.0
        %2332 = vmatpush2.msra.mxu0 0.0
        %2333 = vmatprep.subr.mxu0 0.0
        %2334 = vmatpush2.msra.mxu0 0.0
        %2335 = vmatprep.subr.mxu0 0.0
        %2336 = vmatpush2.msra.mxu0 0.0
        %2337 = vmatprep.subr.mxu0 0.0
        %2338 = vmatpush2.msra.mxu0 0.0
        %2339 = vmatprep.subr.mxu0 0.0
        %2340 = vmatpush2.msra.mxu0 0.0
        %2341 = vmatprep.subr.mxu0 0.0
        %2342 = vmatpush2.msra.mxu0 0.0
        %2343 = vmatprep.subr.mxu0 0.0
        %2344 = vmatpush2.msra.mxu0 0.0
        %2345 = vmatprep.subr.mxu0 0.0
        %2346 = vmatpush2.msra.mxu0 0.0
        %2347 = vmatprep.subr.mxu0 0.0
        %2348 = vmatpush2.msra.mxu0 0.0
        %2349 = vmatprep.subr.mxu0 0.0
        %2350 = vmatpush2.msra.mxu0 0.0
        %2351 = vmatprep.subr.mxu0 0.0
        %2352 = vmatpush2.msra.mxu0 0.0
        %2353 = vmatprep.subr.mxu0 0.0
        %2354 = vmatpush2.msra.mxu0 0.0
        %2355 = vmatprep.subr.mxu0 0.0
        %2356 = vmatpush2.msra.mxu0 0.0
        %2357 = vmatprep.subr.mxu0 0.0
        %2358 = vmatpush2.msra.mxu0 0.0
        %2359 = vmatprep.subr.mxu0 0.0
        %2360 = vmatpush2.msra.mxu0 0.0
        %2361 = vmatprep.subr.mxu0 0.0
        %2362 = vmatpush2.msra.mxu0 0.0
        %2363 = vmatprep.mubr.f32.mxu0 0.0
        %2364 = vmatmul.mubr.f32.gmra.mxu0 %v2204
        %v2365 = vpop.f32.mrf.mxu0
        %v2366 = vadd.f32 0.0, %v2365
        %v2367 = vpop.f32.mrf.mxu0
        %2368 = vmatprep.mubr.f32.mxu0 0.0
        %2369 = vmatmul.mubr.f32.gmra.mxu0 %v2207
        %v2370 = vpop.f32.mrf.mxu0
        %v2371 = vadd.f32 0.0, %v2370
        %v2372 = vpop.f32.mrf.mxu0
        %2373 = vmatprep.mubr.f32.mxu0 0.0
        %2374 = vmatmul.mubr.f32.gmra.mxu0 %v2210
        %v2375 = vpop.f32.mrf.mxu0
        %v2376 = vadd.f32 0.0, %v2375
        %v2377 = vpop.f32.mrf.mxu0
        %2378 = vmatprep.mubr.f32.mxu0 0.0
        %2379 = vmatmul.mubr.f32.gmra.mxu0 %v2213
        %v2380 = vpop.f32.mrf.mxu0
        %v2381 = vadd.f32 0.0, %v2380
        %v2382 = vpop.f32.mrf.mxu0
        %2383 = vmatprep.mubr.f32.mxu0 0.0
        %2384 = vmatmul.mubr.f32.gmra.mxu0 %v2216
        %v2385 = vpop.f32.mrf.mxu0
        %v2386 = vadd.f32 0.0, %v2385
        %v2387 = vpop.f32.mrf.mxu0
        %2388 = vmatprep.mubr.f32.mxu0 0.0
        %2389 = vmatmul.mubr.f32.gmra.mxu0 %v2219
        %v2390 = vpop.f32.mrf.mxu0
        %v2391 = vadd.f32 0.0, %v2390
        %v2392 = vpop.f32.mrf.mxu0
        %2393 = vmatprep.mubr.f32.mxu0 0.0
        %2394 = vmatmul.mubr.f32.gmra.mxu0 %v2222
        %v2395 = vpop.f32.mrf.mxu0
        %v2396 = vadd.f32 0.0, %v2395
        %v2397 = vpop.f32.mrf.mxu0
        %2398 = vmatprep.mubr.f32.mxu0 0.0
        %2399 = vmatmul.mubr.f32.gmra.mxu0 %v2225
        %v2400 = vpop.f32.mrf.mxu0
        %v2401 = vadd.f32 0.0, %v2400
        %v2402 = vpop.f32.mrf.mxu0
        %2403 = vmatprep.mubr.f32.mxu0 0.0
        %2404 = vmatmul.mubr.f32.gmra.mxu0 %v2228
        %v2405 = vpop.f32.mrf.mxu0
        %v2406 = vadd.f32 0.0, %v2405
        %v2407 = vpop.f32.mrf.mxu0
        %2408 = vmatprep.mubr.f32.mxu0 0.0
        %2409 = vmatmul.mubr.f32.gmra.mxu0 %v2231
        %v2410 = vpop.f32.mrf.mxu0
        %v2411 = vadd.f32 0.0, %v2410
        %v2412 = vpop.f32.mrf.mxu0
        %2413 = vmatprep.mubr.f32.mxu0 0.0
        %2414 = vmatmul.mubr.f32.gmra.mxu0 %v2234
        %v2415 = vpop.f32.mrf.mxu0
        %v2416 = vadd.f32 0.0, %v2415
        %v2417 = vpop.f32.mrf.mxu0
        %2418 = vmatprep.mubr.f32.mxu0 0.0
        %2419 = vmatmul.mubr.f32.gmra.mxu0 %v2237
        %v2420 = vpop.f32.mrf.mxu0
        %v2421 = vadd.f32 0.0, %v2420
        %v2422 = vpop.f32.mrf.mxu0
        %2423 = vmatprep.mubr.f32.mxu0 0.0
        %2424 = vmatmul.mubr.f32.gmra.mxu0 %v2240
        %v2425 = vpop.f32.mrf.mxu0
        %v2426 = vadd.f32 0.0, %v2425
        %v2427 = vpop.f32.mrf.mxu0
        %2428 = vmatprep.mubr.f32.mxu0 0.0
        %2429 = vmatmul.mubr.f32.gmra.mxu0 %v2243
        %v2430 = vpop.f32.mrf.mxu0
        %v2431 = vadd.f32 0.0, %v2430
        %v2432 = vpop.f32.mrf.mxu0
        %2433 = vmatprep.mubr.f32.mxu0 0.0
        %2434 = vmatmul.mubr.f32.gmra.mxu0 %v2246
        %v2435 = vpop.f32.mrf.mxu0
        %v2436 = vadd.f32 0.0, %v2435
        %v2437 = vpop.f32.mrf.mxu0
        %2438 = vmatprep.mubr.f32.mxu0 0.0
        %2439 = vmatmul.mubr.f32.gmra.mxu0 %v2249
        %v2440 = vpop.f32.mrf.mxu0
        %v2441 = vadd.f32 0.0, %v2440
        %v2442 = vpop.f32.mrf.mxu0
        %2443 = vmatprep.mubr.f32.mxu0 0.0
        %2444 = vmatmul.mubr.f32.gmra.mxu0 %v2252
        %v2445 = vpop.f32.mrf.mxu0
        %v2446 = vadd.f32 0.0, %v2445
        %v2447 = vpop.f32.mrf.mxu0
        %2448 = vmatprep.mubr.f32.mxu0 0.0
        %2449 = vmatmul.mubr.f32.gmra.mxu0 %v2255
        %v2450 = vpop.f32.mrf.mxu0
        %v2451 = vadd.f32 0.0, %v2450
        %v2452 = vpop.f32.mrf.mxu0
        %2453 = vmatprep.mubr.f32.mxu0 0.0
        %2454 = vmatmul.mubr.f32.gmra.mxu0 %v2258
        %v2455 = vpop.f32.mrf.mxu0
        %v2456 = vadd.f32 0.0, %v2455
        %v2457 = vpop.f32.mrf.mxu0
        %2458 = vmatprep.mubr.f32.mxu0 0.0
        %2459 = vmatmul.mubr.f32.gmra.mxu0 %v2261
        %v2460 = vpop.f32.mrf.mxu0
        %v2461 = vadd.f32 0.0, %v2460
        %v2462 = vpop.f32.mrf.mxu0
        %2463 = vmatprep.mubr.f32.mxu0 0.0
        %2464 = vmatmul.mubr.f32.gmra.mxu0 %v2264
        %v2465 = vpop.f32.mrf.mxu0
        %v2466 = vadd.f32 0.0, %v2465
        %v2467 = vpop.f32.mrf.mxu0
        %2468 = vmatprep.mubr.f32.mxu0 0.0
        %2469 = vmatmul.mubr.f32.gmra.mxu0 %v2267
        %v2470 = vpop.f32.mrf.mxu0
        %v2471 = vadd.f32 0.0, %v2470
        %v2472 = vpop.f32.mrf.mxu0
        %2473 = vmatprep.mubr.f32.mxu0 0.0
        %2474 = vmatmul.mubr.f32.gmra.mxu0 %v2270
        %v2475 = vpop.f32.mrf.mxu0
        %v2476 = vadd.f32 0.0, %v2475
        %v2477 = vpop.f32.mrf.mxu0
        %2478 = vmatprep.mubr.f32.mxu0 0.0
        %2479 = vmatmul.mubr.f32.gmra.mxu0 %v2273
        %v2480 = vpop.f32.mrf.mxu0
        %v2481 = vadd.f32 0.0, %v2480
        %v2482 = vpop.f32.mrf.mxu0
        %2483 = vmatprep.mubr.f32.mxu0 0.0
        %2484 = vmatmul.mubr.f32.gmra.mxu0 %v2276
        %v2485 = vpop.f32.mrf.mxu0
        %v2486 = vadd.f32 0.0, %v2485
        %v2487 = vpop.f32.mrf.mxu0
        %2488 = vmatprep.mubr.f32.mxu0 0.0
        %2489 = vmatmul.mubr.f32.gmra.mxu0 %v2279
        %v2490 = vpop.f32.mrf.mxu0
        %v2491 = vadd.f32 0.0, %v2490
        %v2492 = vpop.f32.mrf.mxu0
        %2493 = vmatprep.mubr.f32.mxu0 0.0
        %2494 = vmatmul.mubr.f32.gmra.mxu0 %v2282
        %v2495 = vpop.f32.mrf.mxu0
        %v2496 = vadd.f32 0.0, %v2495
        %v2497 = vpop.f32.mrf.mxu0
        %2498 = vmatprep.mubr.f32.mxu0 0.0
        %2499 = vmatmul.mubr.f32.gmra.mxu0 %v2285
        %v2500 = vpop.f32.mrf.mxu0
        %v2501 = vadd.f32 0.0, %v2500
        %v2502 = vpop.f32.mrf.mxu0
        %2503 = vmatprep.mubr.f32.mxu0 0.0
        %2504 = vmatmul.mubr.f32.gmra.mxu0 %v2288
        %v2505 = vpop.f32.mrf.mxu0
        %v2506 = vadd.f32 0.0, %v2505
        %v2507 = vpop.f32.mrf.mxu0
        %2508 = vmatprep.mubr.f32.mxu0 0.0
        %2509 = vmatmul.mubr.f32.gmra.mxu0 %v2291
        %v2510 = vpop.f32.mrf.mxu0
        %v2511 = vadd.f32 0.0, %v2510
        %v2512 = vpop.f32.mrf.mxu0
        %2513 = vmatprep.mubr.f32.mxu0 0.0
        %2514 = vmatmul.mubr.f32.gmra.mxu0 %v2294
        %v2515 = vpop.f32.mrf.mxu0
        %v2516 = vadd.f32 0.0, %v2515
        %v2517 = vpop.f32.mrf.mxu0
        %2518 = vmatprep.mubr.f32.mxu0 0.0
        %2519 = vmatmul.mubr.f32.gmra.mxu0 %v2297
        %v2520 = vpop.f32.mrf.mxu0
        %v2521 = vadd.f32 0.0, %v2520
        %v2522 = vpop.f32.mrf.mxu0
        %2523 = vdwg.mxu0
        %v2524 = vadd.f32 %v2139, %v2366
        %v2525 = vadd.f32 %v2140, %v2371
        %v2526 = vadd.f32 %v2141, %v2376
        %v2527 = vadd.f32 %v2142, %v2381
        %v2528 = vadd.f32 %v2143, %v2386
        %v2529 = vadd.f32 %v2144, %v2391
        %v2530 = vadd.f32 %v2145, %v2396
        %v2531 = vadd.f32 %v2146, %v2401
        %v2532 = vadd.f32 %v2147, %v2406
        %v2533 = vadd.f32 %v2148, %v2411
        %v2534 = vadd.f32 %v2149, %v2416
        %v2535 = vadd.f32 %v2150, %v2421
        %v2536 = vadd.f32 %v2151, %v2426
        %v2537 = vadd.f32 %v2152, %v2431
        %v2538 = vadd.f32 %v2153, %v2436
        %v2539 = vadd.f32 %v2154, %v2441
        %v2540 = vadd.f32 %v2155, %v2446
        %v2541 = vadd.f32 %v2156, %v2451
        %v2542 = vadd.f32 %v2157, %v2456
        %v2543 = vadd.f32 %v2158, %v2461
        %v2544 = vadd.f32 %v2159, %v2466
        %v2545 = vadd.f32 %v2160, %v2471
        %v2546 = vadd.f32 %v2161, %v2476
        %v2547 = vadd.f32 %v2162, %v2481
        %v2548 = vadd.f32 %v2163, %v2486
        %v2549 = vadd.f32 %v2164, %v2491
        %v2550 = vadd.f32 %v2165, %v2496
        %v2551 = vadd.f32 %v2166, %v2501
        %v2552 = vadd.f32 %v2167, %v2506
        %v2553 = vadd.f32 %v2168, %v2511
        %v2554 = vadd.f32 %v2169, %v2516
        %v2555 = vadd.f32 %v2170, %v2521
        %v2556 = vld [vmem:[%s975 + $0x1] sm:$0xff]
        %v2557 = vld [vmem:[%s975 + $0x9] sm:$0xff]
        %v2558 = vld [vmem:[%s975 + $0x19] sm:$0xff]
        %v2559 = vld [vmem:[%s975 + $0x21] sm:$0xff]
        %v2560 = vld [vmem:[%s975 + $0x31] sm:$0xff]
        %v2561 = vld [vmem:[%s975 + $0x39] sm:$0xff]
        %v2562 = vld [vmem:[%s975 + $0x49] sm:$0xff]
        %v2563 = vld [vmem:[%s975 + $0x51] sm:$0xff]
        %v2564 = vld [vmem:[%s975 + $0x61] sm:$0xff]
        %v2565 = vld [vmem:[%s975 + $0x69] sm:$0xff]
        %v2566 = vld [vmem:[%s975 + $0x79] sm:$0xff]
        %v2567 = vld [vmem:[%s975 + $0x81] sm:$0xff]
        %v2568 = vld [vmem:[%s975 + $0x91] sm:$0xff]
        %v2569 = vld [vmem:[%s975 + $0x99] sm:$0xff]
        %v2570 = vld [vmem:[%s975 + $0xa9] sm:$0xff]
        %v2571 = vld [vmem:[%s975 + $0xb1] sm:$0xff]
        %v2572 = vld [vmem:[%s975 + $0xc1] sm:$0xff]
        %v2573 = vld [vmem:[%s975 + $0xc9] sm:$0xff]
        %v2574 = vld [vmem:[%s975 + $0xd9] sm:$0xff]
        %v2575 = vld [vmem:[%s975 + $0xe1] sm:$0xff]
        %v2576 = vld [vmem:[%s975 + $0xf1] sm:$0xff]
        %v2577 = vld [vmem:[%s975 + $0xf9] sm:$0xff]
        %v2578 = vld [vmem:[%s975 + $0x109] sm:$0xff]
        %v2579 = vld [vmem:[%s975 + $0x111] sm:$0xff]
        %v2580 = vld [vmem:[%s975 + $0x121] sm:$0xff]
        %v2581 = vld [vmem:[%s975 + $0x129] sm:$0xff]
        %v2582 = vld [vmem:[%s975 + $0x139] sm:$0xff]
        %v2583 = vld [vmem:[%s975 + $0x141] sm:$0xff]
        %v2584 = vld [vmem:[%s975 + $0x151] sm:$0xff]
        %v2585 = vld [vmem:[%s975 + $0x159] sm:$0xff]
        %v2586 = vld [vmem:[%s975 + $0x169] sm:$0xff]
        %v2587 = vld [vmem:[%s975 + $0x171] sm:$0xff]
        %v2589 = vsel %vm919, %v2556, 0
        %v2592 = vsel %vm919, %v2557, 0
        %v2595 = vsel %vm919, %v2558, 0
        %v2598 = vsel %vm919, %v2559, 0
        %v2601 = vsel %vm919, %v2560, 0
        %v2604 = vsel %vm919, %v2561, 0
        %v2607 = vsel %vm919, %v2562, 0
        %v2610 = vsel %vm919, %v2563, 0
        %v2613 = vsel %vm919, %v2564, 0
        %v2616 = vsel %vm919, %v2565, 0
        %v2619 = vsel %vm919, %v2566, 0
        %v2622 = vsel %vm919, %v2567, 0
        %v2625 = vsel %vm919, %v2568, 0
        %v2628 = vsel %vm919, %v2569, 0
        %v2631 = vsel %vm919, %v2570, 0
        %v2634 = vsel %vm919, %v2571, 0
        %v2637 = vsel %vm919, %v2572, 0
        %v2640 = vsel %vm919, %v2573, 0
        %v2643 = vsel %vm919, %v2574, 0
        %v2646 = vsel %vm919, %v2575, 0
        %v2649 = vsel %vm919, %v2576, 0
        %v2652 = vsel %vm919, %v2577, 0
        %v2655 = vsel %vm919, %v2578, 0
        %v2658 = vsel %vm919, %v2579, 0
        %v2661 = vsel %vm919, %v2580, 0
        %v2664 = vsel %vm919, %v2581, 0
        %v2667 = vsel %vm919, %v2582, 0
        %v2670 = vsel %vm919, %v2583, 0
        %v2673 = vsel %vm919, %v2584, 0
        %v2676 = vsel %vm919, %v2585, 0
        %v2679 = vsel %vm919, %v2586, 0
        %v2682 = vsel %vm919, %v2587, 0
        %2684 = vmatprep.subr.mxu0 0.0
        %2685 = vmatpush1.msra.mxu0 0.0
        %2686 = vmatprep.subr.mxu0 0.0
        %2687 = vmatpush1.msra.mxu0 0.0
        %2688 = vmatprep.subr.mxu0 0.0
        %2689 = vmatpush1.msra.mxu0 0.0
        %2690 = vmatprep.subr.mxu0 0.0
        %2691 = vmatpush1.msra.mxu0 0.0
        %2692 = vmatprep.subr.mxu0 0.0
        %2693 = vmatpush1.msra.mxu0 0.0
        %2694 = vmatprep.subr.mxu0 0.0
        %2695 = vmatpush1.msra.mxu0 0.0
        %2696 = vmatprep.subr.mxu0 0.0
        %2697 = vmatpush1.msra.mxu0 0.0
        %2698 = vmatprep.subr.mxu0 0.0
        %2699 = vmatpush1.msra.mxu0 0.0
        %2700 = vmatprep.subr.mxu0 0.0
        %2701 = vmatpush1.msra.mxu0 %v1047
        %2702 = vmatprep.subr.mxu0 0.0
        %2703 = vmatpush1.msra.mxu0 %v1046
        %2704 = vmatprep.subr.mxu0 0.0
        %2705 = vmatpush1.msra.mxu0 %v1045
        %2706 = vmatprep.subr.mxu0 0.0
        %2707 = vmatpush1.msra.mxu0 %v1044
        %2708 = vmatprep.subr.mxu0 0.0
        %2709 = vmatpush1.msra.mxu0 %v1043
        %2710 = vmatprep.subr.mxu0 0.0
        %2711 = vmatpush1.msra.mxu0 %v1042
        %2712 = vmatprep.subr.mxu0 0.0
        %2713 = vmatpush1.msra.mxu0 %v1041
        %2714 = vmatprep.subr.mxu0 0.0
        %2715 = vmatpush1.msra.mxu0 %v1040
        %2716 = vmatprep.subr.mxu0 0.0
        %2717 = vmatpush2.msra.mxu0 0.0
        %2718 = vmatprep.subr.mxu0 0.0
        %2719 = vmatpush2.msra.mxu0 0.0
        %2720 = vmatprep.subr.mxu0 0.0
        %2721 = vmatpush2.msra.mxu0 0.0
        %2722 = vmatprep.subr.mxu0 0.0
        %2723 = vmatpush2.msra.mxu0 0.0
        %2724 = vmatprep.subr.mxu0 0.0
        %2725 = vmatpush2.msra.mxu0 0.0
        %2726 = vmatprep.subr.mxu0 0.0
        %2727 = vmatpush2.msra.mxu0 0.0
        %2728 = vmatprep.subr.mxu0 0.0
        %2729 = vmatpush2.msra.mxu0 0.0
        %2730 = vmatprep.subr.mxu0 0.0
        %2731 = vmatpush2.msra.mxu0 0.0
        %2732 = vmatprep.subr.mxu0 0.0
        %2733 = vmatpush2.msra.mxu0 0.0
        %2734 = vmatprep.subr.mxu0 0.0
        %2735 = vmatpush2.msra.mxu0 0.0
        %2736 = vmatprep.subr.mxu0 0.0
        %2737 = vmatpush2.msra.mxu0 0.0
        %2738 = vmatprep.subr.mxu0 0.0
        %2739 = vmatpush2.msra.mxu0 0.0
        %2740 = vmatprep.subr.mxu0 0.0
        %2741 = vmatpush2.msra.mxu0 0.0
        %2742 = vmatprep.subr.mxu0 0.0
        %2743 = vmatpush2.msra.mxu0 0.0
        %2744 = vmatprep.subr.mxu0 0.0
        %2745 = vmatpush2.msra.mxu0 0.0
        %2746 = vmatprep.subr.mxu0 0.0
        %2747 = vmatpush2.msra.mxu0 0.0
        %2748 = vmatprep.mubr.f32.mxu0 0.0
        %2749 = vmatmul.mubr.f32.gmra.mxu0 %v2589
        %v2750 = vpop.f32.mrf.mxu0
        %v2751 = vadd.f32 0.0, %v2750
        %v2752 = vpop.f32.mrf.mxu0
        %2753 = vmatprep.mubr.f32.mxu0 0.0
        %2754 = vmatmul.mubr.f32.gmra.mxu0 %v2592
        %v2755 = vpop.f32.mrf.mxu0
        %v2756 = vadd.f32 0.0, %v2755
        %v2757 = vpop.f32.mrf.mxu0
        %2758 = vmatprep.mubr.f32.mxu0 0.0
        %2759 = vmatmul.mubr.f32.gmra.mxu0 %v2595
        %v2760 = vpop.f32.mrf.mxu0
        %v2761 = vadd.f32 0.0, %v2760
        %v2762 = vpop.f32.mrf.mxu0
        %2763 = vmatprep.mubr.f32.mxu0 0.0
        %2764 = vmatmul.mubr.f32.gmra.mxu0 %v2598
        %v2765 = vpop.f32.mrf.mxu0
        %v2766 = vadd.f32 0.0, %v2765
        %v2767 = vpop.f32.mrf.mxu0
        %2768 = vmatprep.mubr.f32.mxu0 0.0
        %2769 = vmatmul.mubr.f32.gmra.mxu0 %v2601
        %v2770 = vpop.f32.mrf.mxu0
        %v2771 = vadd.f32 0.0, %v2770
        %v2772 = vpop.f32.mrf.mxu0
        %2773 = vmatprep.mubr.f32.mxu0 0.0
        %2774 = vmatmul.mubr.f32.gmra.mxu0 %v2604
        %v2775 = vpop.f32.mrf.mxu0
        %v2776 = vadd.f32 0.0, %v2775
        %v2777 = vpop.f32.mrf.mxu0
        %2778 = vmatprep.mubr.f32.mxu0 0.0
        %2779 = vmatmul.mubr.f32.gmra.mxu0 %v2607
        %v2780 = vpop.f32.mrf.mxu0
        %v2781 = vadd.f32 0.0, %v2780
        %v2782 = vpop.f32.mrf.mxu0
        %2783 = vmatprep.mubr.f32.mxu0 0.0
        %2784 = vmatmul.mubr.f32.gmra.mxu0 %v2610
        %v2785 = vpop.f32.mrf.mxu0
        %v2786 = vadd.f32 0.0, %v2785
        %v2787 = vpop.f32.mrf.mxu0
        %2788 = vmatprep.mubr.f32.mxu0 0.0
        %2789 = vmatmul.mubr.f32.gmra.mxu0 %v2613
        %v2790 = vpop.f32.mrf.mxu0
        %v2791 = vadd.f32 0.0, %v2790
        %v2792 = vpop.f32.mrf.mxu0
        %2793 = vmatprep.mubr.f32.mxu0 0.0
        %2794 = vmatmul.mubr.f32.gmra.mxu0 %v2616
        %v2795 = vpop.f32.mrf.mxu0
        %v2796 = vadd.f32 0.0, %v2795
        %v2797 = vpop.f32.mrf.mxu0
        %2798 = vmatprep.mubr.f32.mxu0 0.0
        %2799 = vmatmul.mubr.f32.gmra.mxu0 %v2619
        %v2800 = vpop.f32.mrf.mxu0
        %v2801 = vadd.f32 0.0, %v2800
        %v2802 = vpop.f32.mrf.mxu0
        %2803 = vmatprep.mubr.f32.mxu0 0.0
        %2804 = vmatmul.mubr.f32.gmra.mxu0 %v2622
        %v2805 = vpop.f32.mrf.mxu0
        %v2806 = vadd.f32 0.0, %v2805
        %v2807 = vpop.f32.mrf.mxu0
        %2808 = vmatprep.mubr.f32.mxu0 0.0
        %2809 = vmatmul.mubr.f32.gmra.mxu0 %v2625
        %v2810 = vpop.f32.mrf.mxu0
        %v2811 = vadd.f32 0.0, %v2810
        %v2812 = vpop.f32.mrf.mxu0
        %2813 = vmatprep.mubr.f32.mxu0 0.0
        %2814 = vmatmul.mubr.f32.gmra.mxu0 %v2628
        %v2815 = vpop.f32.mrf.mxu0
        %v2816 = vadd.f32 0.0, %v2815
        %v2817 = vpop.f32.mrf.mxu0
        %2818 = vmatprep.mubr.f32.mxu0 0.0
        %2819 = vmatmul.mubr.f32.gmra.mxu0 %v2631
        %v2820 = vpop.f32.mrf.mxu0
        %v2821 = vadd.f32 0.0, %v2820
        %v2822 = vpop.f32.mrf.mxu0
        %2823 = vmatprep.mubr.f32.mxu0 0.0
        %2824 = vmatmul.mubr.f32.gmra.mxu0 %v2634
        %v2825 = vpop.f32.mrf.mxu0
        %v2826 = vadd.f32 0.0, %v2825
        %v2827 = vpop.f32.mrf.mxu0
        %2828 = vmatprep.mubr.f32.mxu0 0.0
        %2829 = vmatmul.mubr.f32.gmra.mxu0 %v2637
        %v2830 = vpop.f32.mrf.mxu0
        %v2831 = vadd.f32 0.0, %v2830
        %v2832 = vpop.f32.mrf.mxu0
        %2833 = vmatprep.mubr.f32.mxu0 0.0
        %2834 = vmatmul.mubr.f32.gmra.mxu0 %v2640
        %v2835 = vpop.f32.mrf.mxu0
        %v2836 = vadd.f32 0.0, %v2835
        %v2837 = vpop.f32.mrf.mxu0
        %2838 = vmatprep.mubr.f32.mxu0 0.0
        %2839 = vmatmul.mubr.f32.gmra.mxu0 %v2643
        %v2840 = vpop.f32.mrf.mxu0
        %v2841 = vadd.f32 0.0, %v2840
        %v2842 = vpop.f32.mrf.mxu0
        %2843 = vmatprep.mubr.f32.mxu0 0.0
        %2844 = vmatmul.mubr.f32.gmra.mxu0 %v2646
        %v2845 = vpop.f32.mrf.mxu0
        %v2846 = vadd.f32 0.0, %v2845
        %v2847 = vpop.f32.mrf.mxu0
        %2848 = vmatprep.mubr.f32.mxu0 0.0
        %2849 = vmatmul.mubr.f32.gmra.mxu0 %v2649
        %v2850 = vpop.f32.mrf.mxu0
        %v2851 = vadd.f32 0.0, %v2850
        %v2852 = vpop.f32.mrf.mxu0
        %2853 = vmatprep.mubr.f32.mxu0 0.0
        %2854 = vmatmul.mubr.f32.gmra.mxu0 %v2652
        %v2855 = vpop.f32.mrf.mxu0
        %v2856 = vadd.f32 0.0, %v2855
        %v2857 = vpop.f32.mrf.mxu0
        %2858 = vmatprep.mubr.f32.mxu0 0.0
        %2859 = vmatmul.mubr.f32.gmra.mxu0 %v2655
        %v2860 = vpop.f32.mrf.mxu0
        %v2861 = vadd.f32 0.0, %v2860
        %v2862 = vpop.f32.mrf.mxu0
        %2863 = vmatprep.mubr.f32.mxu0 0.0
        %2864 = vmatmul.mubr.f32.gmra.mxu0 %v2658
        %v2865 = vpop.f32.mrf.mxu0
        %v2866 = vadd.f32 0.0, %v2865
        %v2867 = vpop.f32.mrf.mxu0
        %2868 = vmatprep.mubr.f32.mxu0 0.0
        %2869 = vmatmul.mubr.f32.gmra.mxu0 %v2661
        %v2870 = vpop.f32.mrf.mxu0
        %v2871 = vadd.f32 0.0, %v2870
        %v2872 = vpop.f32.mrf.mxu0
        %2873 = vmatprep.mubr.f32.mxu0 0.0
        %2874 = vmatmul.mubr.f32.gmra.mxu0 %v2664
        %v2875 = vpop.f32.mrf.mxu0
        %v2876 = vadd.f32 0.0, %v2875
        %v2877 = vpop.f32.mrf.mxu0
        %2878 = vmatprep.mubr.f32.mxu0 0.0
        %2879 = vmatmul.mubr.f32.gmra.mxu0 %v2667
        %v2880 = vpop.f32.mrf.mxu0
        %v2881 = vadd.f32 0.0, %v2880
        %v2882 = vpop.f32.mrf.mxu0
        %2883 = vmatprep.mubr.f32.mxu0 0.0
        %2884 = vmatmul.mubr.f32.gmra.mxu0 %v2670
        %v2885 = vpop.f32.mrf.mxu0
        %v2886 = vadd.f32 0.0, %v2885
        %v2887 = vpop.f32.mrf.mxu0
        %2888 = vmatprep.mubr.f32.mxu0 0.0
        %2889 = vmatmul.mubr.f32.gmra.mxu0 %v2673
        %v2890 = vpop.f32.mrf.mxu0
        %v2891 = vadd.f32 0.0, %v2890
        %v2892 = vpop.f32.mrf.mxu0
        %2893 = vmatprep.mubr.f32.mxu0 0.0
        %2894 = vmatmul.mubr.f32.gmra.mxu0 %v2676
        %v2895 = vpop.f32.mrf.mxu0
        %v2896 = vadd.f32 0.0, %v2895
        %v2897 = vpop.f32.mrf.mxu0
        %2898 = vmatprep.mubr.f32.mxu0 0.0
        %2899 = vmatmul.mubr.f32.gmra.mxu0 %v2679
        %v2900 = vpop.f32.mrf.mxu0
        %v2901 = vadd.f32 0.0, %v2900
        %v2902 = vpop.f32.mrf.mxu0
        %2903 = vmatprep.mubr.f32.mxu0 0.0
        %2904 = vmatmul.mubr.f32.gmra.mxu0 %v2682
        %v2905 = vpop.f32.mrf.mxu0
        %v2906 = vadd.f32 0.0, %v2905
        %v2907 = vpop.f32.mrf.mxu0
        %2908 = vdwg.mxu0
        %v2909 = vadd.f32 %v2524, %v2751
        %v2910 = vadd.f32 %v2525, %v2756
        %v2911 = vadd.f32 %v2526, %v2761
        %v2912 = vadd.f32 %v2527, %v2766
        %v2913 = vadd.f32 %v2528, %v2771
        %v2914 = vadd.f32 %v2529, %v2776
        %v2915 = vadd.f32 %v2530, %v2781
        %v2916 = vadd.f32 %v2531, %v2786
        %v2917 = vadd.f32 %v2532, %v2791
        %v2918 = vadd.f32 %v2533, %v2796
        %v2919 = vadd.f32 %v2534, %v2801
        %v2920 = vadd.f32 %v2535, %v2806
        %v2921 = vadd.f32 %v2536, %v2811
        %v2922 = vadd.f32 %v2537, %v2816
        %v2923 = vadd.f32 %v2538, %v2821
        %v2924 = vadd.f32 %v2539, %v2826
        %v2925 = vadd.f32 %v2540, %v2831
        %v2926 = vadd.f32 %v2541, %v2836
        %v2927 = vadd.f32 %v2542, %v2841
        %v2928 = vadd.f32 %v2543, %v2846
        %v2929 = vadd.f32 %v2544, %v2851
        %v2930 = vadd.f32 %v2545, %v2856
        %v2931 = vadd.f32 %v2546, %v2861
        %v2932 = vadd.f32 %v2547, %v2866
        %v2933 = vadd.f32 %v2548, %v2871
        %v2934 = vadd.f32 %v2549, %v2876
        %v2935 = vadd.f32 %v2550, %v2881
        %v2936 = vadd.f32 %v2551, %v2886
        %v2937 = vadd.f32 %v2552, %v2891
        %v2938 = vadd.f32 %v2553, %v2896
        %v2939 = vadd.f32 %v2554, %v2901
        %v2940 = vadd.f32 %v2555, %v2906
        %v2941 = vld [vmem:[%s975 + $0x2] sm:$0xff]
        %v2942 = vld [vmem:[%s975 + $0xa] sm:$0xff]
        %v2943 = vld [vmem:[%s975 + $0x1a] sm:$0xff]
        %v2944 = vld [vmem:[%s975 + $0x22] sm:$0xff]
        %v2945 = vld [vmem:[%s975 + $0x32] sm:$0xff]
        %v2946 = vld [vmem:[%s975 + $0x3a] sm:$0xff]
        %v2947 = vld [vmem:[%s975 + $0x4a] sm:$0xff]
        %v2948 = vld [vmem:[%s975 + $0x52] sm:$0xff]
        %v2949 = vld [vmem:[%s975 + $0x62] sm:$0xff]
        %v2950 = vld [vmem:[%s975 + $0x6a] sm:$0xff]
        %v2951 = vld [vmem:[%s975 + $0x7a] sm:$0xff]
        %v2952 = vld [vmem:[%s975 + $0x82] sm:$0xff]
        %v2953 = vld [vmem:[%s975 + $0x92] sm:$0xff]
        %v2954 = vld [vmem:[%s975 + $0x9a] sm:$0xff]
        %v2955 = vld [vmem:[%s975 + $0xaa] sm:$0xff]
        %v2956 = vld [vmem:[%s975 + $0xb2] sm:$0xff]
        %v2957 = vld [vmem:[%s975 + $0xc2] sm:$0xff]
        %v2958 = vld [vmem:[%s975 + $0xca] sm:$0xff]
        %v2959 = vld [vmem:[%s975 + $0xda] sm:$0xff]
        %v2960 = vld [vmem:[%s975 + $0xe2] sm:$0xff]
        %v2961 = vld [vmem:[%s975 + $0xf2] sm:$0xff]
        %v2962 = vld [vmem:[%s975 + $0xfa] sm:$0xff]
        %v2963 = vld [vmem:[%s975 + $0x10a] sm:$0xff]
        %v2964 = vld [vmem:[%s975 + $0x112] sm:$0xff]
        %v2965 = vld [vmem:[%s975 + $0x122] sm:$0xff]
        %v2966 = vld [vmem:[%s975 + $0x12a] sm:$0xff]
        %v2967 = vld [vmem:[%s975 + $0x13a] sm:$0xff]
        %v2968 = vld [vmem:[%s975 + $0x142] sm:$0xff]
        %v2969 = vld [vmem:[%s975 + $0x152] sm:$0xff]
        %v2970 = vld [vmem:[%s975 + $0x15a] sm:$0xff]
        %v2971 = vld [vmem:[%s975 + $0x16a] sm:$0xff]
        %v2972 = vld [vmem:[%s975 + $0x172] sm:$0xff]
        %v2974 = vsel %vm919, %v2941, 0
        %v2977 = vsel %vm919, %v2942, 0
        %v2980 = vsel %vm919, %v2943, 0
        %v2983 = vsel %vm919, %v2944, 0
        %v2986 = vsel %vm919, %v2945, 0
        %v2989 = vsel %vm919, %v2946, 0
        %v2992 = vsel %vm919, %v2947, 0
        %v2995 = vsel %vm919, %v2948, 0
        %v2998 = vsel %vm919, %v2949, 0
        %v3001 = vsel %vm919, %v2950, 0
        %v3004 = vsel %vm919, %v2951, 0
        %v3007 = vsel %vm919, %v2952, 0
        %v3010 = vsel %vm919, %v2953, 0
        %v3013 = vsel %vm919, %v2954, 0
        %v3016 = vsel %vm919, %v2955, 0
        %v3019 = vsel %vm919, %v2956, 0
        %v3022 = vsel %vm919, %v2957, 0
        %v3025 = vsel %vm919, %v2958, 0
        %v3028 = vsel %vm919, %v2959, 0
        %v3031 = vsel %vm919, %v2960, 0
        %v3034 = vsel %vm919, %v2961, 0
        %v3037 = vsel %vm919, %v2962, 0
        %v3040 = vsel %vm919, %v2963, 0
        %v3043 = vsel %vm919, %v2964, 0
        %v3046 = vsel %vm919, %v2965, 0
        %v3049 = vsel %vm919, %v2966, 0
        %v3052 = vsel %vm919, %v2967, 0
        %v3055 = vsel %vm919, %v2968, 0
        %v3058 = vsel %vm919, %v2969, 0
        %v3061 = vsel %vm919, %v2970, 0
        %v3064 = vsel %vm919, %v2971, 0
        %v3067 = vsel %vm919, %v2972, 0
        %3069 = vmatprep.subr.mxu0 0.0
        %3070 = vmatpush1.msra.mxu0 0.0
        %3071 = vmatprep.subr.mxu0 0.0
        %3072 = vmatpush1.msra.mxu0 0.0
        %3073 = vmatprep.subr.mxu0 0.0
        %3074 = vmatpush1.msra.mxu0 0.0
        %3075 = vmatprep.subr.mxu0 0.0
        %3076 = vmatpush1.msra.mxu0 0.0
        %3077 = vmatprep.subr.mxu0 0.0
        %3078 = vmatpush1.msra.mxu0 0.0
        %3079 = vmatprep.subr.mxu0 0.0
        %3080 = vmatpush1.msra.mxu0 0.0
        %3081 = vmatprep.subr.mxu0 0.0
        %3082 = vmatpush1.msra.mxu0 0.0
        %3083 = vmatprep.subr.mxu0 0.0
        %3084 = vmatpush1.msra.mxu0 0.0
        %3085 = vmatprep.subr.mxu0 0.0
        %3086 = vmatpush1.msra.mxu0 %v1055
        %3087 = vmatprep.subr.mxu0 0.0
        %3088 = vmatpush1.msra.mxu0 %v1054
        %3089 = vmatprep.subr.mxu0 0.0
        %3090 = vmatpush1.msra.mxu0 %v1053
        %3091 = vmatprep.subr.mxu0 0.0
        %3092 = vmatpush1.msra.mxu0 %v1052
        %3093 = vmatprep.subr.mxu0 0.0
        %3094 = vmatpush1.msra.mxu0 %v1051
        %3095 = vmatprep.subr.mxu0 0.0
        %3096 = vmatpush1.msra.mxu0 %v1050
        %3097 = vmatprep.subr.mxu0 0.0
        %3098 = vmatpush1.msra.mxu0 %v1049
        %3099 = vmatprep.subr.mxu0 0.0
        %3100 = vmatpush1.msra.mxu0 %v1048
        %3101 = vmatprep.subr.mxu0 0.0
        %3102 = vmatpush2.msra.mxu0 0.0
        %3103 = vmatprep.subr.mxu0 0.0
        %3104 = vmatpush2.msra.mxu0 0.0
        %3105 = vmatprep.subr.mxu0 0.0
        %3106 = vmatpush2.msra.mxu0 0.0
        %3107 = vmatprep.subr.mxu0 0.0
        %3108 = vmatpush2.msra.mxu0 0.0
        %3109 = vmatprep.subr.mxu0 0.0
        %3110 = vmatpush2.msra.mxu0 0.0
        %3111 = vmatprep.subr.mxu0 0.0
        %3112 = vmatpush2.msra.mxu0 0.0
        %3113 = vmatprep.subr.mxu0 0.0
        %3114 = vmatpush2.msra.mxu0 0.0
        %3115 = vmatprep.subr.mxu0 0.0
        %3116 = vmatpush2.msra.mxu0 0.0
        %3117 = vmatprep.subr.mxu0 0.0
        %3118 = vmatpush2.msra.mxu0 0.0
        %3119 = vmatprep.subr.mxu0 0.0
        %3120 = vmatpush2.msra.mxu0 0.0
        %3121 = vmatprep.subr.mxu0 0.0
        %3122 = vmatpush2.msra.mxu0 0.0
        %3123 = vmatprep.subr.mxu0 0.0
        %3124 = vmatpush2.msra.mxu0 0.0
        %3125 = vmatprep.subr.mxu0 0.0
        %3126 = vmatpush2.msra.mxu0 0.0
        %3127 = vmatprep.subr.mxu0 0.0
        %3128 = vmatpush2.msra.mxu0 0.0
        %3129 = vmatprep.subr.mxu0 0.0
        %3130 = vmatpush2.msra.mxu0 0.0
        %3131 = vmatprep.subr.mxu0 0.0
        %3132 = vmatpush2.msra.mxu0 0.0
        %3133 = vmatprep.mubr.f32.mxu0 0.0
        %3134 = vmatmul.mubr.f32.gmra.mxu0 %v2974
        %v3135 = vpop.f32.mrf.mxu0
        %v3136 = vadd.f32 0.0, %v3135
        %v3137 = vpop.f32.mrf.mxu0
        %3138 = vmatprep.mubr.f32.mxu0 0.0
        %3139 = vmatmul.mubr.f32.gmra.mxu0 %v2977
        %v3140 = vpop.f32.mrf.mxu0
        %v3141 = vadd.f32 0.0, %v3140
        %v3142 = vpop.f32.mrf.mxu0
        %3143 = vmatprep.mubr.f32.mxu0 0.0
        %3144 = vmatmul.mubr.f32.gmra.mxu0 %v2980
        %v3145 = vpop.f32.mrf.mxu0
        %v3146 = vadd.f32 0.0, %v3145
        %v3147 = vpop.f32.mrf.mxu0
        %3148 = vmatprep.mubr.f32.mxu0 0.0
        %3149 = vmatmul.mubr.f32.gmra.mxu0 %v2983
        %v3150 = vpop.f32.mrf.mxu0
        %v3151 = vadd.f32 0.0, %v3150
        %v3152 = vpop.f32.mrf.mxu0
        %3153 = vmatprep.mubr.f32.mxu0 0.0
        %3154 = vmatmul.mubr.f32.gmra.mxu0 %v2986
        %v3155 = vpop.f32.mrf.mxu0
        %v3156 = vadd.f32 0.0, %v3155
        %v3157 = vpop.f32.mrf.mxu0
        %3158 = vmatprep.mubr.f32.mxu0 0.0
        %3159 = vmatmul.mubr.f32.gmra.mxu0 %v2989
        %v3160 = vpop.f32.mrf.mxu0
        %v3161 = vadd.f32 0.0, %v3160
        %v3162 = vpop.f32.mrf.mxu0
        %3163 = vmatprep.mubr.f32.mxu0 0.0
        %3164 = vmatmul.mubr.f32.gmra.mxu0 %v2992
        %v3165 = vpop.f32.mrf.mxu0
        %v3166 = vadd.f32 0.0, %v3165
        %v3167 = vpop.f32.mrf.mxu0
        %3168 = vmatprep.mubr.f32.mxu0 0.0
        %3169 = vmatmul.mubr.f32.gmra.mxu0 %v2995
        %v3170 = vpop.f32.mrf.mxu0
        %v3171 = vadd.f32 0.0, %v3170
        %v3172 = vpop.f32.mrf.mxu0
        %3173 = vmatprep.mubr.f32.mxu0 0.0
        %3174 = vmatmul.mubr.f32.gmra.mxu0 %v2998
        %v3175 = vpop.f32.mrf.mxu0
        %v3176 = vadd.f32 0.0, %v3175
        %v3177 = vpop.f32.mrf.mxu0
        %3178 = vmatprep.mubr.f32.mxu0 0.0
        %3179 = vmatmul.mubr.f32.gmra.mxu0 %v3001
        %v3180 = vpop.f32.mrf.mxu0
        %v3181 = vadd.f32 0.0, %v3180
        %v3182 = vpop.f32.mrf.mxu0
        %3183 = vmatprep.mubr.f32.mxu0 0.0
        %3184 = vmatmul.mubr.f32.gmra.mxu0 %v3004
        %v3185 = vpop.f32.mrf.mxu0
        %v3186 = vadd.f32 0.0, %v3185
        %v3187 = vpop.f32.mrf.mxu0
        %3188 = vmatprep.mubr.f32.mxu0 0.0
        %3189 = vmatmul.mubr.f32.gmra.mxu0 %v3007
        %v3190 = vpop.f32.mrf.mxu0
        %v3191 = vadd.f32 0.0, %v3190
        %v3192 = vpop.f32.mrf.mxu0
        %3193 = vmatprep.mubr.f32.mxu0 0.0
        %3194 = vmatmul.mubr.f32.gmra.mxu0 %v3010
        %v3195 = vpop.f32.mrf.mxu0
        %v3196 = vadd.f32 0.0, %v3195
        %v3197 = vpop.f32.mrf.mxu0
        %3198 = vmatprep.mubr.f32.mxu0 0.0
        %3199 = vmatmul.mubr.f32.gmra.mxu0 %v3013
        %v3200 = vpop.f32.mrf.mxu0
        %v3201 = vadd.f32 0.0, %v3200
        %v3202 = vpop.f32.mrf.mxu0
        %3203 = vmatprep.mubr.f32.mxu0 0.0
        %3204 = vmatmul.mubr.f32.gmra.mxu0 %v3016
        %v3205 = vpop.f32.mrf.mxu0
        %v3206 = vadd.f32 0.0, %v3205
        %v3207 = vpop.f32.mrf.mxu0
        %3208 = vmatprep.mubr.f32.mxu0 0.0
        %3209 = vmatmul.mubr.f32.gmra.mxu0 %v3019
        %v3210 = vpop.f32.mrf.mxu0
        %v3211 = vadd.f32 0.0, %v3210
        %v3212 = vpop.f32.mrf.mxu0
        %3213 = vmatprep.mubr.f32.mxu0 0.0
        %3214 = vmatmul.mubr.f32.gmra.mxu0 %v3022
        %v3215 = vpop.f32.mrf.mxu0
        %v3216 = vadd.f32 0.0, %v3215
        %v3217 = vpop.f32.mrf.mxu0
        %3218 = vmatprep.mubr.f32.mxu0 0.0
        %3219 = vmatmul.mubr.f32.gmra.mxu0 %v3025
        %v3220 = vpop.f32.mrf.mxu0
        %v3221 = vadd.f32 0.0, %v3220
        %v3222 = vpop.f32.mrf.mxu0
        %3223 = vmatprep.mubr.f32.mxu0 0.0
        %3224 = vmatmul.mubr.f32.gmra.mxu0 %v3028
        %v3225 = vpop.f32.mrf.mxu0
        %v3226 = vadd.f32 0.0, %v3225
        %v3227 = vpop.f32.mrf.mxu0
        %3228 = vmatprep.mubr.f32.mxu0 0.0
        %3229 = vmatmul.mubr.f32.gmra.mxu0 %v3031
        %v3230 = vpop.f32.mrf.mxu0
        %v3231 = vadd.f32 0.0, %v3230
        %v3232 = vpop.f32.mrf.mxu0
        %3233 = vmatprep.mubr.f32.mxu0 0.0
        %3234 = vmatmul.mubr.f32.gmra.mxu0 %v3034
        %v3235 = vpop.f32.mrf.mxu0
        %v3236 = vadd.f32 0.0, %v3235
        %v3237 = vpop.f32.mrf.mxu0
        %3238 = vmatprep.mubr.f32.mxu0 0.0
        %3239 = vmatmul.mubr.f32.gmra.mxu0 %v3037
        %v3240 = vpop.f32.mrf.mxu0
        %v3241 = vadd.f32 0.0, %v3240
        %v3242 = vpop.f32.mrf.mxu0
        %3243 = vmatprep.mubr.f32.mxu0 0.0
        %3244 = vmatmul.mubr.f32.gmra.mxu0 %v3040
        %v3245 = vpop.f32.mrf.mxu0
        %v3246 = vadd.f32 0.0, %v3245
        %v3247 = vpop.f32.mrf.mxu0
        %3248 = vmatprep.mubr.f32.mxu0 0.0
        %3249 = vmatmul.mubr.f32.gmra.mxu0 %v3043
        %v3250 = vpop.f32.mrf.mxu0
        %v3251 = vadd.f32 0.0, %v3250
        %v3252 = vpop.f32.mrf.mxu0
        %3253 = vmatprep.mubr.f32.mxu0 0.0
        %3254 = vmatmul.mubr.f32.gmra.mxu0 %v3046
        %v3255 = vpop.f32.mrf.mxu0
        %v3256 = vadd.f32 0.0, %v3255
        %v3257 = vpop.f32.mrf.mxu0
        %3258 = vmatprep.mubr.f32.mxu0 0.0
        %3259 = vmatmul.mubr.f32.gmra.mxu0 %v3049
        %v3260 = vpop.f32.mrf.mxu0
        %v3261 = vadd.f32 0.0, %v3260
        %v3262 = vpop.f32.mrf.mxu0
        %3263 = vmatprep.mubr.f32.mxu0 0.0
        %3264 = vmatmul.mubr.f32.gmra.mxu0 %v3052
        %v3265 = vpop.f32.mrf.mxu0
        %v3266 = vadd.f32 0.0, %v3265
        %v3267 = vpop.f32.mrf.mxu0
        %3268 = vmatprep.mubr.f32.mxu0 0.0
        %3269 = vmatmul.mubr.f32.gmra.mxu0 %v3055
        %v3270 = vpop.f32.mrf.mxu0
        %v3271 = vadd.f32 0.0, %v3270
        %v3272 = vpop.f32.mrf.mxu0
        %3273 = vmatprep.mubr.f32.mxu0 0.0
        %3274 = vmatmul.mubr.f32.gmra.mxu0 %v3058
        %v3275 = vpop.f32.mrf.mxu0
        %v3276 = vadd.f32 0.0, %v3275
        %v3277 = vpop.f32.mrf.mxu0
        %3278 = vmatprep.mubr.f32.mxu0 0.0
        %3279 = vmatmul.mubr.f32.gmra.mxu0 %v3061
        %v3280 = vpop.f32.mrf.mxu0
        %v3281 = vadd.f32 0.0, %v3280
        %v3282 = vpop.f32.mrf.mxu0
        %3283 = vmatprep.mubr.f32.mxu0 0.0
        %3284 = vmatmul.mubr.f32.gmra.mxu0 %v3064
        %v3285 = vpop.f32.mrf.mxu0
        %v3286 = vadd.f32 0.0, %v3285
        %v3287 = vpop.f32.mrf.mxu0
        %3288 = vmatprep.mubr.f32.mxu0 0.0
        %3289 = vmatmul.mubr.f32.gmra.mxu0 %v3067
        %v3290 = vpop.f32.mrf.mxu0
        %v3291 = vadd.f32 0.0, %v3290
        %v3292 = vpop.f32.mrf.mxu0
        %3293 = vdwg.mxu0
        %v3294 = vadd.f32 %v2909, %v3136
        %v3295 = vadd.f32 %v2910, %v3141
        %v3296 = vadd.f32 %v2911, %v3146
        %v3297 = vadd.f32 %v2912, %v3151
        %v3298 = vadd.f32 %v2913, %v3156
        %v3299 = vadd.f32 %v2914, %v3161
        %v3300 = vadd.f32 %v2915, %v3166
        %v3301 = vadd.f32 %v2916, %v3171
        %v3302 = vadd.f32 %v2917, %v3176
        %v3303 = vadd.f32 %v2918, %v3181
        %v3304 = vadd.f32 %v2919, %v3186
        %v3305 = vadd.f32 %v2920, %v3191
        %v3306 = vadd.f32 %v2921, %v3196
        %v3307 = vadd.f32 %v2922, %v3201
        %v3308 = vadd.f32 %v2923, %v3206
        %v3309 = vadd.f32 %v2924, %v3211
        %v3310 = vadd.f32 %v2925, %v3216
        %v3311 = vadd.f32 %v2926, %v3221
        %v3312 = vadd.f32 %v2927, %v3226
        %v3313 = vadd.f32 %v2928, %v3231
        %v3314 = vadd.f32 %v2929, %v3236
        %v3315 = vadd.f32 %v2930, %v3241
        %v3316 = vadd.f32 %v2931, %v3246
        %v3317 = vadd.f32 %v2932, %v3251
        %v3318 = vadd.f32 %v2933, %v3256
        %v3319 = vadd.f32 %v2934, %v3261
        %v3320 = vadd.f32 %v2935, %v3266
        %v3321 = vadd.f32 %v2936, %v3271
        %v3322 = vadd.f32 %v2937, %v3276
        %v3323 = vadd.f32 %v2938, %v3281
        %v3324 = vadd.f32 %v2939, %v3286
        %v3325 = vadd.f32 %v2940, %v3291
        %s3326 = scalar_lea.vmem [#allocation2], 48
        %v3327 = vld [vmem:[%s3326] sm:$0xff]
        %v3328 = vld [vmem:[%s3326 + $0x8] sm:$0xff]
        %v3329 = vld [vmem:[%s3326 + $0x18] sm:$0xff]
        %v3330 = vld [vmem:[%s3326 + $0x20] sm:$0xff]
        %v3331 = vld [vmem:[%s3326 + $0x30] sm:$0xff]
        %v3332 = vld [vmem:[%s3326 + $0x38] sm:$0xff]
        %v3333 = vld [vmem:[%s3326 + $0x48] sm:$0xff]
        %v3334 = vld [vmem:[%s3326 + $0x50] sm:$0xff]
        %v3335 = vld [vmem:[%s3326 + $0x60] sm:$0xff]
        %v3336 = vld [vmem:[%s3326 + $0x68] sm:$0xff]
        %v3337 = vld [vmem:[%s3326 + $0x78] sm:$0xff]
        %v3338 = vld [vmem:[%s3326 + $0x80] sm:$0xff]
        %v3339 = vld [vmem:[%s3326 + $0x90] sm:$0xff]
        %v3340 = vld [vmem:[%s3326 + $0x98] sm:$0xff]
        %v3341 = vld [vmem:[%s3326 + $0xa8] sm:$0xff]
        %v3342 = vld [vmem:[%s3326 + $0xb0] sm:$0xff]
        %v3343 = vld [vmem:[%s3326 + $0xc0] sm:$0xff]
        %v3344 = vld [vmem:[%s3326 + $0xc8] sm:$0xff]
        %v3345 = vld [vmem:[%s3326 + $0xd8] sm:$0xff]
        %v3346 = vld [vmem:[%s3326 + $0xe0] sm:$0xff]
        %v3347 = vld [vmem:[%s3326 + $0xf0] sm:$0xff]
        %v3348 = vld [vmem:[%s3326 + $0xf8] sm:$0xff]
        %v3349 = vld [vmem:[%s3326 + $0x108] sm:$0xff]
        %v3350 = vld [vmem:[%s3326 + $0x110] sm:$0xff]
        %v3351 = vld [vmem:[%s3326 + $0x120] sm:$0xff]
        %v3352 = vld [vmem:[%s3326 + $0x128] sm:$0xff]
        %v3353 = vld [vmem:[%s3326 + $0x138] sm:$0xff]
        %v3354 = vld [vmem:[%s3326 + $0x140] sm:$0xff]
        %v3355 = vld [vmem:[%s3326 + $0x150] sm:$0xff]
        %v3356 = vld [vmem:[%s3326 + $0x158] sm:$0xff]
        %v3357 = vld [vmem:[%s3326 + $0x168] sm:$0xff]
        %v3358 = vld [vmem:[%s3326 + $0x170] sm:$0xff]
        %v3360 = vsel %vm919, %v3327, 0
        %v3363 = vsel %vm919, %v3328, 0
        %v3366 = vsel %vm919, %v3329, 0
        %v3369 = vsel %vm919, %v3330, 0
        %v3372 = vsel %vm919, %v3331, 0
        %v3375 = vsel %vm919, %v3332, 0
        %v3378 = vsel %vm919, %v3333, 0
        %v3381 = vsel %vm919, %v3334, 0
        %v3384 = vsel %vm919, %v3335, 0
        %v3387 = vsel %vm919, %v3336, 0
        %v3390 = vsel %vm919, %v3337, 0
        %v3393 = vsel %vm919, %v3338, 0
        %v3396 = vsel %vm919, %v3339, 0
        %v3399 = vsel %vm919, %v3340, 0
        %v3402 = vsel %vm919, %v3341, 0
        %v3405 = vsel %vm919, %v3342, 0
        %v3408 = vsel %vm919, %v3343, 0
        %v3411 = vsel %vm919, %v3344, 0
        %v3414 = vsel %vm919, %v3345, 0
        %v3417 = vsel %vm919, %v3346, 0
        %v3420 = vsel %vm919, %v3347, 0
        %v3423 = vsel %vm919, %v3348, 0
        %v3426 = vsel %vm919, %v3349, 0
        %v3429 = vsel %vm919, %v3350, 0
        %v3432 = vsel %vm919, %v3351, 0
        %v3435 = vsel %vm919, %v3352, 0
        %v3438 = vsel %vm919, %v3353, 0
        %v3441 = vsel %vm919, %v3354, 0
        %v3444 = vsel %vm919, %v3355, 0
        %v3447 = vsel %vm919, %v3356, 0
        %v3450 = vsel %vm919, %v3357, 0
        %v3453 = vsel %vm919, %v3358, 0
        %3455 = vmatprep.subr.mxu0 0.0
        %3456 = vmatpush1.msra.mxu0 0.0
        %3457 = vmatprep.subr.mxu0 0.0
        %3458 = vmatpush1.msra.mxu0 0.0
        %3459 = vmatprep.subr.mxu0 0.0
        %3460 = vmatpush1.msra.mxu0 0.0
        %3461 = vmatprep.subr.mxu0 0.0
        %3462 = vmatpush1.msra.mxu0 0.0
        %3463 = vmatprep.subr.mxu0 0.0
        %3464 = vmatpush1.msra.mxu0 0.0
        %3465 = vmatprep.subr.mxu0 0.0
        %3466 = vmatpush1.msra.mxu0 0.0
        %3467 = vmatprep.subr.mxu0 0.0
        %3468 = vmatpush1.msra.mxu0 0.0
        %3469 = vmatprep.subr.mxu0 0.0
        %3470 = vmatpush1.msra.mxu0 0.0
        %3471 = vmatprep.subr.mxu0 0.0
        %3472 = vmatpush1.msra.mxu0 %v1063
        %3473 = vmatprep.subr.mxu0 0.0
        %3474 = vmatpush1.msra.mxu0 %v1062
        %3475 = vmatprep.subr.mxu0 0.0
        %3476 = vmatpush1.msra.mxu0 %v1061
        %3477 = vmatprep.subr.mxu0 0.0
        %3478 = vmatpush1.msra.mxu0 %v1060
        %3479 = vmatprep.subr.mxu0 0.0
        %3480 = vmatpush1.msra.mxu0 %v1059
        %3481 = vmatprep.subr.mxu0 0.0
        %3482 = vmatpush1.msra.mxu0 %v1058
        %3483 = vmatprep.subr.mxu0 0.0
        %3484 = vmatpush1.msra.mxu0 %v1057
        %3485 = vmatprep.subr.mxu0 0.0
        %3486 = vmatpush1.msra.mxu0 %v1056
        %3487 = vmatprep.subr.mxu0 0.0
        %3488 = vmatpush2.msra.mxu0 0.0
        %3489 = vmatprep.subr.mxu0 0.0
        %3490 = vmatpush2.msra.mxu0 0.0
        %3491 = vmatprep.subr.mxu0 0.0
        %3492 = vmatpush2.msra.mxu0 0.0
        %3493 = vmatprep.subr.mxu0 0.0
        %3494 = vmatpush2.msra.mxu0 0.0
        %3495 = vmatprep.subr.mxu0 0.0
        %3496 = vmatpush2.msra.mxu0 0.0
        %3497 = vmatprep.subr.mxu0 0.0
        %3498 = vmatpush2.msra.mxu0 0.0
        %3499 = vmatprep.subr.mxu0 0.0
        %3500 = vmatpush2.msra.mxu0 0.0
        %3501 = vmatprep.subr.mxu0 0.0
        %3502 = vmatpush2.msra.mxu0 0.0
        %3503 = vmatprep.subr.mxu0 0.0
        %3504 = vmatpush2.msra.mxu0 0.0
        %3505 = vmatprep.subr.mxu0 0.0
        %3506 = vmatpush2.msra.mxu0 0.0
        %3507 = vmatprep.subr.mxu0 0.0
        %3508 = vmatpush2.msra.mxu0 0.0
        %3509 = vmatprep.subr.mxu0 0.0
        %3510 = vmatpush2.msra.mxu0 0.0
        %3511 = vmatprep.subr.mxu0 0.0
        %3512 = vmatpush2.msra.mxu0 0.0
        %3513 = vmatprep.subr.mxu0 0.0
        %3514 = vmatpush2.msra.mxu0 0.0
        %3515 = vmatprep.subr.mxu0 0.0
        %3516 = vmatpush2.msra.mxu0 0.0
        %3517 = vmatprep.subr.mxu0 0.0
        %3518 = vmatpush2.msra.mxu0 0.0
        %3519 = vmatprep.mubr.f32.mxu0 0.0
        %3520 = vmatmul.mubr.f32.gmra.mxu0 %v3360
        %v3521 = vpop.f32.mrf.mxu0
        %v3522 = vadd.f32 0.0, %v3521
        %v3523 = vpop.f32.mrf.mxu0
        %3524 = vmatprep.mubr.f32.mxu0 0.0
        %3525 = vmatmul.mubr.f32.gmra.mxu0 %v3363
        %v3526 = vpop.f32.mrf.mxu0
        %v3527 = vadd.f32 0.0, %v3526
        %v3528 = vpop.f32.mrf.mxu0
        %3529 = vmatprep.mubr.f32.mxu0 0.0
        %3530 = vmatmul.mubr.f32.gmra.mxu0 %v3366
        %v3531 = vpop.f32.mrf.mxu0
        %v3532 = vadd.f32 0.0, %v3531
        %v3533 = vpop.f32.mrf.mxu0
        %3534 = vmatprep.mubr.f32.mxu0 0.0
        %3535 = vmatmul.mubr.f32.gmra.mxu0 %v3369
        %v3536 = vpop.f32.mrf.mxu0
        %v3537 = vadd.f32 0.0, %v3536
        %v3538 = vpop.f32.mrf.mxu0
        %3539 = vmatprep.mubr.f32.mxu0 0.0
        %3540 = vmatmul.mubr.f32.gmra.mxu0 %v3372
        %v3541 = vpop.f32.mrf.mxu0
        %v3542 = vadd.f32 0.0, %v3541
        %v3543 = vpop.f32.mrf.mxu0
        %3544 = vmatprep.mubr.f32.mxu0 0.0
        %3545 = vmatmul.mubr.f32.gmra.mxu0 %v3375
        %v3546 = vpop.f32.mrf.mxu0
        %v3547 = vadd.f32 0.0, %v3546
        %v3548 = vpop.f32.mrf.mxu0
        %3549 = vmatprep.mubr.f32.mxu0 0.0
        %3550 = vmatmul.mubr.f32.gmra.mxu0 %v3378
        %v3551 = vpop.f32.mrf.mxu0
        %v3552 = vadd.f32 0.0, %v3551
        %v3553 = vpop.f32.mrf.mxu0
        %3554 = vmatprep.mubr.f32.mxu0 0.0
        %3555 = vmatmul.mubr.f32.gmra.mxu0 %v3381
        %v3556 = vpop.f32.mrf.mxu0
        %v3557 = vadd.f32 0.0, %v3556
        %v3558 = vpop.f32.mrf.mxu0
        %3559 = vmatprep.mubr.f32.mxu0 0.0
        %3560 = vmatmul.mubr.f32.gmra.mxu0 %v3384
        %v3561 = vpop.f32.mrf.mxu0
        %v3562 = vadd.f32 0.0, %v3561
        %v3563 = vpop.f32.mrf.mxu0
        %3564 = vmatprep.mubr.f32.mxu0 0.0
        %3565 = vmatmul.mubr.f32.gmra.mxu0 %v3387
        %v3566 = vpop.f32.mrf.mxu0
        %v3567 = vadd.f32 0.0, %v3566
        %v3568 = vpop.f32.mrf.mxu0
        %3569 = vmatprep.mubr.f32.mxu0 0.0
        %3570 = vmatmul.mubr.f32.gmra.mxu0 %v3390
        %v3571 = vpop.f32.mrf.mxu0
        %v3572 = vadd.f32 0.0, %v3571
        %v3573 = vpop.f32.mrf.mxu0
        %3574 = vmatprep.mubr.f32.mxu0 0.0
        %3575 = vmatmul.mubr.f32.gmra.mxu0 %v3393
        %v3576 = vpop.f32.mrf.mxu0
        %v3577 = vadd.f32 0.0, %v3576
        %v3578 = vpop.f32.mrf.mxu0
        %3579 = vmatprep.mubr.f32.mxu0 0.0
        %3580 = vmatmul.mubr.f32.gmra.mxu0 %v3396
        %v3581 = vpop.f32.mrf.mxu0
        %v3582 = vadd.f32 0.0, %v3581
        %v3583 = vpop.f32.mrf.mxu0
        %3584 = vmatprep.mubr.f32.mxu0 0.0
        %3585 = vmatmul.mubr.f32.gmra.mxu0 %v3399
        %v3586 = vpop.f32.mrf.mxu0
        %v3587 = vadd.f32 0.0, %v3586
        %v3588 = vpop.f32.mrf.mxu0
        %3589 = vmatprep.mubr.f32.mxu0 0.0
        %3590 = vmatmul.mubr.f32.gmra.mxu0 %v3402
        %v3591 = vpop.f32.mrf.mxu0
        %v3592 = vadd.f32 0.0, %v3591
        %v3593 = vpop.f32.mrf.mxu0
        %3594 = vmatprep.mubr.f32.mxu0 0.0
        %3595 = vmatmul.mubr.f32.gmra.mxu0 %v3405
        %v3596 = vpop.f32.mrf.mxu0
        %v3597 = vadd.f32 0.0, %v3596
        %v3598 = vpop.f32.mrf.mxu0
        %3599 = vmatprep.mubr.f32.mxu0 0.0
        %3600 = vmatmul.mubr.f32.gmra.mxu0 %v3408
        %v3601 = vpop.f32.mrf.mxu0
        %v3602 = vadd.f32 0.0, %v3601
        %v3603 = vpop.f32.mrf.mxu0
        %3604 = vmatprep.mubr.f32.mxu0 0.0
        %3605 = vmatmul.mubr.f32.gmra.mxu0 %v3411
        %v3606 = vpop.f32.mrf.mxu0
        %v3607 = vadd.f32 0.0, %v3606
        %v3608 = vpop.f32.mrf.mxu0
        %3609 = vmatprep.mubr.f32.mxu0 0.0
        %3610 = vmatmul.mubr.f32.gmra.mxu0 %v3414
        %v3611 = vpop.f32.mrf.mxu0
        %v3612 = vadd.f32 0.0, %v3611
        %v3613 = vpop.f32.mrf.mxu0
        %3614 = vmatprep.mubr.f32.mxu0 0.0
        %3615 = vmatmul.mubr.f32.gmra.mxu0 %v3417
        %v3616 = vpop.f32.mrf.mxu0
        %v3617 = vadd.f32 0.0, %v3616
        %v3618 = vpop.f32.mrf.mxu0
        %3619 = vmatprep.mubr.f32.mxu0 0.0
        %3620 = vmatmul.mubr.f32.gmra.mxu0 %v3420
        %v3621 = vpop.f32.mrf.mxu0
        %v3622 = vadd.f32 0.0, %v3621
        %v3623 = vpop.f32.mrf.mxu0
        %3624 = vmatprep.mubr.f32.mxu0 0.0
        %3625 = vmatmul.mubr.f32.gmra.mxu0 %v3423
        %v3626 = vpop.f32.mrf.mxu0
        %v3627 = vadd.f32 0.0, %v3626
        %v3628 = vpop.f32.mrf.mxu0
        %3629 = vmatprep.mubr.f32.mxu0 0.0
        %3630 = vmatmul.mubr.f32.gmra.mxu0 %v3426
        %v3631 = vpop.f32.mrf.mxu0
        %v3632 = vadd.f32 0.0, %v3631
        %v3633 = vpop.f32.mrf.mxu0
        %3634 = vmatprep.mubr.f32.mxu0 0.0
        %3635 = vmatmul.mubr.f32.gmra.mxu0 %v3429
        %v3636 = vpop.f32.mrf.mxu0
        %v3637 = vadd.f32 0.0, %v3636
        %v3638 = vpop.f32.mrf.mxu0
        %3639 = vmatprep.mubr.f32.mxu0 0.0
        %3640 = vmatmul.mubr.f32.gmra.mxu0 %v3432
        %v3641 = vpop.f32.mrf.mxu0
        %v3642 = vadd.f32 0.0, %v3641
        %v3643 = vpop.f32.mrf.mxu0
        %3644 = vmatprep.mubr.f32.mxu0 0.0
        %3645 = vmatmul.mubr.f32.gmra.mxu0 %v3435
        %v3646 = vpop.f32.mrf.mxu0
        %v3647 = vadd.f32 0.0, %v3646
        %v3648 = vpop.f32.mrf.mxu0
        %3649 = vmatprep.mubr.f32.mxu0 0.0
        %3650 = vmatmul.mubr.f32.gmra.mxu0 %v3438
        %v3651 = vpop.f32.mrf.mxu0
        %v3652 = vadd.f32 0.0, %v3651
        %v3653 = vpop.f32.mrf.mxu0
        %3654 = vmatprep.mubr.f32.mxu0 0.0
        %3655 = vmatmul.mubr.f32.gmra.mxu0 %v3441
        %v3656 = vpop.f32.mrf.mxu0
        %v3657 = vadd.f32 0.0, %v3656
        %v3658 = vpop.f32.mrf.mxu0
        %3659 = vmatprep.mubr.f32.mxu0 0.0
        %3660 = vmatmul.mubr.f32.gmra.mxu0 %v3444
        %v3661 = vpop.f32.mrf.mxu0
        %v3662 = vadd.f32 0.0, %v3661
        %v3663 = vpop.f32.mrf.mxu0
        %3664 = vmatprep.mubr.f32.mxu0 0.0
        %3665 = vmatmul.mubr.f32.gmra.mxu0 %v3447
        %v3666 = vpop.f32.mrf.mxu0
        %v3667 = vadd.f32 0.0, %v3666
        %v3668 = vpop.f32.mrf.mxu0
        %3669 = vmatprep.mubr.f32.mxu0 0.0
        %3670 = vmatmul.mubr.f32.gmra.mxu0 %v3450
        %v3671 = vpop.f32.mrf.mxu0
        %v3672 = vadd.f32 0.0, %v3671
        %v3673 = vpop.f32.mrf.mxu0
        %3674 = vmatprep.mubr.f32.mxu0 0.0
        %3675 = vmatmul.mubr.f32.gmra.mxu0 %v3453
        %v3676 = vpop.f32.mrf.mxu0
        %v3677 = vadd.f32 0.0, %v3676
        %v3678 = vpop.f32.mrf.mxu0
        %3679 = vdwg.mxu0
        %v3680 = vadd.f32 %v3294, %v3522
        %v3681 = vadd.f32 %v3295, %v3527
        %v3682 = vadd.f32 %v3296, %v3532
        %v3683 = vadd.f32 %v3297, %v3537
        %v3684 = vadd.f32 %v3298, %v3542
        %v3685 = vadd.f32 %v3299, %v3547
        %v3686 = vadd.f32 %v3300, %v3552
        %v3687 = vadd.f32 %v3301, %v3557
        %v3688 = vadd.f32 %v3302, %v3562
        %v3689 = vadd.f32 %v3303, %v3567
        %v3690 = vadd.f32 %v3304, %v3572
        %v3691 = vadd.f32 %v3305, %v3577
        %v3692 = vadd.f32 %v3306, %v3582
        %v3693 = vadd.f32 %v3307, %v3587
        %v3694 = vadd.f32 %v3308, %v3592
        %v3695 = vadd.f32 %v3309, %v3597
        %v3696 = vadd.f32 %v3310, %v3602
        %v3697 = vadd.f32 %v3311, %v3607
        %v3698 = vadd.f32 %v3312, %v3612
        %v3699 = vadd.f32 %v3313, %v3617
        %v3700 = vadd.f32 %v3314, %v3622
        %v3701 = vadd.f32 %v3315, %v3627
        %v3702 = vadd.f32 %v3316, %v3632
        %v3703 = vadd.f32 %v3317, %v3637
        %v3704 = vadd.f32 %v3318, %v3642
        %v3705 = vadd.f32 %v3319, %v3647
        %v3706 = vadd.f32 %v3320, %v3652
        %v3707 = vadd.f32 %v3321, %v3657
        %v3708 = vadd.f32 %v3322, %v3662
        %v3709 = vadd.f32 %v3323, %v3667
        %v3710 = vadd.f32 %v3324, %v3672
        %v3711 = vadd.f32 %v3325, %v3677
        %v3712 = vld [vmem:[%s3326 + $0x1] sm:$0xff]
        %v3713 = vld [vmem:[%s3326 + $0x9] sm:$0xff]
        %v3714 = vld [vmem:[%s3326 + $0x19] sm:$0xff]
        %v3715 = vld [vmem:[%s3326 + $0x21] sm:$0xff]
        %v3716 = vld [vmem:[%s3326 + $0x31] sm:$0xff]
        %v3717 = vld [vmem:[%s3326 + $0x39] sm:$0xff]
        %v3718 = vld [vmem:[%s3326 + $0x49] sm:$0xff]
        %v3719 = vld [vmem:[%s3326 + $0x51] sm:$0xff]
        %v3720 = vld [vmem:[%s3326 + $0x61] sm:$0xff]
        %v3721 = vld [vmem:[%s3326 + $0x69] sm:$0xff]
        %v3722 = vld [vmem:[%s3326 + $0x79] sm:$0xff]
        %v3723 = vld [vmem:[%s3326 + $0x81] sm:$0xff]
        %v3724 = vld [vmem:[%s3326 + $0x91] sm:$0xff]
        %v3725 = vld [vmem:[%s3326 + $0x99] sm:$0xff]
        %v3726 = vld [vmem:[%s3326 + $0xa9] sm:$0xff]
        %v3727 = vld [vmem:[%s3326 + $0xb1] sm:$0xff]
        %v3728 = vld [vmem:[%s3326 + $0xc1] sm:$0xff]
        %v3729 = vld [vmem:[%s3326 + $0xc9] sm:$0xff]
        %v3730 = vld [vmem:[%s3326 + $0xd9] sm:$0xff]
        %v3731 = vld [vmem:[%s3326 + $0xe1] sm:$0xff]
        %v3732 = vld [vmem:[%s3326 + $0xf1] sm:$0xff]
        %v3733 = vld [vmem:[%s3326 + $0xf9] sm:$0xff]
        %v3734 = vld [vmem:[%s3326 + $0x109] sm:$0xff]
        %v3735 = vld [vmem:[%s3326 + $0x111] sm:$0xff]
        %v3736 = vld [vmem:[%s3326 + $0x121] sm:$0xff]
        %v3737 = vld [vmem:[%s3326 + $0x129] sm:$0xff]
        %v3738 = vld [vmem:[%s3326 + $0x139] sm:$0xff]
        %v3739 = vld [vmem:[%s3326 + $0x141] sm:$0xff]
        %v3740 = vld [vmem:[%s3326 + $0x151] sm:$0xff]
        %v3741 = vld [vmem:[%s3326 + $0x159] sm:$0xff]
        %v3742 = vld [vmem:[%s3326 + $0x169] sm:$0xff]
        %v3743 = vld [vmem:[%s3326 + $0x171] sm:$0xff]
        %v3745 = vsel %vm919, %v3712, 0
        %v3748 = vsel %vm919, %v3713, 0
        %v3751 = vsel %vm919, %v3714, 0
        %v3754 = vsel %vm919, %v3715, 0
        %v3757 = vsel %vm919, %v3716, 0
        %v3760 = vsel %vm919, %v3717, 0
        %v3763 = vsel %vm919, %v3718, 0
        %v3766 = vsel %vm919, %v3719, 0
        %v3769 = vsel %vm919, %v3720, 0
        %v3772 = vsel %vm919, %v3721, 0
        %v3775 = vsel %vm919, %v3722, 0
        %v3778 = vsel %vm919, %v3723, 0
        %v3781 = vsel %vm919, %v3724, 0
        %v3784 = vsel %vm919, %v3725, 0
        %v3787 = vsel %vm919, %v3726, 0
        %v3790 = vsel %vm919, %v3727, 0
        %v3793 = vsel %vm919, %v3728, 0
        %v3796 = vsel %vm919, %v3729, 0
        %v3799 = vsel %vm919, %v3730, 0
        %v3802 = vsel %vm919, %v3731, 0
        %v3805 = vsel %vm919, %v3732, 0
        %v3808 = vsel %vm919, %v3733, 0
        %v3811 = vsel %vm919, %v3734, 0
        %v3814 = vsel %vm919, %v3735, 0
        %v3817 = vsel %vm919, %v3736, 0
        %v3820 = vsel %vm919, %v3737, 0
        %v3823 = vsel %vm919, %v3738, 0
        %v3826 = vsel %vm919, %v3739, 0
        %v3829 = vsel %vm919, %v3740, 0
        %v3832 = vsel %vm919, %v3741, 0
        %v3835 = vsel %vm919, %v3742, 0
        %v3838 = vsel %vm919, %v3743, 0
        %3840 = vmatprep.subr.mxu0 0.0
        %3841 = vmatpush1.msra.mxu0 0.0
        %3842 = vmatprep.subr.mxu0 0.0
        %3843 = vmatpush1.msra.mxu0 0.0
        %3844 = vmatprep.subr.mxu0 0.0
        %3845 = vmatpush1.msra.mxu0 0.0
        %3846 = vmatprep.subr.mxu0 0.0
        %3847 = vmatpush1.msra.mxu0 0.0
        %3848 = vmatprep.subr.mxu0 0.0
        %3849 = vmatpush1.msra.mxu0 0.0
        %3850 = vmatprep.subr.mxu0 0.0
        %3851 = vmatpush1.msra.mxu0 0.0
        %3852 = vmatprep.subr.mxu0 0.0
        %3853 = vmatpush1.msra.mxu0 0.0
        %3854 = vmatprep.subr.mxu0 0.0
        %3855 = vmatpush1.msra.mxu0 0.0
        %3856 = vmatprep.subr.mxu0 0.0
        %3857 = vmatpush1.msra.mxu0 %v1071
        %3858 = vmatprep.subr.mxu0 0.0
        %3859 = vmatpush1.msra.mxu0 %v1070
        %3860 = vmatprep.subr.mxu0 0.0
        %3861 = vmatpush1.msra.mxu0 %v1069
        %3862 = vmatprep.subr.mxu0 0.0
        %3863 = vmatpush1.msra.mxu0 %v1068
        %3864 = vmatprep.subr.mxu0 0.0
        %3865 = vmatpush1.msra.mxu0 %v1067
        %3866 = vmatprep.subr.mxu0 0.0
        %3867 = vmatpush1.msra.mxu0 %v1066
        %3868 = vmatprep.subr.mxu0 0.0
        %3869 = vmatpush1.msra.mxu0 %v1065
        %3870 = vmatprep.subr.mxu0 0.0
        %3871 = vmatpush1.msra.mxu0 %v1064
        %3872 = vmatprep.subr.mxu0 0.0
        %3873 = vmatpush2.msra.mxu0 0.0
        %3874 = vmatprep.subr.mxu0 0.0
        %3875 = vmatpush2.msra.mxu0 0.0
        %3876 = vmatprep.subr.mxu0 0.0
        %3877 = vmatpush2.msra.mxu0 0.0
        %3878 = vmatprep.subr.mxu0 0.0
        %3879 = vmatpush2.msra.mxu0 0.0
        %3880 = vmatprep.subr.mxu0 0.0
        %3881 = vmatpush2.msra.mxu0 0.0
        %3882 = vmatprep.subr.mxu0 0.0
        %3883 = vmatpush2.msra.mxu0 0.0
        %3884 = vmatprep.subr.mxu0 0.0
        %3885 = vmatpush2.msra.mxu0 0.0
        %3886 = vmatprep.subr.mxu0 0.0
        %3887 = vmatpush2.msra.mxu0 0.0
        %3888 = vmatprep.subr.mxu0 0.0
        %3889 = vmatpush2.msra.mxu0 0.0
        %3890 = vmatprep.subr.mxu0 0.0
        %3891 = vmatpush2.msra.mxu0 0.0
        %3892 = vmatprep.subr.mxu0 0.0
        %3893 = vmatpush2.msra.mxu0 0.0
        %3894 = vmatprep.subr.mxu0 0.0
        %3895 = vmatpush2.msra.mxu0 0.0
        %3896 = vmatprep.subr.mxu0 0.0
        %3897 = vmatpush2.msra.mxu0 0.0
        %3898 = vmatprep.subr.mxu0 0.0
        %3899 = vmatpush2.msra.mxu0 0.0
        %3900 = vmatprep.subr.mxu0 0.0
        %3901 = vmatpush2.msra.mxu0 0.0
        %3902 = vmatprep.subr.mxu0 0.0
        %3903 = vmatpush2.msra.mxu0 0.0
        %3904 = vmatprep.mubr.f32.mxu0 0.0
        %3905 = vmatmul.mubr.f32.gmra.mxu0 %v3745
        %v3906 = vpop.f32.mrf.mxu0
        %v3907 = vadd.f32 0.0, %v3906
        %v3908 = vpop.f32.mrf.mxu0
        %3909 = vmatprep.mubr.f32.mxu0 0.0
        %3910 = vmatmul.mubr.f32.gmra.mxu0 %v3748
        %v3911 = vpop.f32.mrf.mxu0
        %v3912 = vadd.f32 0.0, %v3911
        %v3913 = vpop.f32.mrf.mxu0
        %3914 = vmatprep.mubr.f32.mxu0 0.0
        %3915 = vmatmul.mubr.f32.gmra.mxu0 %v3751
        %v3916 = vpop.f32.mrf.mxu0
        %v3917 = vadd.f32 0.0, %v3916
        %v3918 = vpop.f32.mrf.mxu0
        %3919 = vmatprep.mubr.f32.mxu0 0.0
        %3920 = vmatmul.mubr.f32.gmra.mxu0 %v3754
        %v3921 = vpop.f32.mrf.mxu0
        %v3922 = vadd.f32 0.0, %v3921
        %v3923 = vpop.f32.mrf.mxu0
        %3924 = vmatprep.mubr.f32.mxu0 0.0
        %3925 = vmatmul.mubr.f32.gmra.mxu0 %v3757
        %v3926 = vpop.f32.mrf.mxu0
        %v3927 = vadd.f32 0.0, %v3926
        %v3928 = vpop.f32.mrf.mxu0
        %3929 = vmatprep.mubr.f32.mxu0 0.0
        %3930 = vmatmul.mubr.f32.gmra.mxu0 %v3760
        %v3931 = vpop.f32.mrf.mxu0
        %v3932 = vadd.f32 0.0, %v3931
        %v3933 = vpop.f32.mrf.mxu0
        %3934 = vmatprep.mubr.f32.mxu0 0.0
        %3935 = vmatmul.mubr.f32.gmra.mxu0 %v3763
        %v3936 = vpop.f32.mrf.mxu0
        %v3937 = vadd.f32 0.0, %v3936
        %v3938 = vpop.f32.mrf.mxu0
        %3939 = vmatprep.mubr.f32.mxu0 0.0
        %3940 = vmatmul.mubr.f32.gmra.mxu0 %v3766
        %v3941 = vpop.f32.mrf.mxu0
        %v3942 = vadd.f32 0.0, %v3941
        %v3943 = vpop.f32.mrf.mxu0
        %3944 = vmatprep.mubr.f32.mxu0 0.0
        %3945 = vmatmul.mubr.f32.gmra.mxu0 %v3769
        %v3946 = vpop.f32.mrf.mxu0
        %v3947 = vadd.f32 0.0, %v3946
        %v3948 = vpop.f32.mrf.mxu0
        %3949 = vmatprep.mubr.f32.mxu0 0.0
        %3950 = vmatmul.mubr.f32.gmra.mxu0 %v3772
        %v3951 = vpop.f32.mrf.mxu0
        %v3952 = vadd.f32 0.0, %v3951
        %v3953 = vpop.f32.mrf.mxu0
        %3954 = vmatprep.mubr.f32.mxu0 0.0
        %3955 = vmatmul.mubr.f32.gmra.mxu0 %v3775
        %v3956 = vpop.f32.mrf.mxu0
        %v3957 = vadd.f32 0.0, %v3956
        %v3958 = vpop.f32.mrf.mxu0
        %3959 = vmatprep.mubr.f32.mxu0 0.0
        %3960 = vmatmul.mubr.f32.gmra.mxu0 %v3778
        %v3961 = vpop.f32.mrf.mxu0
        %v3962 = vadd.f32 0.0, %v3961
        %v3963 = vpop.f32.mrf.mxu0
        %3964 = vmatprep.mubr.f32.mxu0 0.0
        %3965 = vmatmul.mubr.f32.gmra.mxu0 %v3781
        %v3966 = vpop.f32.mrf.mxu0
        %v3967 = vadd.f32 0.0, %v3966
        %v3968 = vpop.f32.mrf.mxu0
        %3969 = vmatprep.mubr.f32.mxu0 0.0
        %3970 = vmatmul.mubr.f32.gmra.mxu0 %v3784
        %v3971 = vpop.f32.mrf.mxu0
        %v3972 = vadd.f32 0.0, %v3971
        %v3973 = vpop.f32.mrf.mxu0
        %3974 = vmatprep.mubr.f32.mxu0 0.0
        %3975 = vmatmul.mubr.f32.gmra.mxu0 %v3787
        %v3976 = vpop.f32.mrf.mxu0
        %v3977 = vadd.f32 0.0, %v3976
        %v3978 = vpop.f32.mrf.mxu0
        %3979 = vmatprep.mubr.f32.mxu0 0.0
        %3980 = vmatmul.mubr.f32.gmra.mxu0 %v3790
        %v3981 = vpop.f32.mrf.mxu0
        %v3982 = vadd.f32 0.0, %v3981
        %v3983 = vpop.f32.mrf.mxu0
        %3984 = vmatprep.mubr.f32.mxu0 0.0
        %3985 = vmatmul.mubr.f32.gmra.mxu0 %v3793
        %v3986 = vpop.f32.mrf.mxu0
        %v3987 = vadd.f32 0.0, %v3986
        %v3988 = vpop.f32.mrf.mxu0
        %3989 = vmatprep.mubr.f32.mxu0 0.0
        %3990 = vmatmul.mubr.f32.gmra.mxu0 %v3796
        %v3991 = vpop.f32.mrf.mxu0
        %v3992 = vadd.f32 0.0, %v3991
        %v3993 = vpop.f32.mrf.mxu0
        %3994 = vmatprep.mubr.f32.mxu0 0.0
        %3995 = vmatmul.mubr.f32.gmra.mxu0 %v3799
        %v3996 = vpop.f32.mrf.mxu0
        %v3997 = vadd.f32 0.0, %v3996
        %v3998 = vpop.f32.mrf.mxu0
        %3999 = vmatprep.mubr.f32.mxu0 0.0
        %4000 = vmatmul.mubr.f32.gmra.mxu0 %v3802
        %v4001 = vpop.f32.mrf.mxu0
        %v4002 = vadd.f32 0.0, %v4001
        %v4003 = vpop.f32.mrf.mxu0
        %4004 = vmatprep.mubr.f32.mxu0 0.0
        %4005 = vmatmul.mubr.f32.gmra.mxu0 %v3805
        %v4006 = vpop.f32.mrf.mxu0
        %v4007 = vadd.f32 0.0, %v4006
        %v4008 = vpop.f32.mrf.mxu0
        %4009 = vmatprep.mubr.f32.mxu0 0.0
        %4010 = vmatmul.mubr.f32.gmra.mxu0 %v3808
        %v4011 = vpop.f32.mrf.mxu0
        %v4012 = vadd.f32 0.0, %v4011
        %v4013 = vpop.f32.mrf.mxu0
        %4014 = vmatprep.mubr.f32.mxu0 0.0
        %4015 = vmatmul.mubr.f32.gmra.mxu0 %v3811
        %v4016 = vpop.f32.mrf.mxu0
        %v4017 = vadd.f32 0.0, %v4016
        %v4018 = vpop.f32.mrf.mxu0
        %4019 = vmatprep.mubr.f32.mxu0 0.0
        %4020 = vmatmul.mubr.f32.gmra.mxu0 %v3814
        %v4021 = vpop.f32.mrf.mxu0
        %v4022 = vadd.f32 0.0, %v4021
        %v4023 = vpop.f32.mrf.mxu0
        %4024 = vmatprep.mubr.f32.mxu0 0.0
        %4025 = vmatmul.mubr.f32.gmra.mxu0 %v3817
        %v4026 = vpop.f32.mrf.mxu0
        %v4027 = vadd.f32 0.0, %v4026
        %v4028 = vpop.f32.mrf.mxu0
        %4029 = vmatprep.mubr.f32.mxu0 0.0
        %4030 = vmatmul.mubr.f32.gmra.mxu0 %v3820
        %v4031 = vpop.f32.mrf.mxu0
        %v4032 = vadd.f32 0.0, %v4031
        %v4033 = vpop.f32.mrf.mxu0
        %4034 = vmatprep.mubr.f32.mxu0 0.0
        %4035 = vmatmul.mubr.f32.gmra.mxu0 %v3823
        %v4036 = vpop.f32.mrf.mxu0
        %v4037 = vadd.f32 0.0, %v4036
        %v4038 = vpop.f32.mrf.mxu0
        %4039 = vmatprep.mubr.f32.mxu0 0.0
        %4040 = vmatmul.mubr.f32.gmra.mxu0 %v3826
        %v4041 = vpop.f32.mrf.mxu0
        %v4042 = vadd.f32 0.0, %v4041
        %v4043 = vpop.f32.mrf.mxu0
        %4044 = vmatprep.mubr.f32.mxu0 0.0
        %4045 = vmatmul.mubr.f32.gmra.mxu0 %v3829
        %v4046 = vpop.f32.mrf.mxu0
        %v4047 = vadd.f32 0.0, %v4046
        %v4048 = vpop.f32.mrf.mxu0
        %4049 = vmatprep.mubr.f32.mxu0 0.0
        %4050 = vmatmul.mubr.f32.gmra.mxu0 %v3832
        %v4051 = vpop.f32.mrf.mxu0
        %v4052 = vadd.f32 0.0, %v4051
        %v4053 = vpop.f32.mrf.mxu0
        %4054 = vmatprep.mubr.f32.mxu0 0.0
        %4055 = vmatmul.mubr.f32.gmra.mxu0 %v3835
        %v4056 = vpop.f32.mrf.mxu0
        %v4057 = vadd.f32 0.0, %v4056
        %v4058 = vpop.f32.mrf.mxu0
        %4059 = vmatprep.mubr.f32.mxu0 0.0
        %4060 = vmatmul.mubr.f32.gmra.mxu0 %v3838
        %v4061 = vpop.f32.mrf.mxu0
        %v4062 = vadd.f32 0.0, %v4061
        %v4063 = vpop.f32.mrf.mxu0
        %4064 = vdwg.mxu0
        %v4065 = vadd.f32 %v3680, %v3907
        %v4066 = vadd.f32 %v3681, %v3912
        %v4067 = vadd.f32 %v3682, %v3917
        %v4068 = vadd.f32 %v3683, %v3922
        %v4069 = vadd.f32 %v3684, %v3927
        %v4070 = vadd.f32 %v3685, %v3932
        %v4071 = vadd.f32 %v3686, %v3937
        %v4072 = vadd.f32 %v3687, %v3942
        %v4073 = vadd.f32 %v3688, %v3947
        %v4074 = vadd.f32 %v3689, %v3952
        %v4075 = vadd.f32 %v3690, %v3957
        %v4076 = vadd.f32 %v3691, %v3962
        %v4077 = vadd.f32 %v3692, %v3967
        %v4078 = vadd.f32 %v3693, %v3972
        %v4079 = vadd.f32 %v3694, %v3977
        %v4080 = vadd.f32 %v3695, %v3982
        %v4081 = vadd.f32 %v3696, %v3987
        %v4082 = vadd.f32 %v3697, %v3992
        %v4083 = vadd.f32 %v3698, %v3997
        %v4084 = vadd.f32 %v3699, %v4002
        %v4085 = vadd.f32 %v3700, %v4007
        %v4086 = vadd.f32 %v3701, %v4012
        %v4087 = vadd.f32 %v3702, %v4017
        %v4088 = vadd.f32 %v3703, %v4022
        %v4089 = vadd.f32 %v3704, %v4027
        %v4090 = vadd.f32 %v3705, %v4032
        %v4091 = vadd.f32 %v3706, %v4037
        %v4092 = vadd.f32 %v3707, %v4042
        %v4093 = vadd.f32 %v3708, %v4047
        %v4094 = vadd.f32 %v3709, %v4052
        %v4095 = vadd.f32 %v3710, %v4057
        %v4096 = vadd.f32 %v3711, %v4062
        %v4097 = vld [vmem:[%s3326 + $0x2] sm:$0xff]
        %v4098 = vld [vmem:[%s3326 + $0xa] sm:$0xff]
        %v4099 = vld [vmem:[%s3326 + $0x1a] sm:$0xff]
        %v4100 = vld [vmem:[%s3326 + $0x22] sm:$0xff]
        %v4101 = vld [vmem:[%s3326 + $0x32] sm:$0xff]
        %v4102 = vld [vmem:[%s3326 + $0x3a] sm:$0xff]
        %v4103 = vld [vmem:[%s3326 + $0x4a] sm:$0xff]
        %v4104 = vld [vmem:[%s3326 + $0x52] sm:$0xff]
        %v4105 = vld [vmem:[%s3326 + $0x62] sm:$0xff]
        %v4106 = vld [vmem:[%s3326 + $0x6a] sm:$0xff]
        %v4107 = vld [vmem:[%s3326 + $0x7a] sm:$0xff]
        %v4108 = vld [vmem:[%s3326 + $0x82] sm:$0xff]
        %v4109 = vld [vmem:[%s3326 + $0x92] sm:$0xff]
        %v4110 = vld [vmem:[%s3326 + $0x9a] sm:$0xff]
        %v4111 = vld [vmem:[%s3326 + $0xaa] sm:$0xff]
        %v4112 = vld [vmem:[%s3326 + $0xb2] sm:$0xff]
        %v4113 = vld [vmem:[%s3326 + $0xc2] sm:$0xff]
        %v4114 = vld [vmem:[%s3326 + $0xca] sm:$0xff]
        %v4115 = vld [vmem:[%s3326 + $0xda] sm:$0xff]
        %v4116 = vld [vmem:[%s3326 + $0xe2] sm:$0xff]
        %v4117 = vld [vmem:[%s3326 + $0xf2] sm:$0xff]
        %v4118 = vld [vmem:[%s3326 + $0xfa] sm:$0xff]
        %v4119 = vld [vmem:[%s3326 + $0x10a] sm:$0xff]
        %v4120 = vld [vmem:[%s3326 + $0x112] sm:$0xff]
        %v4121 = vld [vmem:[%s3326 + $0x122] sm:$0xff]
        %v4122 = vld [vmem:[%s3326 + $0x12a] sm:$0xff]
        %v4123 = vld [vmem:[%s3326 + $0x13a] sm:$0xff]
        %v4124 = vld [vmem:[%s3326 + $0x142] sm:$0xff]
        %v4125 = vld [vmem:[%s3326 + $0x152] sm:$0xff]
        %v4126 = vld [vmem:[%s3326 + $0x15a] sm:$0xff]
        %v4127 = vld [vmem:[%s3326 + $0x16a] sm:$0xff]
        %v4128 = vld [vmem:[%s3326 + $0x172] sm:$0xff]
        %v4130 = vsel %vm919, %v4097, 0
        %v4133 = vsel %vm919, %v4098, 0
        %v4136 = vsel %vm919, %v4099, 0
        %v4139 = vsel %vm919, %v4100, 0
        %v4142 = vsel %vm919, %v4101, 0
        %v4145 = vsel %vm919, %v4102, 0
        %v4148 = vsel %vm919, %v4103, 0
        %v4151 = vsel %vm919, %v4104, 0
        %v4154 = vsel %vm919, %v4105, 0
        %v4157 = vsel %vm919, %v4106, 0
        %v4160 = vsel %vm919, %v4107, 0
        %v4163 = vsel %vm919, %v4108, 0
        %v4166 = vsel %vm919, %v4109, 0
        %v4169 = vsel %vm919, %v4110, 0
        %v4172 = vsel %vm919, %v4111, 0
        %v4175 = vsel %vm919, %v4112, 0
        %v4178 = vsel %vm919, %v4113, 0
        %v4181 = vsel %vm919, %v4114, 0
        %v4184 = vsel %vm919, %v4115, 0
        %v4187 = vsel %vm919, %v4116, 0
        %v4190 = vsel %vm919, %v4117, 0
        %v4193 = vsel %vm919, %v4118, 0
        %v4196 = vsel %vm919, %v4119, 0
        %v4199 = vsel %vm919, %v4120, 0
        %v4202 = vsel %vm919, %v4121, 0
        %v4205 = vsel %vm919, %v4122, 0
        %v4208 = vsel %vm919, %v4123, 0
        %v4211 = vsel %vm919, %v4124, 0
        %v4214 = vsel %vm919, %v4125, 0
        %v4217 = vsel %vm919, %v4126, 0
        %v4220 = vsel %vm919, %v4127, 0
        %v4223 = vsel %vm919, %v4128, 0
        %4225 = vmatprep.subr.mxu0 0.0
        %4226 = vmatpush1.msra.mxu0 0.0
        %4227 = vmatprep.subr.mxu0 0.0
        %4228 = vmatpush1.msra.mxu0 0.0
        %4229 = vmatprep.subr.mxu0 0.0
        %4230 = vmatpush1.msra.mxu0 0.0
        %4231 = vmatprep.subr.mxu0 0.0
        %4232 = vmatpush1.msra.mxu0 0.0
        %4233 = vmatprep.subr.mxu0 0.0
        %4234 = vmatpush1.msra.mxu0 0.0
        %4235 = vmatprep.subr.mxu0 0.0
        %4236 = vmatpush1.msra.mxu0 0.0
        %4237 = vmatprep.subr.mxu0 0.0
        %4238 = vmatpush1.msra.mxu0 0.0
        %4239 = vmatprep.subr.mxu0 0.0
        %4240 = vmatpush1.msra.mxu0 0.0
        %4241 = vmatprep.subr.mxu0 0.0
        %4242 = vmatpush1.msra.mxu0 %v1079
        %4243 = vmatprep.subr.mxu0 0.0
        %4244 = vmatpush1.msra.mxu0 %v1078
        %4245 = vmatprep.subr.mxu0 0.0
        %4246 = vmatpush1.msra.mxu0 %v1077
        %4247 = vmatprep.subr.mxu0 0.0
        %4248 = vmatpush1.msra.mxu0 %v1076
        %4249 = vmatprep.subr.mxu0 0.0
        %4250 = vmatpush1.msra.mxu0 %v1075
        %4251 = vmatprep.subr.mxu0 0.0
        %4252 = vmatpush1.msra.mxu0 %v1074
        %4253 = vmatprep.subr.mxu0 0.0
        %4254 = vmatpush1.msra.mxu0 %v1073
        %4255 = vmatprep.subr.mxu0 0.0
        %4256 = vmatpush1.msra.mxu0 %v1072
        %4257 = vmatprep.subr.mxu0 0.0
        %4258 = vmatpush2.msra.mxu0 0.0
        %4259 = vmatprep.subr.mxu0 0.0
        %4260 = vmatpush2.msra.mxu0 0.0
        %4261 = vmatprep.subr.mxu0 0.0
        %4262 = vmatpush2.msra.mxu0 0.0
        %4263 = vmatprep.subr.mxu0 0.0
        %4264 = vmatpush2.msra.mxu0 0.0
        %4265 = vmatprep.subr.mxu0 0.0
        %4266 = vmatpush2.msra.mxu0 0.0
        %4267 = vmatprep.subr.mxu0 0.0
        %4268 = vmatpush2.msra.mxu0 0.0
        %4269 = vmatprep.subr.mxu0 0.0
        %4270 = vmatpush2.msra.mxu0 0.0
        %4271 = vmatprep.subr.mxu0 0.0
        %4272 = vmatpush2.msra.mxu0 0.0
        %4273 = vmatprep.subr.mxu0 0.0
        %4274 = vmatpush2.msra.mxu0 0.0
        %4275 = vmatprep.subr.mxu0 0.0
        %4276 = vmatpush2.msra.mxu0 0.0
        %4277 = vmatprep.subr.mxu0 0.0
        %4278 = vmatpush2.msra.mxu0 0.0
        %4279 = vmatprep.subr.mxu0 0.0
        %4280 = vmatpush2.msra.mxu0 0.0
        %4281 = vmatprep.subr.mxu0 0.0
        %4282 = vmatpush2.msra.mxu0 0.0
        %4283 = vmatprep.subr.mxu0 0.0
        %4284 = vmatpush2.msra.mxu0 0.0
        %4285 = vmatprep.subr.mxu0 0.0
        %4286 = vmatpush2.msra.mxu0 0.0
        %4287 = vmatprep.subr.mxu0 0.0
        %4288 = vmatpush2.msra.mxu0 0.0
        %4289 = vmatprep.mubr.f32.mxu0 0.0
        %4290 = vmatmul.mubr.f32.gmra.mxu0 %v4130
        %v4291 = vpop.f32.mrf.mxu0
        %v4292 = vadd.f32 0.0, %v4291
        %v4293 = vpop.f32.mrf.mxu0
        %4294 = vmatprep.mubr.f32.mxu0 0.0
        %4295 = vmatmul.mubr.f32.gmra.mxu0 %v4133
        %v4296 = vpop.f32.mrf.mxu0
        %v4297 = vadd.f32 0.0, %v4296
        %v4298 = vpop.f32.mrf.mxu0
        %4299 = vmatprep.mubr.f32.mxu0 0.0
        %4300 = vmatmul.mubr.f32.gmra.mxu0 %v4136
        %v4301 = vpop.f32.mrf.mxu0
        %v4302 = vadd.f32 0.0, %v4301
        %v4303 = vpop.f32.mrf.mxu0
        %4304 = vmatprep.mubr.f32.mxu0 0.0
        %4305 = vmatmul.mubr.f32.gmra.mxu0 %v4139
        %v4306 = vpop.f32.mrf.mxu0
        %v4307 = vadd.f32 0.0, %v4306
        %v4308 = vpop.f32.mrf.mxu0
        %4309 = vmatprep.mubr.f32.mxu0 0.0
        %4310 = vmatmul.mubr.f32.gmra.mxu0 %v4142
        %v4311 = vpop.f32.mrf.mxu0
        %v4312 = vadd.f32 0.0, %v4311
        %v4313 = vpop.f32.mrf.mxu0
        %4314 = vmatprep.mubr.f32.mxu0 0.0
        %4315 = vmatmul.mubr.f32.gmra.mxu0 %v4145
        %v4316 = vpop.f32.mrf.mxu0
        %v4317 = vadd.f32 0.0, %v4316
        %v4318 = vpop.f32.mrf.mxu0
        %4319 = vmatprep.mubr.f32.mxu0 0.0
        %4320 = vmatmul.mubr.f32.gmra.mxu0 %v4148
        %v4321 = vpop.f32.mrf.mxu0
        %v4322 = vadd.f32 0.0, %v4321
        %v4323 = vpop.f32.mrf.mxu0
        %4324 = vmatprep.mubr.f32.mxu0 0.0
        %4325 = vmatmul.mubr.f32.gmra.mxu0 %v4151
        %v4326 = vpop.f32.mrf.mxu0
        %v4327 = vadd.f32 0.0, %v4326
        %v4328 = vpop.f32.mrf.mxu0
        %4329 = vmatprep.mubr.f32.mxu0 0.0
        %4330 = vmatmul.mubr.f32.gmra.mxu0 %v4154
        %v4331 = vpop.f32.mrf.mxu0
        %v4332 = vadd.f32 0.0, %v4331
        %v4333 = vpop.f32.mrf.mxu0
        %4334 = vmatprep.mubr.f32.mxu0 0.0
        %4335 = vmatmul.mubr.f32.gmra.mxu0 %v4157
        %v4336 = vpop.f32.mrf.mxu0
        %v4337 = vadd.f32 0.0, %v4336
        %v4338 = vpop.f32.mrf.mxu0
        %4339 = vmatprep.mubr.f32.mxu0 0.0
        %4340 = vmatmul.mubr.f32.gmra.mxu0 %v4160
        %v4341 = vpop.f32.mrf.mxu0
        %v4342 = vadd.f32 0.0, %v4341
        %v4343 = vpop.f32.mrf.mxu0
        %4344 = vmatprep.mubr.f32.mxu0 0.0
        %4345 = vmatmul.mubr.f32.gmra.mxu0 %v4163
        %v4346 = vpop.f32.mrf.mxu0
        %v4347 = vadd.f32 0.0, %v4346
        %v4348 = vpop.f32.mrf.mxu0
        %4349 = vmatprep.mubr.f32.mxu0 0.0
        %4350 = vmatmul.mubr.f32.gmra.mxu0 %v4166
        %v4351 = vpop.f32.mrf.mxu0
        %v4352 = vadd.f32 0.0, %v4351
        %v4353 = vpop.f32.mrf.mxu0
        %4354 = vmatprep.mubr.f32.mxu0 0.0
        %4355 = vmatmul.mubr.f32.gmra.mxu0 %v4169
        %v4356 = vpop.f32.mrf.mxu0
        %v4357 = vadd.f32 0.0, %v4356
        %v4358 = vpop.f32.mrf.mxu0
        %4359 = vmatprep.mubr.f32.mxu0 0.0
        %4360 = vmatmul.mubr.f32.gmra.mxu0 %v4172
        %v4361 = vpop.f32.mrf.mxu0
        %v4362 = vadd.f32 0.0, %v4361
        %v4363 = vpop.f32.mrf.mxu0
        %4364 = vmatprep.mubr.f32.mxu0 0.0
        %4365 = vmatmul.mubr.f32.gmra.mxu0 %v4175
        %v4366 = vpop.f32.mrf.mxu0
        %v4367 = vadd.f32 0.0, %v4366
        %v4368 = vpop.f32.mrf.mxu0
        %4369 = vmatprep.mubr.f32.mxu0 0.0
        %4370 = vmatmul.mubr.f32.gmra.mxu0 %v4178
        %v4371 = vpop.f32.mrf.mxu0
        %v4372 = vadd.f32 0.0, %v4371
        %v4373 = vpop.f32.mrf.mxu0
        %4374 = vmatprep.mubr.f32.mxu0 0.0
        %4375 = vmatmul.mubr.f32.gmra.mxu0 %v4181
        %v4376 = vpop.f32.mrf.mxu0
        %v4377 = vadd.f32 0.0, %v4376
        %v4378 = vpop.f32.mrf.mxu0
        %4379 = vmatprep.mubr.f32.mxu0 0.0
        %4380 = vmatmul.mubr.f32.gmra.mxu0 %v4184
        %v4381 = vpop.f32.mrf.mxu0
        %v4382 = vadd.f32 0.0, %v4381
        %v4383 = vpop.f32.mrf.mxu0
        %4384 = vmatprep.mubr.f32.mxu0 0.0
        %4385 = vmatmul.mubr.f32.gmra.mxu0 %v4187
        %v4386 = vpop.f32.mrf.mxu0
        %v4387 = vadd.f32 0.0, %v4386
        %v4388 = vpop.f32.mrf.mxu0
        %4389 = vmatprep.mubr.f32.mxu0 0.0
        %4390 = vmatmul.mubr.f32.gmra.mxu0 %v4190
        %v4391 = vpop.f32.mrf.mxu0
        %v4392 = vadd.f32 0.0, %v4391
        %v4393 = vpop.f32.mrf.mxu0
        %4394 = vmatprep.mubr.f32.mxu0 0.0
        %4395 = vmatmul.mubr.f32.gmra.mxu0 %v4193
        %v4396 = vpop.f32.mrf.mxu0
        %v4397 = vadd.f32 0.0, %v4396
        %v4398 = vpop.f32.mrf.mxu0
        %4399 = vmatprep.mubr.f32.mxu0 0.0
        %4400 = vmatmul.mubr.f32.gmra.mxu0 %v4196
        %v4401 = vpop.f32.mrf.mxu0
        %v4402 = vadd.f32 0.0, %v4401
        %v4403 = vpop.f32.mrf.mxu0
        %4404 = vmatprep.mubr.f32.mxu0 0.0
        %4405 = vmatmul.mubr.f32.gmra.mxu0 %v4199
        %v4406 = vpop.f32.mrf.mxu0
        %v4407 = vadd.f32 0.0, %v4406
        %v4408 = vpop.f32.mrf.mxu0
        %4409 = vmatprep.mubr.f32.mxu0 0.0
        %4410 = vmatmul.mubr.f32.gmra.mxu0 %v4202
        %v4411 = vpop.f32.mrf.mxu0
        %v4412 = vadd.f32 0.0, %v4411
        %v4413 = vpop.f32.mrf.mxu0
        %4414 = vmatprep.mubr.f32.mxu0 0.0
        %4415 = vmatmul.mubr.f32.gmra.mxu0 %v4205
        %v4416 = vpop.f32.mrf.mxu0
        %v4417 = vadd.f32 0.0, %v4416
        %v4418 = vpop.f32.mrf.mxu0
        %4419 = vmatprep.mubr.f32.mxu0 0.0
        %4420 = vmatmul.mubr.f32.gmra.mxu0 %v4208
        %v4421 = vpop.f32.mrf.mxu0
        %v4422 = vadd.f32 0.0, %v4421
        %v4423 = vpop.f32.mrf.mxu0
        %4424 = vmatprep.mubr.f32.mxu0 0.0
        %4425 = vmatmul.mubr.f32.gmra.mxu0 %v4211
        %v4426 = vpop.f32.mrf.mxu0
        %v4427 = vadd.f32 0.0, %v4426
        %v4428 = vpop.f32.mrf.mxu0
        %4429 = vmatprep.mubr.f32.mxu0 0.0
        %4430 = vmatmul.mubr.f32.gmra.mxu0 %v4214
        %v4431 = vpop.f32.mrf.mxu0
        %v4432 = vadd.f32 0.0, %v4431
        %v4433 = vpop.f32.mrf.mxu0
        %4434 = vmatprep.mubr.f32.mxu0 0.0
        %4435 = vmatmul.mubr.f32.gmra.mxu0 %v4217
        %v4436 = vpop.f32.mrf.mxu0
        %v4437 = vadd.f32 0.0, %v4436
        %v4438 = vpop.f32.mrf.mxu0
        %4439 = vmatprep.mubr.f32.mxu0 0.0
        %4440 = vmatmul.mubr.f32.gmra.mxu0 %v4220
        %v4441 = vpop.f32.mrf.mxu0
        %v4442 = vadd.f32 0.0, %v4441
        %v4443 = vpop.f32.mrf.mxu0
        %4444 = vmatprep.mubr.f32.mxu0 0.0
        %4445 = vmatmul.mubr.f32.gmra.mxu0 %v4223
        %v4446 = vpop.f32.mrf.mxu0
        %v4447 = vadd.f32 0.0, %v4446
        %v4448 = vpop.f32.mrf.mxu0
        %4449 = vdwg.mxu0
        %v4450 = vadd.f32 %v4065, %v4292
        %v4451 = vadd.f32 %v4066, %v4297
        %v4452 = vadd.f32 %v4067, %v4302
        %v4453 = vadd.f32 %v4068, %v4307
        %v4454 = vadd.f32 %v4069, %v4312
        %v4455 = vadd.f32 %v4070, %v4317
        %v4456 = vadd.f32 %v4071, %v4322
        %v4457 = vadd.f32 %v4072, %v4327
        %v4458 = vadd.f32 %v4073, %v4332
        %v4459 = vadd.f32 %v4074, %v4337
        %v4460 = vadd.f32 %v4075, %v4342
        %v4461 = vadd.f32 %v4076, %v4347
        %v4462 = vadd.f32 %v4077, %v4352
        %v4463 = vadd.f32 %v4078, %v4357
        %v4464 = vadd.f32 %v4079, %v4362
        %v4465 = vadd.f32 %v4080, %v4367
        %v4466 = vadd.f32 %v4081, %v4372
        %v4467 = vadd.f32 %v4082, %v4377
        %v4468 = vadd.f32 %v4083, %v4382
        %v4469 = vadd.f32 %v4084, %v4387
        %v4470 = vadd.f32 %v4085, %v4392
        %v4471 = vadd.f32 %v4086, %v4397
        %v4472 = vadd.f32 %v4087, %v4402
        %v4473 = vadd.f32 %v4088, %v4407
        %v4474 = vadd.f32 %v4089, %v4412
        %v4475 = vadd.f32 %v4090, %v4417
        %v4476 = vadd.f32 %v4091, %v4422
        %v4477 = vadd.f32 %v4092, %v4427
        %v4478 = vadd.f32 %v4093, %v4432
        %v4479 = vadd.f32 %v4094, %v4437
        %v4480 = vadd.f32 %v4095, %v4442
        %v4481 = vadd.f32 %v4096, %v4447
        %vm4482 = vcmask 130048
        %4483 = vst.msk [vmem:[%s340] sm:$0xff] %vm4482, %v4450
        %4484 = vst.msk [vmem:[%s340 + $0x8] sm:$0xff] %vm4482, %v4451
        %4485 = vst.msk [vmem:[%s340 + $0x10] sm:$0xff] %vm4482, %v4452
        %4486 = vst.msk [vmem:[%s340 + $0x18] sm:$0xff] %vm4482, %v4453
        %4487 = vst.msk [vmem:[%s340 + $0x20] sm:$0xff] %vm4482, %v4454
        %4488 = vst.msk [vmem:[%s340 + $0x28] sm:$0xff] %vm4482, %v4455
        %4489 = vst.msk [vmem:[%s340 + $0x30] sm:$0xff] %vm4482, %v4456
        %4490 = vst.msk [vmem:[%s340 + $0x38] sm:$0xff] %vm4482, %v4457
        %4491 = vst.msk [vmem:[%s340 + $0x40] sm:$0xff] %vm4482, %v4458
        %4492 = vst.msk [vmem:[%s340 + $0x48] sm:$0xff] %vm4482, %v4459
        %4493 = vst.msk [vmem:[%s340 + $0x50] sm:$0xff] %vm4482, %v4460
        %4494 = vst.msk [vmem:[%s340 + $0x58] sm:$0xff] %vm4482, %v4461
        %4495 = vst.msk [vmem:[%s340 + $0x60] sm:$0xff] %vm4482, %v4462
        %4496 = vst.msk [vmem:[%s340 + $0x68] sm:$0xff] %vm4482, %v4463
        %4497 = vst.msk [vmem:[%s340 + $0x70] sm:$0xff] %vm4482, %v4464
        %4498 = vst.msk [vmem:[%s340 + $0x78] sm:$0xff] %vm4482, %v4465
        %4499 = vst.msk [vmem:[%s340 + $0x80] sm:$0xff] %vm4482, %v4466
        %4500 = vst.msk [vmem:[%s340 + $0x88] sm:$0xff] %vm4482, %v4467
        %4501 = vst.msk [vmem:[%s340 + $0x90] sm:$0xff] %vm4482, %v4468
        %4502 = vst.msk [vmem:[%s340 + $0x98] sm:$0xff] %vm4482, %v4469
        %4503 = vst.msk [vmem:[%s340 + $0xa0] sm:$0xff] %vm4482, %v4470
        %4504 = vst.msk [vmem:[%s340 + $0xa8] sm:$0xff] %vm4482, %v4471
        %4505 = vst.msk [vmem:[%s340 + $0xb0] sm:$0xff] %vm4482, %v4472
        %4506 = vst.msk [vmem:[%s340 + $0xb8] sm:$0xff] %vm4482, %v4473
        %4507 = vst.msk [vmem:[%s340 + $0xc0] sm:$0xff] %vm4482, %v4474
        %4508 = vst.msk [vmem:[%s340 + $0xc8] sm:$0xff] %vm4482, %v4475
        %4509 = vst.msk [vmem:[%s340 + $0xd0] sm:$0xff] %vm4482, %v4476
        %4510 = vst.msk [vmem:[%s340 + $0xd8] sm:$0xff] %vm4482, %v4477
        %4511 = vst.msk [vmem:[%s340 + $0xe0] sm:$0xff] %vm4482, %v4478
        %4512 = vst.msk [vmem:[%s340 + $0xe8] sm:$0xff] %vm4482, %v4479
        %4513 = vst.msk [vmem:[%s340 + $0xf0] sm:$0xff] %vm4482, %v4480
        %4514 = vst.msk [vmem:[%s340 + $0xf8] sm:$0xff] %vm4482, %v4481
        %p4515 = scmp.lt.s32.totalorder %s23, 1
        %s4516 = scalar_select %p4515, %s23, 1
        %s4517 = smul.addr %s4516, 32
        %s4518 = smul.addr %s4517, 8
        %s4519 = scalar_lea.vmem %s7, %s4518
        // Predicated region
        $region65: #{dense_layer_forward.1} parent=47 // pred_check
          %p4520 = pneg %p193
        $region66: #{dense_layer_forward.1} parent=47 // pred_check_branch
          %4522 = sbr.rel (%p4520) target = $region68
        $region67: #{dense_layer_forward.1} parent=47 // pred_region
          _
        $region68: #{dense_layer_forward.1} parent=47 // pred_fallthru
          _
      $region48: #{dense_layer_forward.1} parent=5 // pred_fallthru
        _
      %p4523 = scmp.le.s32.totalorder 2, %s18
      // Predicated region
      $region69: #{dense_layer_forward.1} parent=5 // pred_check
        %p4524 = pneg %p4523
      $region70: #{dense_layer_forward.1} parent=5 // pred_check_branch
        %4526 = sbr.rel (%p4524) target = $region72
      $region71: #{dense_layer_forward.1} parent=5 // pred_region
        %s4527 = ssub.s32 %s18, 2
        // Predicated region
        $region73: #{dense_layer_forward.1} parent=71 // pred_check
          %p4528 = pneg %p199
        $region74: #{dense_layer_forward.1} parent=71 // pred_check_branch
          %4530 = sbr.rel (%p4528) target = $region76
        $region75: #{dense_layer_forward.1} parent=71 // pred_region
          %p4531 = scmp.lt.s32.totalorder %s24, 1
          %s4532 = scalar_select %p4531, %s24, 1
          %s4533 = smul.addr %s4532, 32
          %s4534 = smul.addr %s4533, 8
          %s4535 = scalar_lea.vmem %s7, %s4534
        $region76: #{dense_layer_forward.1} parent=71 // pred_fallthru
          _
      $region72: #{dense_layer_forward.1} parent=5 // pred_fallthru
        _
    $region6: #{dense_layer_forward.1} parent=1 // loop_footer
      %s22 = sadd.s32 1, %s18
    $region7: #{dense_layer_forward.1} parent=1 // loop_footer_branch
      %17 = sbr.rel target = $region3
    $region8: #{dense_layer_forward.1} parent=1 // loop_exit
      _
    %4536 = vsyncpa [#allocation4], 1
    %s4537 = scalar_lea.sflag [#allocation4], 1
    %4538 = vsyncpa %s4537, 1
    %4539 = vsyncpa [#allocation6], 1
    %4540 = vsyncpa [#allocation9], 1

</llo_original>
